<compile_context>
chip_gen: v7x
topology: tpu7x:2x2x1
jax: 0.10.0
libtpu: 0.0.40
codegen_flags: <defaults>
</compile_context>

<pallas_src>
import functools

import jax
import jax.numpy as jnp
from jax.experimental import pallas as pl
from jax.experimental.pallas import tpu as pltpu

_LANES = 128


def _round_up(x, m):
    return (x + m - 1) // m * m


@functools.lru_cache(maxsize=None)
def _hw_defaults():
    """Per-generation VMEM limit / row-tile target (conservative fallback)."""
    vmem_bytes = None
    try:
        vmem_bytes = int(getattr(pltpu.get_tpu_info(), "vmem_capacity_bytes", 0)) or None
    except Exception:
        vmem_bytes = None
    if vmem_bytes is None:
        try:
            kind = jax.devices()[0].device_kind.lower()
            if ("v4" in kind) or ("v5" in kind) or ("v6" in kind):
                vmem_bytes = 128 * 1024 * 1024
        except Exception:
            vmem_bytes = None
    if vmem_bytes is not None and vmem_bytes >= 100 * 1024 * 1024:
        # v4 / v5e / v6e: 128 MiB physical VMEM -> bigger blocks, deeper pipeline.
        return {"vmem_limit": 96 * 1024 * 1024, "target_rows": 4096}
    # v7x (64 MiB per TensorCore) or unknown: stay conservative, budget explicitly.
    return {"vmem_limit": 40 * 1024 * 1024, "target_rows": 2048}


def _pick_h_tile(H, W, Cin, Cp, itemsize, target_rows, vmem_budget):
    """Largest divisor-of-H row tile whose per-tile VMEM estimate fits the budget."""
    def est(th):
        rows = th * W
        return (2 * (th + 2) * (W + 2) * Cin * itemsize   # double-buffered input
                + 3 * rows * Cp * 4                        # f32 acc + 2x out buffers
                + rows * 9 * Cin * itemsize)               # im2col patch
    cands = [th for th in range(1, H + 1) if H % th == 0 and (th * W) % 8 == 0]
    if not cands:
        # TODO(synk): support non-8-aligned / remainder row tiles via masked tails.
        return H
    fitting = [th for th in cands if est(th) <= vmem_budget] or cands[:1]
    under = [th for th in fitting if th * W <= target_rows]
    return max(under) if under else min(fitting)


def _conv_tile(x_ref, w_ref):
    """3x3 conv of one (1, th+2, W+2, Cin) halo tile -> (th*W, Cp) f32 accumulator."""
    th = x_ref.shape[1] - 2
    W = x_ref.shape[2] - 2
    Cin = x_ref.shape[3]
    Cp = w_ref.shape[1]
    rows = th * W
    xwin = x_ref[0]                                   # (th+2, W+2, Cin): single DMA'd block
    if 9 * Cin <= 256:
        # Small Cin: fat-K im2col, one MXU pass with K = 9*Cin.
        taps = [xwin[kh:kh + th, kw:kw + W, :].reshape(rows, Cin)
                for kh in range(3) for kw in range(3)]
        patch = jnp.concatenate(taps, axis=-1)        # (rows, 9*Cin)
        return jnp.dot(patch, w_ref[...], preferred_element_type=jnp.float32)
    # Large Cin: avoid the lane-misaligned concat / large patch temporary and do
    # 9 per-tap matmuls accumulated in f32.
    acc = jnp.zeros((rows, Cp), jnp.float32)
    tap_id = 0
    for kh in range(3):
        for kw in range(3):
            tap = xwin[kh:kh + th, kw:kw + W, :].reshape(rows, Cin)
            acc = acc + jnp.dot(tap, w_ref[tap_id * Cin:(tap_id + 1) * Cin, :],
                                preferred_element_type=jnp.float32)
            tap_id += 1
    return acc


def _conv_stats_kernel(x_ref, w_ref, st_ref):
    """Pass 1 (stats only): per-tile centered BatchNorm partials, no conv writeback.

    x_ref:  (1, th+2, W+2, Cin)  halo-expanded input tile (one DMA)
    w_ref:  (9*Cin, Cp)          flattened conv weights (resident)
    st_ref: (1, 2, Cp)           per-tile [sum, centered sum-of-squares]
    """
    rows = (x_ref.shape[1] - 2) * (x_ref.shape[2] - 2)
    acc = _conv_tile(x_ref, w_ref)                     # (rows, Cp) f32
    s = jnp.sum(acc, axis=0, keepdims=True)            # (1, Cp)
    d = acc - s * (1.0 / rows)
    st_ref[0, 0:1, :] = s
    st_ref[0, 1:2, :] = jnp.sum(d * d, axis=0, keepdims=True)


def _conv_bn_relu_kernel(x_ref, w_ref, scale_ref, shift_ref, o_ref):
    """Pass 2: recompute the 3x3 conv fused with BN affine + ReLU (lane-dense store)."""
    acc = _conv_tile(x_ref, w_ref)                     # (rows, Cp) f32
    o_ref[...] = jnp.maximum(acc * scale_ref[...] + shift_ref[...], 0.0)


@functools.partial(jax.jit, static_argnames=("matmul_dtype",))
def conv_block_forward(x_nchw, w_oihw, bias, gamma, beta, *,
                       matmul_dtype=jnp.bfloat16):
    """ConvBlock forward (norm='batch'): Conv2d(3x3, pad=1, bias) -> BatchNorm2d
    (training-mode batch statistics) -> ReLU.  NCHW f32 in / NCHW f32 out.

    bf16 matmul inputs by default (f32 MXU accumulation + f32 BN statistics);
    pass matmul_dtype=jnp.float32 for bit-tight numerics.
    """
    # TODO(synk): norm='group' and norm=None ConvBlock variants are not implemented
    # (only the default norm='batch' training-mode path).
    N, Cin, H, W = x_nchw.shape
    Cout = w_oihw.shape[0]
    Cp = _round_up(Cout, _LANES)                       # lane-dense channel dim
    eps = 1e-5
    itemsize = jnp.dtype(matmul_dtype).itemsize
    hw = _hw_defaults()
    vmem_limit = hw["vmem_limit"]

    # ---- wrapper glue: layout + zero pad + per-tile halo expansion -----------
    # TODO(synk): the zero pad, the 2-row halo duplication and the final
    # NHWC->NCHW transpose / Cout un-pad are real (x / out sized) HBM copies;
    # fold them into the kernels with edge masking + an overlapping-window
    # (element-offset) in_spec and a strided out_spec if x traffic ever matters.
    x_nhwc = jnp.transpose(x_nchw, (0, 2, 3, 1)).astype(matmul_dtype)
    x_pad = jnp.pad(x_nhwc, ((0, 0), (1, 1), (1, 1), (0, 0)))   # (N, H+2, W+2, Cin)

    th = _pick_h_tile(H, W, Cin, Cp, itemsize,
                      target_rows=hw["target_rows"],
                      vmem_budget=vmem_limit // 2)
    n_ht = H // th
    num_tiles = N * n_ht
    tile_rows = th * W
    rows_total = N * H * W

    if n_ht == 1:
        x_tiles = x_pad                                 # already (num_tiles, th+2, W+2, Cin)
    else:
        # Halo-expanded tiles: duplicate only 2 rows per tile so each grid step
        # is a SINGLE plain-Blocked DMA (no 3-input staging copy in VMEM).
        x_tiles = jnp.stack([x_pad[:, i * th:i * th + th + 2]
                             for i in range(n_ht)], axis=1)
        x_tiles = x_tiles.reshape(num_tiles, th + 2, W + 2, Cin)

    w_mat = jnp.transpose(w_oihw, (2, 3, 1, 0)).reshape(9 * Cin, Cout)
    w_mat = jnp.pad(w_mat, ((0, 0), (0, Cp - Cout))).astype(matmul_dtype)
    g_pad = jnp.pad(gamma.astype(jnp.float32), (0, Cp - Cout))
    be_pad = jnp.pad(beta.astype(jnp.float32), (0, Cp - Cout))
    bias_pad = jnp.pad(bias.astype(jnp.float32), (0, Cp - Cout))

    # ---- pass 1: stats only (no activation-sized HBM writeback) --------------
    part = pl.pallas_call(
        _conv_stats_kernel,
        out_shape=jax.ShapeDtypeStruct((num_tiles, 2, Cp), jnp.float32),
        grid=(num_tiles,),
        in_specs=[
            pl.BlockSpec((1, th + 2, W + 2, Cin), lambda t: (t, 0, 0, 0)),
            pl.BlockSpec((9 * Cin, Cp), lambda t: (0, 0)),
        ],
        out_specs=pl.BlockSpec((1, 2, Cp), lambda t: (t, 0, 0)),
        compiler_params=pltpu.CompilerParams(
            dimension_semantics=("parallel",),
            vmem_limit_bytes=vmem_limit),
    )(x_tiles, w_mat)

    # ---- global training-mode BN statistics (Chan parallel combine) ----------
    sums = part[:, 0, :]                                # (T, Cp) per-tile sums
    m2s = part[:, 1, :]                                 # (T, Cp) per-tile centered SS
    cnt = jnp.float32(rows_total)
    tile_mean = sums / jnp.float32(tile_rows)
    m0 = jnp.sum(sums, axis=0) / cnt                    # mean of conv WITHOUT bias
    m2 = jnp.sum(m2s, axis=0) + jnp.float32(tile_rows) * jnp.sum(
        (tile_mean - m0) ** 2, axis=0)
    var = jnp.maximum(m2 / cnt, 0.0)                    # shift-invariant: bias-free
    inv_std = jax.lax.rsqrt(var + eps)
    scale = g_pad * inv_std
    mean = m0 + bias_pad                                # conv bias shifts the mean only
    # BN affine shift with the conv bias folded into pass 2's shift (it cancels
    # exactly under training-mode BatchNorm; keeping the algebra explicit avoids
    # the silent-drop footgun and stays correct if a norm=None path is added).
    shift = be_pad - mean * scale + bias_pad * scale
    scale = scale.reshape(1, Cp)
    shift = shift.reshape(1, Cp)

    # ---- pass 2: recompute conv + fused BN affine + ReLU (lane-dense out) ----
    out2d = pl.pallas_call(
        _conv_bn_relu_kernel,
        out_shape=jax.ShapeDtypeStruct((rows_total, Cp), jnp.float32),
        grid=(num_tiles,),
        in_specs=[
            pl.BlockSpec((1, th + 2, W + 2, Cin), lambda t: (t, 0, 0, 0)),
            pl.BlockSpec((9 * Cin, Cp), lambda t: (0, 0)),
            pl.BlockSpec((1, Cp), lambda t: (0, 0)),
            pl.BlockSpec((1, Cp), lambda t: (0, 0)),
        ],
        out_specs=pl.BlockSpec((tile_rows, Cp), lambda t: (t, 0)),
        compiler_params=pltpu.CompilerParams(
            dimension_semantics=("parallel",),
            vmem_limit_bytes=vmem_limit),
    )(x_tiles, w_mat, scale, shift)

    out = out2d[:, :Cout].reshape(N, H, W, Cout)
    return jnp.transpose(out, (0, 3, 1, 2))             # back to NCHW


def _reference(x_nchw, w_oihw, bias, gamma, beta, eps=1e-5, cast_dtype=None):
    x, w = x_nchw, w_oihw
    if cast_dtype is not None:
        x = x.astype(cast_dtype).astype(jnp.float32)
        w = w.astype(cast_dtype).astype(jnp.float32)
    y = jax.lax.conv_general_dilated(
        x, w, window_strides=(1, 1), padding=((1, 1), (1, 1)),
        dimension_numbers=("NCHW", "OIHW", "NCHW"))
    y = y + bias[None, :, None, None]
    mean = y.mean(axis=(0, 2, 3), keepdims=True)
    var = ((y - mean) ** 2).mean(axis=(0, 2, 3), keepdims=True)
    y = (y - mean) * jax.lax.rsqrt(var + eps)
    y = y * gamma[None, :, None, None] + beta[None, :, None, None]
    return jnp.maximum(y, 0.0)


if __name__ == "__main__":
    key = jax.random.PRNGKey(0)
    N, Cin, Cout, H, W = 2, 4, 8, 16, 16

    kx, kw, kb, kg, kbe = jax.random.split(key, 5)
    x = jax.random.normal(kx, (N, Cin, H, W), dtype=jnp.float32)
    # Synthetic parameters; shapes match nn.Conv2d(Cin, Cout, 3) + BatchNorm2d.
    w = jax.random.normal(kw, (Cout, Cin, 3, 3), dtype=jnp.float32) * 0.1
    b = jax.random.normal(kb, (Cout,), dtype=jnp.float32) * 0.1
    gamma = 1.0 + 0.1 * jax.random.normal(kg, (Cout,), dtype=jnp.float32)
    beta = 0.1 * jax.random.normal(kbe, (Cout,), dtype=jnp.float32)

    # Default bf16 matmul path (f32 accumulation + f32 BN statistics).
    out_bf16 = jax.block_until_ready(conv_block_forward(x, w, b, gamma, beta))
    ref_bf16 = _reference(x, w, b, gamma, beta, cast_dtype=jnp.bfloat16)
    assert out_bf16.shape == (N, Cout, H, W)
    assert jnp.allclose(out_bf16, ref_bf16, atol=2e-2, rtol=2e-2), "bf16 mismatch"

    # f32 matmul path: tight tolerance vs the f32 reference.
    out_f32 = jax.block_until_ready(
        conv_block_forward(x, w, b, gamma, beta, matmul_dtype=jnp.float32))
    ref_f32 = _reference(x, w, b, gamma, beta)
    assert jnp.allclose(out_f32, ref_f32, atol=1e-4, rtol=1e-4), "f32 mismatch"

    print("KERNEL_OK")
</pallas_src>

<mosaic_0001>
module attributes {stable_mosaic.version = 11 : i64} {
  func.func @_conv_stats_kernel(%arg0: i32, %arg1: memref<1x18x18x4xbf16, #tpu.memory_space<vmem>>, %arg2: memref<36x128xbf16, #tpu.memory_space<vmem>>, %arg3: memref<1x2x128xf32, #tpu.memory_space<vmem>>) attributes {dimension_semantics = [#tpu.dimension_semantics<parallel>], iteration_bounds = array<i64: 2>, scalar_prefetch = 0 : i64, scratch_operands = 0 : i64, tpu.core_type = #tpu.core_type<tc>, window_params = [{transform_indices = @transform_0, window_bounds = array<i64: 1, 18, 18, 4>}, {pipeline_mode = #tpu.pipeline_mode<synchronous>, transform_indices = @transform_1, window_bounds = array<i64: 36, 128>}, {transform_indices = @transform_2, window_bounds = array<i64: 1, 2, 128>}]} {
    %c0 = arith.constant 0 : index
    %c0_0 = arith.constant 0 : index
    %c0_1 = arith.constant 0 : index
    %c0_2 = arith.constant 0 : index
    %0 = vector.load %arg1[%c0, %c0_0, %c0_1, %c0_2] : memref<1x18x18x4xbf16, #tpu.memory_space<vmem>>, vector<1x18x18x4xbf16>
    %1 = vector.shape_cast %0 : vector<1x18x18x4xbf16> to vector<18x18x4xbf16>
    %2 = vector.extract_strided_slice %1 {offsets = [0, 0, 0], sizes = [16, 16, 4], strides = [1, 1, 1]} : vector<18x18x4xbf16> to vector<16x16x4xbf16>
    %3 = vector.shape_cast %2 : vector<16x16x4xbf16> to vector<256x4xbf16>
    %4 = vector.extract_strided_slice %1 {offsets = [0, 1, 0], sizes = [16, 16, 4], strides = [1, 1, 1]} : vector<18x18x4xbf16> to vector<16x16x4xbf16>
    %5 = vector.shape_cast %4 : vector<16x16x4xbf16> to vector<256x4xbf16>
    %6 = vector.extract_strided_slice %1 {offsets = [0, 2, 0], sizes = [16, 16, 4], strides = [1, 1, 1]} : vector<18x18x4xbf16> to vector<16x16x4xbf16>
    %7 = vector.shape_cast %6 : vector<16x16x4xbf16> to vector<256x4xbf16>
    %8 = vector.extract_strided_slice %1 {offsets = [1, 0, 0], sizes = [16, 16, 4], strides = [1, 1, 1]} : vector<18x18x4xbf16> to vector<16x16x4xbf16>
    %9 = vector.shape_cast %8 : vector<16x16x4xbf16> to vector<256x4xbf16>
    %10 = vector.extract_strided_slice %1 {offsets = [1, 1, 0], sizes = [16, 16, 4], strides = [1, 1, 1]} : vector<18x18x4xbf16> to vector<16x16x4xbf16>
    %11 = vector.shape_cast %10 : vector<16x16x4xbf16> to vector<256x4xbf16>
    %12 = vector.extract_strided_slice %1 {offsets = [1, 2, 0], sizes = [16, 16, 4], strides = [1, 1, 1]} : vector<18x18x4xbf16> to vector<16x16x4xbf16>
    %13 = vector.shape_cast %12 : vector<16x16x4xbf16> to vector<256x4xbf16>
    %14 = vector.extract_strided_slice %1 {offsets = [2, 0, 0], sizes = [16, 16, 4], strides = [1, 1, 1]} : vector<18x18x4xbf16> to vector<16x16x4xbf16>
    %15 = vector.shape_cast %14 : vector<16x16x4xbf16> to vector<256x4xbf16>
    %16 = vector.extract_strided_slice %1 {offsets = [2, 1, 0], sizes = [16, 16, 4], strides = [1, 1, 1]} : vector<18x18x4xbf16> to vector<16x16x4xbf16>
    %17 = vector.shape_cast %16 : vector<16x16x4xbf16> to vector<256x4xbf16>
    %18 = vector.extract_strided_slice %1 {offsets = [2, 2, 0], sizes = [16, 16, 4], strides = [1, 1, 1]} : vector<18x18x4xbf16> to vector<16x16x4xbf16>
    %19 = vector.shape_cast %18 : vector<16x16x4xbf16> to vector<256x4xbf16>
    %20 = tpu.concatenate %3, %5, %7, %9, %11, %13, %15, %17, %19 in 1 : vector<256x4xbf16>, vector<256x4xbf16>, vector<256x4xbf16>, vector<256x4xbf16>, vector<256x4xbf16>, vector<256x4xbf16>, vector<256x4xbf16>, vector<256x4xbf16>, vector<256x4xbf16> -> vector<256x36xbf16>
    %c0_3 = arith.constant 0 : index
    %c0_4 = arith.constant 0 : index
    %21 = vector.load %arg2[%c0_3, %c0_4] : memref<36x128xbf16, #tpu.memory_space<vmem>>, vector<36x128xbf16>
    %cst = arith.constant dense<0.000000e+00> : vector<256x128xf32>
    %22 = tpu.matmul %20, %21, %cst {dimension_numbers = #tpu.dot_dimension_numbers<[1], [0], [0], [1], [0, 0, 1, 1], [], []>} : vector<256x36xbf16>, vector<36x128xbf16>, vector<256x128xf32> -> vector<256x128xf32>
    %cst_5 = arith.constant dense<0.000000e+00> : vector<128xf32>
    %23 = vector.multi_reduction <add>, %22, %cst_5 [0] : vector<256x128xf32> to vector<128xf32>
    %24 = vector.shape_cast %23 : vector<128xf32> to vector<1x128xf32>
    %cst_6 = arith.constant 3.906250e-03 : f32
    %25 = vector.broadcast %cst_6 : f32 to vector<1x128xf32>
    %26 = arith.mulf %24, %25 : vector<1x128xf32>
    %27 = vector.broadcast %26 : vector<1x128xf32> to vector<256x128xf32>
    %28 = arith.subf %22, %27 : vector<256x128xf32>
    %c0_7 = arith.constant 0 : index
    %c0_8 = arith.constant 0 : index
    %c0_9 = arith.constant 0 : index
    %29 = vector.load %arg3[%c0_7, %c0_8, %c0_9] : memref<1x2x128xf32, #tpu.memory_space<vmem>>, vector<1x1x128xf32>
    %30 = vector.shape_cast %29 : vector<1x1x128xf32> to vector<1x128xf32>
    %31 = vector.shape_cast %24 : vector<1x128xf32> to vector<1x1x128xf32>
    tpu.vector_store %arg3[%c0_7, %c0_8, %c0_9], %31 {strides = array<i32>} : memref<1x2x128xf32, #tpu.memory_space<vmem>>, vector<1x1x128xf32>,
    %32 = arith.mulf %28, %28 : vector<256x128xf32>
    %cst_10 = arith.constant dense<0.000000e+00> : vector<128xf32>
    %33 = vector.multi_reduction <add>, %32, %cst_10 [0] : vector<256x128xf32> to vector<128xf32>
    %34 = vector.shape_cast %33 : vector<128xf32> to vector<1x128xf32>
    %c0_11 = arith.constant 0 : index
    %c1 = arith.constant 1 : index
    %c0_12 = arith.constant 0 : index
    %35 = vector.load %arg3[%c0_11, %c1, %c0_12] : memref<1x2x128xf32, #tpu.memory_space<vmem>>, vector<1x1x128xf32>
    %36 = vector.shape_cast %35 : vector<1x1x128xf32> to vector<1x128xf32>
    %37 = vector.shape_cast %34 : vector<1x128xf32> to vector<1x1x128xf32>
    tpu.vector_store %arg3[%c0_11, %c1, %c0_12], %37 {strides = array<i32>} : memref<1x2x128xf32, #tpu.memory_space<vmem>>, vector<1x1x128xf32>,
    return
  }
  func.func @transform_0(%arg0: i32) -> (i32, i32, i32, i32) {
    %c0_i32 = arith.constant 0 : i32
    %c0_i32_0 = arith.constant 0 : i32
    %c0_i32_1 = arith.constant 0 : i32
    %c0_i32_2 = arith.constant 0 : i32
    return %arg0, %c0_i32, %c0_i32_0, %c0_i32_1 : i32, i32, i32, i32
  }
  func.func @transform_1(%arg0: i32) -> (i32, i32) {
    %c0_i32 = arith.constant 0 : i32
    %c0_i32_0 = arith.constant 0 : i32
    %c0_i32_1 = arith.constant 0 : i32
    return %c0_i32, %c0_i32_0 : i32, i32
  }
  func.func @transform_2(%arg0: i32) -> (i32, i32, i32) {
    %c0_i32 = arith.constant 0 : i32
    %c0_i32_0 = arith.constant 0 : i32
    %c0_i32_1 = arith.constant 0 : i32
    return %arg0, %c0_i32, %c0_i32_0 : i32, i32, i32
  }
}

module attributes {stable_mosaic.version = 11 : i64} {
  func.func @_conv_bn_relu_kernel(%arg0: i32, %arg1: memref<1x18x18x4xbf16, #tpu.memory_space<vmem>>, %arg2: memref<36x128xbf16, #tpu.memory_space<vmem>>, %arg3: memref<1x128xf32, #tpu.memory_space<vmem>>, %arg4: memref<1x128xf32, #tpu.memory_space<vmem>>, %arg5: memref<256x128xf32, #tpu.memory_space<vmem>>) attributes {dimension_semantics = [#tpu.dimension_semantics<parallel>], iteration_bounds = array<i64: 2>, scalar_prefetch = 0 : i64, scratch_operands = 0 : i64, tpu.core_type = #tpu.core_type<tc>, window_params = [{transform_indices = @transform_0, window_bounds = array<i64: 1, 18, 18, 4>}, {pipeline_mode = #tpu.pipeline_mode<synchronous>, transform_indices = @transform_1, window_bounds = array<i64: 36, 128>}, {pipeline_mode = #tpu.pipeline_mode<synchronous>, transform_indices = @transform_2, window_bounds = array<i64: 1, 128>}, {pipeline_mode = #tpu.pipeline_mode<synchronous>, transform_indices = @transform_3, window_bounds = array<i64: 1, 128>}, {transform_indices = @transform_4, window_bounds = array<i64: 256, 128>}]} {
    %c0 = arith.constant 0 : index
    %c0_0 = arith.constant 0 : index
    %c0_1 = arith.constant 0 : index
    %c0_2 = arith.constant 0 : index
    %0 = vector.load %arg1[%c0, %c0_0, %c0_1, %c0_2] : memref<1x18x18x4xbf16, #tpu.memory_space<vmem>>, vector<1x18x18x4xbf16>
    %1 = vector.shape_cast %0 : vector<1x18x18x4xbf16> to vector<18x18x4xbf16>
    %2 = vector.extract_strided_slice %1 {offsets = [0, 0, 0], sizes = [16, 16, 4], strides = [1, 1, 1]} : vector<18x18x4xbf16> to vector<16x16x4xbf16>
    %3 = vector.shape_cast %2 : vector<16x16x4xbf16> to vector<256x4xbf16>
    %4 = vector.extract_strided_slice %1 {offsets = [0, 1, 0], sizes = [16, 16, 4], strides = [1, 1, 1]} : vector<18x18x4xbf16> to vector<16x16x4xbf16>
    %5 = vector.shape_cast %4 : vector<16x16x4xbf16> to vector<256x4xbf16>
    %6 = vector.extract_strided_slice %1 {offsets = [0, 2, 0], sizes = [16, 16, 4], strides = [1, 1, 1]} : vector<18x18x4xbf16> to vector<16x16x4xbf16>
    %7 = vector.shape_cast %6 : vector<16x16x4xbf16> to vector<256x4xbf16>
    %8 = vector.extract_strided_slice %1 {offsets = [1, 0, 0], sizes = [16, 16, 4], strides = [1, 1, 1]} : vector<18x18x4xbf16> to vector<16x16x4xbf16>
    %9 = vector.shape_cast %8 : vector<16x16x4xbf16> to vector<256x4xbf16>
    %10 = vector.extract_strided_slice %1 {offsets = [1, 1, 0], sizes = [16, 16, 4], strides = [1, 1, 1]} : vector<18x18x4xbf16> to vector<16x16x4xbf16>
    %11 = vector.shape_cast %10 : vector<16x16x4xbf16> to vector<256x4xbf16>
    %12 = vector.extract_strided_slice %1 {offsets = [1, 2, 0], sizes = [16, 16, 4], strides = [1, 1, 1]} : vector<18x18x4xbf16> to vector<16x16x4xbf16>
    %13 = vector.shape_cast %12 : vector<16x16x4xbf16> to vector<256x4xbf16>
    %14 = vector.extract_strided_slice %1 {offsets = [2, 0, 0], sizes = [16, 16, 4], strides = [1, 1, 1]} : vector<18x18x4xbf16> to vector<16x16x4xbf16>
    %15 = vector.shape_cast %14 : vector<16x16x4xbf16> to vector<256x4xbf16>
    %16 = vector.extract_strided_slice %1 {offsets = [2, 1, 0], sizes = [16, 16, 4], strides = [1, 1, 1]} : vector<18x18x4xbf16> to vector<16x16x4xbf16>
    %17 = vector.shape_cast %16 : vector<16x16x4xbf16> to vector<256x4xbf16>
    %18 = vector.extract_strided_slice %1 {offsets = [2, 2, 0], sizes = [16, 16, 4], strides = [1, 1, 1]} : vector<18x18x4xbf16> to vector<16x16x4xbf16>
    %19 = vector.shape_cast %18 : vector<16x16x4xbf16> to vector<256x4xbf16>
    %20 = tpu.concatenate %3, %5, %7, %9, %11, %13, %15, %17, %19 in 1 : vector<256x4xbf16>, vector<256x4xbf16>, vector<256x4xbf16>, vector<256x4xbf16>, vector<256x4xbf16>, vector<256x4xbf16>, vector<256x4xbf16>, vector<256x4xbf16>, vector<256x4xbf16> -> vector<256x36xbf16>
    %c0_3 = arith.constant 0 : index
    %c0_4 = arith.constant 0 : index
    %21 = vector.load %arg2[%c0_3, %c0_4] : memref<36x128xbf16, #tpu.memory_space<vmem>>, vector<36x128xbf16>
    %cst = arith.constant dense<0.000000e+00> : vector<256x128xf32>
    %22 = tpu.matmul %20, %21, %cst {dimension_numbers = #tpu.dot_dimension_numbers<[1], [0], [0], [1], [0, 0, 1, 1], [], []>} : vector<256x36xbf16>, vector<36x128xbf16>, vector<256x128xf32> -> vector<256x128xf32>
    %c0_5 = arith.constant 0 : index
    %c0_6 = arith.constant 0 : index
    %23 = vector.load %arg3[%c0_5, %c0_6] : memref<1x128xf32, #tpu.memory_space<vmem>>, vector<1x128xf32>
    %24 = vector.broadcast %23 : vector<1x128xf32> to vector<256x128xf32>
    %25 = arith.mulf %22, %24 : vector<256x128xf32>
    %c0_7 = arith.constant 0 : index
    %c0_8 = arith.constant 0 : index
    %26 = vector.load %arg4[%c0_7, %c0_8] : memref<1x128xf32, #tpu.memory_space<vmem>>, vector<1x128xf32>
    %27 = vector.broadcast %26 : vector<1x128xf32> to vector<256x128xf32>
    %28 = arith.addf %25, %27 : vector<256x128xf32>
    %cst_9 = arith.constant 0.000000e+00 : f32
    %29 = vector.broadcast %cst_9 : f32 to vector<256x128xf32>
    %30 = arith.maximumf %28, %29 : vector<256x128xf32>
    %c0_10 = arith.constant 0 : index
    %c0_11 = arith.constant 0 : index
    %31 = vector.load %arg5[%c0_10, %c0_11] : memref<256x128xf32, #tpu.memory_space<vmem>>, vector<256x128xf32>
    tpu.vector_store %arg5[%c0_10, %c0_11], %30 {strides = array<i32>} : memref<256x128xf32, #tpu.memory_space<vmem>>, vector<256x128xf32>,
    return
  }
  func.func @transform_0(%arg0: i32) -> (i32, i32, i32, i32) {
    %c0_i32 = arith.constant 0 : i32
    %c0_i32_0 = arith.constant 0 : i32
    %c0_i32_1 = arith.constant 0 : i32
    %c0_i32_2 = arith.constant 0 : i32
    return %arg0, %c0_i32, %c0_i32_0, %c0_i32_1 : i32, i32, i32, i32
  }
  func.func @transform_1(%arg0: i32) -> (i32, i32) {
    %c0_i32 = arith.constant 0 : i32
    %c0_i32_0 = arith.constant 0 : i32
    %c0_i32_1 = arith.constant 0 : i32
    return %c0_i32, %c0_i32_0 : i32, i32
  }
  func.func @transform_2(%arg0: i32) -> (i32, i32) {
    %c0_i32 = arith.constant 0 : i32
    %c0_i32_0 = arith.constant 0 : i32
    %c0_i32_1 = arith.constant 0 : i32
    return %c0_i32, %c0_i32_0 : i32, i32
  }
  func.func @transform_3(%arg0: i32) -> (i32, i32) {
    %c0_i32 = arith.constant 0 : i32
    %c0_i32_0 = arith.constant 0 : i32
    %c0_i32_1 = arith.constant 0 : i32
    return %c0_i32, %c0_i32_0 : i32, i32
  }
  func.func @transform_4(%arg0: i32) -> (i32, i32) {
    %c0_i32 = arith.constant 0 : i32
    %c0_i32_0 = arith.constant 0 : i32
    return %arg0, %c0_i32 : i32, i32
  }
}

</mosaic_0001>

<llo_original>
// kernel: conv_block_forward.2
$region0: #{conv_block_forward.2}
  #allocation0 [shape = 'u32[]', space=smem, size = 0x4, offset = 0x4, fixed_abs, tag = 'smem constant byte address 0x4 - core index']
  #allocation1 [shape = 'u32[144,128]{1,0:T(1,128)}', space=vmem, size = 0x12000, scoped, tag = 'internal scratch']
  %s0 = inlined_call_operand.vmem [shape: bf16[2,18,18,4], index: 0, kind: input, shape index: {}]
  %s1 = inlined_call_operand.vmem [shape: bf16[36,128], index: 1, kind: input, shape index: {}]
  %s2 = inlined_call_operand.vmem [shape: f32[2,2,128], index: 2, kind: output, shape index: {}]
  %s3 = sld [smem:[#allocation0]]
  $region41: #{conv_block_forward.2} parent=0
    _
  %s5 = ssub.s32 1, %s3
  %s6 = scalar_select 0, %s5, %s3
  loop: start=0, step=1, limit=4
  $region2: #{conv_block_forward.2} parent=0 // loop_pre_header
    _
  $region3: #{conv_block_forward.2} parent=0 // loop_header
    %s8 = sphi 0, %s12
    %p9 = scmp.ge.s32.totalorder %s8, 4
    %s18 = sphi 0, %s20
    %s21 = sphi 0, %s18
    %s22 = sphi 0, %s21
    %s38 = sphi 0, %s22
    %s42 = sphi 0, %s42
    %s44 = sphi 0, %s42
    %s45 = sphi 0, %s44
    %s59 = sphi 0, %s45
    %s65 = sphi 0, %s67
    %s68 = sphi 0, %s65
    %s69 = sphi 0, %s68
    %s85 = sphi 0, %s69
  $region4: #{conv_block_forward.2} parent=0 // loop_header_branch
    %11 = sbr.rel (%p9) target = $region8
  $region5: #{conv_block_forward.2} parent=0 // loop_body
    %s13 = ssub.s32 %s8, 1
    %s14 = ssub.s32 %s8, 2
    %s15 = sadd.s32 %s8, 1
    %s16 = ssub.s32 %s8, %s15
    %p17 = scmp.eq.s32.totalorder %s16, 0
    %s19 = sadd.s32 %s18, 1
    %s20 = scalar_select %p17, %s18, %s19
    %p23 = pneg %p17
    %p24 = scmp.eq.s32.totalorder %s8, 1
    %p25 = por %p23, %p24
    %p26 = scmp.ne.s32.totalorder %s18, %s21
    %p27 = scmp.eq.s32.totalorder %s8, 0
    %p28 = por %p26, %p27
    %p29 = scmp.ne.s32.totalorder %s18, %s21
    %p30 = scmp.eq.s32.totalorder %s13, 1
    %p31 = por %p29, %p30
    %p32 = scmp.ne.s32.totalorder %s21, %s22
    %p33 = scmp.eq.s32.totalorder %s13, 0
    %p34 = por %p32, %p33
    %p35 = scmp.ne.s32.totalorder %s21, %s22
    %p36 = scmp.eq.s32.totalorder %s14, 1
    %p37 = por %p35, %p36
    %p39 = scmp.ne.s32.totalorder %s22, %s38
    %p40 = scmp.eq.s32.totalorder %s14, 0
    %p41 = por %p39, %p40
    %s43 = sadd.s32 %s42, 1
    %p46 = scmp.eq.s32.totalorder %s8, 1
    %p47 = scmp.ne.s32.totalorder %s42, %s44
    %p48 = scmp.eq.s32.totalorder %s8, 0
    %p49 = por %p47, %p48
    %p50 = scmp.ne.s32.totalorder %s42, %s44
    %p51 = scmp.eq.s32.totalorder %s13, 1
    %p52 = por %p50, %p51
    %p53 = scmp.ne.s32.totalorder %s44, %s45
    %p54 = scmp.eq.s32.totalorder %s13, 0
    %p55 = por %p53, %p54
    %p56 = scmp.ne.s32.totalorder %s44, %s45
    %p57 = scmp.eq.s32.totalorder %s14, 1
    %p58 = por %p56, %p57
    %p60 = scmp.ne.s32.totalorder %s45, %s59
    %p61 = scmp.eq.s32.totalorder %s14, 0
    %p62 = por %p60, %p61
    %s63 = ssub.s32 %s8, %s15
    %p64 = scmp.eq.s32.totalorder %s63, 0
    %s66 = sadd.s32 %s65, 1
    %s67 = scalar_select %p64, %s65, %s66
    %p70 = pneg %p64
    %p71 = scmp.eq.s32.totalorder %s8, 1
    %p72 = por %p70, %p71
    %p73 = scmp.ne.s32.totalorder %s65, %s68
    %p74 = scmp.eq.s32.totalorder %s8, 0
    %p75 = por %p73, %p74
    %p76 = scmp.ne.s32.totalorder %s65, %s68
    %p77 = scmp.eq.s32.totalorder %s13, 1
    %p78 = por %p76, %p77
    %p79 = scmp.ne.s32.totalorder %s68, %s69
    %p80 = scmp.eq.s32.totalorder %s13, 0
    %p81 = por %p79, %p80
    %p82 = scmp.ne.s32.totalorder %s68, %s69
    %p83 = scmp.eq.s32.totalorder %s14, 1
    %p84 = por %p82, %p83
    %p86 = scmp.ne.s32.totalorder %s69, %s85
    %p87 = scmp.eq.s32.totalorder %s14, 0
    %p88 = por %p86, %p87
    %p89 = scmp.le.s32.totalorder 1, %s8
    %p90 = scmp.lt.s32.totalorder %s8, 3
    %p91 = pnand %p89, %p90
    %p92 = pneg %p91
    // Predicated region
    $region9: #{conv_block_forward.2} parent=5 // pred_check
      _
    $region10: #{conv_block_forward.2} parent=5 // pred_check_branch
      %94 = sbr.rel (%p91) target = $region12
    $region11: #{conv_block_forward.2} parent=5 // pred_region
      %s95 = ssub.s32 %s8, 1
      // Predicated region
      $region13: #{conv_block_forward.2} parent=11 // pred_check
        %p96 = pneg %p55
      $region14: #{conv_block_forward.2} parent=11 // pred_check_branch
        %98 = sbr.rel (%p96) target = $region16
      $region15: #{conv_block_forward.2} parent=11 // pred_region
        _
      $region16: #{conv_block_forward.2} parent=11 // pred_fallthru
        _
    $region12: #{conv_block_forward.2} parent=5 // pred_fallthru
      _
    %p99 = scmp.lt.s32.totalorder %s8, 2
    // Predicated region
    $region17: #{conv_block_forward.2} parent=5 // pred_check
      %p100 = pneg %p99
    $region18: #{conv_block_forward.2} parent=5 // pred_check_branch
      %102 = sbr.rel (%p100) target = $region20
    $region19: #{conv_block_forward.2} parent=5 // pred_region
      // Predicated region
      $region21: #{conv_block_forward.2} parent=19 // pred_check
        %p103 = pneg %p28
      $region22: #{conv_block_forward.2} parent=19 // pred_check_branch
        %105 = sbr.rel (%p103) target = $region24
      $region23: #{conv_block_forward.2} parent=19 // pred_region
        %p106 = scmp.lt.s32.totalorder %s8, 1
        %s107 = scalar_select %p106, %s8, 1
        %s108 = smul.addr %s107, 54
        %s109 = smul.addr %s108, 4
        %s110 = scalar_lea.vmem %s0, %s109
      $region24: #{conv_block_forward.2} parent=19 // pred_fallthru
        _
    $region20: #{conv_block_forward.2} parent=5 // pred_fallthru
      _
    %p111 = scmp.le.s32.totalorder 1, %s8
    %p112 = scmp.lt.s32.totalorder %s8, 3
    %p113 = pnand %p111, %p112
    %p114 = pneg %p113
    // Predicated region
    $region25: #{conv_block_forward.2} parent=5 // pred_check
      _
    $region26: #{conv_block_forward.2} parent=5 // pred_check_branch
      %116 = sbr.rel (%p113) target = $region28
    $region27: #{conv_block_forward.2} parent=5 // pred_region
      %s117 = ssub.s32 %s8, 1
      %p118 = scmp.lt.s32.totalorder %s13, 1
      %s119 = scalar_select %p118, %s13, 1
      %s120 = smul.addr %s119, 54
      %s121 = smul.addr %s120, 4
      %s122 = scalar_lea.vmem %s0, %s121
      %p123 = pneg %p34
      %p124 = pneg %p31
      %p125 = pneg %p55
      %p126 = pneg %p52
      %p127 = pneg %p81
      %p128 = pneg %p78
      %p129 = scmp.lt.s32.totalorder %s13, 1
      %s130 = scalar_select %p129, %s13, 1
      %s131 = smul.addr %s130, 2
      %s132 = scalar_lea.vmem %s2, %s131
      %p133 = scmp.lt.s32.totalorder %s13, 1
      %s134 = scalar_select %p133, %s13, 1
      %s135 = smul.addr %s134, 54
      %s136 = smul.addr %s135, 4
      %s137 = scalar_lea.vmem %s0, %s136
      %p138 = scmp.lt.s32.totalorder %s13, 1
      %s139 = scalar_select %p138, %s13, 1
      %s140 = smul.addr %s139, 2
      %s141 = scalar_lea.vmem %s2, %s140
      %v143 = vld [vmem:[%s137] sm:$0xf]
      %v144 = vld [vmem:[%s137 + $0x4] sm:$0xf]
      %v145 = vld [vmem:[%s137 + $0x8] sm:$0x1]
      %v146 = vld [vmem:[%s137 + $0xc] sm:$0xf]
      %v147 = vld [vmem:[%s137 + $0x10] sm:$0xf]
      %v148 = vld [vmem:[%s137 + $0x14] sm:$0x1]
      %v149 = vld [vmem:[%s137 + $0x18] sm:$0xf]
      %v150 = vld [vmem:[%s137 + $0x1c] sm:$0xf]
      %v151 = vld [vmem:[%s137 + $0x20] sm:$0x1]
      %v152 = vld [vmem:[%s137 + $0x24] sm:$0xf]
      %v153 = vld [vmem:[%s137 + $0x28] sm:$0xf]
      %v154 = vld [vmem:[%s137 + $0x2c] sm:$0x1]
      %v155 = vld [vmem:[%s137 + $0x30] sm:$0xf]
      %v156 = vld [vmem:[%s137 + $0x34] sm:$0xf]
      %v157 = vld [vmem:[%s137 + $0x38] sm:$0x1]
      %v158 = vld [vmem:[%s137 + $0x3c] sm:$0xf]
      %v159 = vld [vmem:[%s137 + $0x40] sm:$0xf]
      %v160 = vld [vmem:[%s137 + $0x44] sm:$0x1]
      %v161 = vld [vmem:[%s137 + $0x48] sm:$0xf]
      %v162 = vld [vmem:[%s137 + $0x4c] sm:$0xf]
      %v163 = vld [vmem:[%s137 + $0x50] sm:$0x1]
      %v164 = vld [vmem:[%s137 + $0x54] sm:$0xf]
      %v165 = vld [vmem:[%s137 + $0x58] sm:$0xf]
      %v166 = vld [vmem:[%s137 + $0x5c] sm:$0x1]
      %v167 = vld [vmem:[%s137 + $0x60] sm:$0xf]
      %v168 = vld [vmem:[%s137 + $0x64] sm:$0xf]
      %v169 = vld [vmem:[%s137 + $0x68] sm:$0x1]
      %v170 = vld [vmem:[%s137 + $0x6c] sm:$0xf]
      %v171 = vld [vmem:[%s137 + $0x70] sm:$0xf]
      %v172 = vld [vmem:[%s137 + $0x74] sm:$0x1]
      %v173 = vld [vmem:[%s137 + $0x78] sm:$0xf]
      %v174 = vld [vmem:[%s137 + $0x7c] sm:$0xf]
      %v175 = vld [vmem:[%s137 + $0x80] sm:$0x1]
      %v176 = vld [vmem:[%s137 + $0x84] sm:$0xf]
      %v177 = vld [vmem:[%s137 + $0x88] sm:$0xf]
      %v178 = vld [vmem:[%s137 + $0x8c] sm:$0x1]
      %v179 = vld [vmem:[%s137 + $0x90] sm:$0xf]
      %v180 = vld [vmem:[%s137 + $0x94] sm:$0xf]
      %v181 = vld [vmem:[%s137 + $0x98] sm:$0x1]
      %v182 = vld [vmem:[%s137 + $0x9c] sm:$0xf]
      %v183 = vld [vmem:[%s137 + $0xa0] sm:$0xf]
      %v184 = vld [vmem:[%s137 + $0xa4] sm:$0x1]
      %v185 = vld [vmem:[%s137 + $0xa8] sm:$0xf]
      %v186 = vld [vmem:[%s137 + $0xac] sm:$0xf]
      %v187 = vld [vmem:[%s137 + $0xb0] sm:$0x1]
      %v188 = vld [vmem:[%s137 + $0xb4] sm:$0xf]
      %v189 = vld [vmem:[%s137 + $0xb8] sm:$0xf]
      %v190 = vld [vmem:[%s137 + $0xbc] sm:$0x1]
      %v191 = vld [vmem:[%s137 + $0xc0] sm:$0xf]
      %v192 = vld [vmem:[%s137 + $0xc4] sm:$0xf]
      %v193 = vld [vmem:[%s137 + $0xc8] sm:$0x1]
      %v194 = vld [vmem:[%s137 + $0xcc] sm:$0xf]
      %v195 = vld [vmem:[%s137 + $0xd0] sm:$0xf]
      %v196 = vld [vmem:[%s137 + $0xd4] sm:$0x1]
      %vm197 = vsmask.f32 3328
      %vm198 = vsmask.f32 7440
      %vm199 = vmor %vm197, %vm198
      %v201 = vshrl.u32 %v143, 16
      %v203 = vrot.slane %v201, 4
      %v204 = vshll.u32 %v143, 16
      %v206 = vrot.slane %v204, 5
      %v207 = vor.u32 %v203, %v206
      %v208 = vrot.slane %v207, 4
      %v210 = vshll.u32 %v144, 16
      %v212 = vrot.slane %v210, 5
      %v213 = vsel %vm199, %v208, %v212
      %v214 = vshrl.u32 %v144, 16
      %v216 = vrot.slane %v214, 4
      %v217 = vor.u32 %v216, %v212
      %v218 = vrot.slane %v217, 4
      %v220 = vshll.u32 %v145, 16
      %v222 = vrot.slane %v220, 5
      %v223 = vsel %vm199, %v218, %v222
      %v225 = vshrl.u32 %v146, 16
      %v227 = vrot.slane %v225, 4
      %v228 = vshll.u32 %v146, 16
      %v230 = vrot.slane %v228, 5
      %v231 = vor.u32 %v227, %v230
      %v232 = vrot.slane %v231, 4
      %v234 = vshll.u32 %v147, 16
      %v236 = vrot.slane %v234, 5
      %v237 = vsel %vm199, %v232, %v236
      %v238 = vshrl.u32 %v147, 16
      %v240 = vrot.slane %v238, 4
      %v241 = vor.u32 %v240, %v236
      %v242 = vrot.slane %v241, 4
      %v244 = vshll.u32 %v148, 16
      %v246 = vrot.slane %v244, 5
      %v247 = vsel %vm199, %v242, %v246
      %v249 = vshrl.u32 %v149, 16
      %v251 = vrot.slane %v249, 4
      %v252 = vshll.u32 %v149, 16
      %v254 = vrot.slane %v252, 5
      %v255 = vor.u32 %v251, %v254
      %v256 = vrot.slane %v255, 4
      %v258 = vshll.u32 %v150, 16
      %v260 = vrot.slane %v258, 5
      %v261 = vsel %vm199, %v256, %v260
      %v262 = vshrl.u32 %v150, 16
      %v264 = vrot.slane %v262, 4
      %v265 = vor.u32 %v264, %v260
      %v266 = vrot.slane %v265, 4
      %v268 = vshll.u32 %v151, 16
      %v270 = vrot.slane %v268, 5
      %v271 = vsel %vm199, %v266, %v270
      %v273 = vshrl.u32 %v152, 16
      %v275 = vrot.slane %v273, 4
      %v276 = vshll.u32 %v152, 16
      %v278 = vrot.slane %v276, 5
      %v279 = vor.u32 %v275, %v278
      %v280 = vrot.slane %v279, 4
      %v282 = vshll.u32 %v153, 16
      %v284 = vrot.slane %v282, 5
      %v285 = vsel %vm199, %v280, %v284
      %v286 = vshrl.u32 %v153, 16
      %v288 = vrot.slane %v286, 4
      %v289 = vor.u32 %v288, %v284
      %v290 = vrot.slane %v289, 4
      %v292 = vshll.u32 %v154, 16
      %v294 = vrot.slane %v292, 5
      %v295 = vsel %vm199, %v290, %v294
      %v297 = vshrl.u32 %v155, 16
      %v299 = vrot.slane %v297, 4
      %v300 = vshll.u32 %v155, 16
      %v302 = vrot.slane %v300, 5
      %v303 = vor.u32 %v299, %v302
      %v304 = vrot.slane %v303, 4
      %v306 = vshll.u32 %v156, 16
      %v308 = vrot.slane %v306, 5
      %v309 = vsel %vm199, %v304, %v308
      %v310 = vshrl.u32 %v156, 16
      %v312 = vrot.slane %v310, 4
      %v313 = vor.u32 %v312, %v308
      %v314 = vrot.slane %v313, 4
      %v316 = vshll.u32 %v157, 16
      %v318 = vrot.slane %v316, 5
      %v319 = vsel %vm199, %v314, %v318
      %v321 = vshrl.u32 %v158, 16
      %v323 = vrot.slane %v321, 4
      %v324 = vshll.u32 %v158, 16
      %v326 = vrot.slane %v324, 5
      %v327 = vor.u32 %v323, %v326
      %v328 = vrot.slane %v327, 4
      %v330 = vshll.u32 %v159, 16
      %v332 = vrot.slane %v330, 5
      %v333 = vsel %vm199, %v328, %v332
      %v334 = vshrl.u32 %v159, 16
      %v336 = vrot.slane %v334, 4
      %v337 = vor.u32 %v336, %v332
      %v338 = vrot.slane %v337, 4
      %v340 = vshll.u32 %v160, 16
      %v342 = vrot.slane %v340, 5
      %v343 = vsel %vm199, %v338, %v342
      %v345 = vshrl.u32 %v161, 16
      %v347 = vrot.slane %v345, 4
      %v348 = vshll.u32 %v161, 16
      %v350 = vrot.slane %v348, 5
      %v351 = vor.u32 %v347, %v350
      %v352 = vrot.slane %v351, 4
      %v354 = vshll.u32 %v162, 16
      %v356 = vrot.slane %v354, 5
      %v357 = vsel %vm199, %v352, %v356
      %v358 = vshrl.u32 %v162, 16
      %v360 = vrot.slane %v358, 4
      %v361 = vor.u32 %v360, %v356
      %v362 = vrot.slane %v361, 4
      %v364 = vshll.u32 %v163, 16
      %v366 = vrot.slane %v364, 5
      %v367 = vsel %vm199, %v362, %v366
      %v369 = vshrl.u32 %v164, 16
      %v371 = vrot.slane %v369, 4
      %v372 = vshll.u32 %v164, 16
      %v374 = vrot.slane %v372, 5
      %v375 = vor.u32 %v371, %v374
      %v376 = vrot.slane %v375, 4
      %v378 = vshll.u32 %v165, 16
      %v380 = vrot.slane %v378, 5
      %v381 = vsel %vm199, %v376, %v380
      %v382 = vshrl.u32 %v165, 16
      %v384 = vrot.slane %v382, 4
      %v385 = vor.u32 %v384, %v380
      %v386 = vrot.slane %v385, 4
      %v388 = vshll.u32 %v166, 16
      %v390 = vrot.slane %v388, 5
      %v391 = vsel %vm199, %v386, %v390
      %v393 = vshrl.u32 %v167, 16
      %v395 = vrot.slane %v393, 4
      %v396 = vshll.u32 %v167, 16
      %v398 = vrot.slane %v396, 5
      %v399 = vor.u32 %v395, %v398
      %v400 = vrot.slane %v399, 4
      %v402 = vshll.u32 %v168, 16
      %v404 = vrot.slane %v402, 5
      %v405 = vsel %vm199, %v400, %v404
      %v406 = vshrl.u32 %v168, 16
      %v408 = vrot.slane %v406, 4
      %v409 = vor.u32 %v408, %v404
      %v410 = vrot.slane %v409, 4
      %v412 = vshll.u32 %v169, 16
      %v414 = vrot.slane %v412, 5
      %v415 = vsel %vm199, %v410, %v414
      %v417 = vshrl.u32 %v170, 16
      %v419 = vrot.slane %v417, 4
      %v420 = vshll.u32 %v170, 16
      %v422 = vrot.slane %v420, 5
      %v423 = vor.u32 %v419, %v422
      %v424 = vrot.slane %v423, 4
      %v426 = vshll.u32 %v171, 16
      %v428 = vrot.slane %v426, 5
      %v429 = vsel %vm199, %v424, %v428
      %v430 = vshrl.u32 %v171, 16
      %v432 = vrot.slane %v430, 4
      %v433 = vor.u32 %v432, %v428
      %v434 = vrot.slane %v433, 4
      %v436 = vshll.u32 %v172, 16
      %v438 = vrot.slane %v436, 5
      %v439 = vsel %vm199, %v434, %v438
      %v441 = vshrl.u32 %v173, 16
      %v443 = vrot.slane %v441, 4
      %v444 = vshll.u32 %v173, 16
      %v446 = vrot.slane %v444, 5
      %v447 = vor.u32 %v443, %v446
      %v448 = vrot.slane %v447, 4
      %v450 = vshll.u32 %v174, 16
      %v452 = vrot.slane %v450, 5
      %v453 = vsel %vm199, %v448, %v452
      %v454 = vshrl.u32 %v174, 16
      %v456 = vrot.slane %v454, 4
      %v457 = vor.u32 %v456, %v452
      %v458 = vrot.slane %v457, 4
      %v460 = vshll.u32 %v175, 16
      %v462 = vrot.slane %v460, 5
      %v463 = vsel %vm199, %v458, %v462
      %v465 = vshrl.u32 %v176, 16
      %v467 = vrot.slane %v465, 4
      %v468 = vshll.u32 %v176, 16
      %v470 = vrot.slane %v468, 5
      %v471 = vor.u32 %v467, %v470
      %v472 = vrot.slane %v471, 4
      %v474 = vshll.u32 %v177, 16
      %v476 = vrot.slane %v474, 5
      %v477 = vsel %vm199, %v472, %v476
      %v478 = vshrl.u32 %v177, 16
      %v480 = vrot.slane %v478, 4
      %v481 = vor.u32 %v480, %v476
      %v482 = vrot.slane %v481, 4
      %v484 = vshll.u32 %v178, 16
      %v486 = vrot.slane %v484, 5
      %v487 = vsel %vm199, %v482, %v486
      %v489 = vshrl.u32 %v179, 16
      %v491 = vrot.slane %v489, 4
      %v492 = vshll.u32 %v179, 16
      %v494 = vrot.slane %v492, 5
      %v495 = vor.u32 %v491, %v494
      %v496 = vrot.slane %v495, 4
      %v498 = vshll.u32 %v180, 16
      %v500 = vrot.slane %v498, 5
      %v501 = vsel %vm199, %v496, %v500
      %v502 = vshrl.u32 %v180, 16
      %v504 = vrot.slane %v502, 4
      %v505 = vor.u32 %v504, %v500
      %v506 = vrot.slane %v505, 4
      %v508 = vshll.u32 %v181, 16
      %v510 = vrot.slane %v508, 5
      %v511 = vsel %vm199, %v506, %v510
      %v513 = vshrl.u32 %v182, 16
      %v515 = vrot.slane %v513, 4
      %v516 = vshll.u32 %v182, 16
      %v518 = vrot.slane %v516, 5
      %v519 = vor.u32 %v515, %v518
      %v520 = vrot.slane %v519, 4
      %v522 = vshll.u32 %v183, 16
      %v524 = vrot.slane %v522, 5
      %v525 = vsel %vm199, %v520, %v524
      %v526 = vshrl.u32 %v183, 16
      %v528 = vrot.slane %v526, 4
      %v529 = vor.u32 %v528, %v524
      %v530 = vrot.slane %v529, 4
      %v532 = vshll.u32 %v184, 16
      %v534 = vrot.slane %v532, 5
      %v535 = vsel %vm199, %v530, %v534
      %v537 = vshrl.u32 %v185, 16
      %v539 = vrot.slane %v537, 4
      %v540 = vshll.u32 %v185, 16
      %v542 = vrot.slane %v540, 5
      %v543 = vor.u32 %v539, %v542
      %v544 = vrot.slane %v543, 4
      %v546 = vshll.u32 %v186, 16
      %v548 = vrot.slane %v546, 5
      %v549 = vsel %vm199, %v544, %v548
      %v550 = vshrl.u32 %v186, 16
      %v552 = vrot.slane %v550, 4
      %v553 = vor.u32 %v552, %v548
      %v554 = vrot.slane %v553, 4
      %v556 = vshll.u32 %v187, 16
      %v558 = vrot.slane %v556, 5
      %v559 = vsel %vm199, %v554, %v558
      %v561 = vshrl.u32 %v188, 16
      %v563 = vrot.slane %v561, 4
      %v564 = vshll.u32 %v188, 16
      %v566 = vrot.slane %v564, 5
      %v567 = vor.u32 %v563, %v566
      %v568 = vrot.slane %v567, 4
      %v570 = vshll.u32 %v189, 16
      %v572 = vrot.slane %v570, 5
      %v573 = vsel %vm199, %v568, %v572
      %v574 = vshrl.u32 %v189, 16
      %v576 = vrot.slane %v574, 4
      %v577 = vor.u32 %v576, %v572
      %v578 = vrot.slane %v577, 4
      %v580 = vshll.u32 %v190, 16
      %v582 = vrot.slane %v580, 5
      %v583 = vsel %vm199, %v578, %v582
      %vm632 = vcmask 1042432
      %vm633 = vcmask 1046532
      %vm634 = vmor %vm632, %vm633
      %v635 = vrot.slane %v143, 5
      %v636 = vrot.slane %v635, 4
      %v637 = vrot.slane %v144, 5
      %v638 = vsel %vm634, %v636, %v637
      %v639 = vrot.slane %v637, 4
      %v640 = vrot.slane %v145, 5
      %v641 = vsel %vm634, %v639, %v640
      %v642 = vrot.slane %v146, 5
      %v643 = vrot.slane %v642, 4
      %v644 = vrot.slane %v147, 5
      %v645 = vsel %vm634, %v643, %v644
      %v646 = vrot.slane %v644, 4
      %v647 = vrot.slane %v148, 5
      %v648 = vsel %vm634, %v646, %v647
      %v649 = vrot.slane %v149, 5
      %v650 = vrot.slane %v649, 4
      %v651 = vrot.slane %v150, 5
      %v652 = vsel %vm634, %v650, %v651
      %v653 = vrot.slane %v651, 4
      %v654 = vrot.slane %v151, 5
      %v655 = vsel %vm634, %v653, %v654
      %v656 = vrot.slane %v152, 5
      %v657 = vrot.slane %v656, 4
      %v658 = vrot.slane %v153, 5
      %v659 = vsel %vm634, %v657, %v658
      %v660 = vrot.slane %v658, 4
      %v661 = vrot.slane %v154, 5
      %v662 = vsel %vm634, %v660, %v661
      %v663 = vrot.slane %v155, 5
      %v664 = vrot.slane %v663, 4
      %v665 = vrot.slane %v156, 5
      %v666 = vsel %vm634, %v664, %v665
      %v667 = vrot.slane %v665, 4
      %v668 = vrot.slane %v157, 5
      %v669 = vsel %vm634, %v667, %v668
      %v670 = vrot.slane %v158, 5
      %v671 = vrot.slane %v670, 4
      %v672 = vrot.slane %v159, 5
      %v673 = vsel %vm634, %v671, %v672
      %v674 = vrot.slane %v672, 4
      %v675 = vrot.slane %v160, 5
      %v676 = vsel %vm634, %v674, %v675
      %v677 = vrot.slane %v161, 5
      %v678 = vrot.slane %v677, 4
      %v679 = vrot.slane %v162, 5
      %v680 = vsel %vm634, %v678, %v679
      %v681 = vrot.slane %v679, 4
      %v682 = vrot.slane %v163, 5
      %v683 = vsel %vm634, %v681, %v682
      %v684 = vrot.slane %v164, 5
      %v685 = vrot.slane %v684, 4
      %v686 = vrot.slane %v165, 5
      %v687 = vsel %vm634, %v685, %v686
      %v688 = vrot.slane %v686, 4
      %v689 = vrot.slane %v166, 5
      %v690 = vsel %vm634, %v688, %v689
      %v691 = vrot.slane %v167, 5
      %v692 = vrot.slane %v691, 4
      %v693 = vrot.slane %v168, 5
      %v694 = vsel %vm634, %v692, %v693
      %v695 = vrot.slane %v693, 4
      %v696 = vrot.slane %v169, 5
      %v697 = vsel %vm634, %v695, %v696
      %v698 = vrot.slane %v170, 5
      %v699 = vrot.slane %v698, 4
      %v700 = vrot.slane %v171, 5
      %v701 = vsel %vm634, %v699, %v700
      %v702 = vrot.slane %v700, 4
      %v703 = vrot.slane %v172, 5
      %v704 = vsel %vm634, %v702, %v703
      %v705 = vrot.slane %v173, 5
      %v706 = vrot.slane %v705, 4
      %v707 = vrot.slane %v174, 5
      %v708 = vsel %vm634, %v706, %v707
      %v709 = vrot.slane %v707, 4
      %v710 = vrot.slane %v175, 5
      %v711 = vsel %vm634, %v709, %v710
      %v712 = vrot.slane %v176, 5
      %v713 = vrot.slane %v712, 4
      %v714 = vrot.slane %v177, 5
      %v715 = vsel %vm634, %v713, %v714
      %v716 = vrot.slane %v714, 4
      %v717 = vrot.slane %v178, 5
      %v718 = vsel %vm634, %v716, %v717
      %v719 = vrot.slane %v179, 5
      %v720 = vrot.slane %v719, 4
      %v721 = vrot.slane %v180, 5
      %v722 = vsel %vm634, %v720, %v721
      %v723 = vrot.slane %v721, 4
      %v724 = vrot.slane %v181, 5
      %v725 = vsel %vm634, %v723, %v724
      %v726 = vrot.slane %v182, 5
      %v727 = vrot.slane %v726, 4
      %v728 = vrot.slane %v183, 5
      %v729 = vsel %vm634, %v727, %v728
      %v730 = vrot.slane %v728, 4
      %v731 = vrot.slane %v184, 5
      %v732 = vsel %vm634, %v730, %v731
      %v733 = vrot.slane %v185, 5
      %v734 = vrot.slane %v733, 4
      %v735 = vrot.slane %v186, 5
      %v736 = vsel %vm634, %v734, %v735
      %v737 = vrot.slane %v735, 4
      %v738 = vrot.slane %v187, 5
      %v739 = vsel %vm634, %v737, %v738
      %v740 = vrot.slane %v188, 5
      %v741 = vrot.slane %v740, 4
      %v742 = vrot.slane %v189, 5
      %v743 = vsel %vm634, %v741, %v742
      %v744 = vrot.slane %v742, 4
      %v745 = vrot.slane %v190, 5
      %v746 = vsel %vm634, %v744, %v745
      %v748 = vshrl.u32 %v191, 16
      %v750 = vrot.slane %v748, 4
      %v751 = vshll.u32 %v191, 16
      %v753 = vrot.slane %v751, 5
      %v754 = vor.u32 %v750, %v753
      %v755 = vrot.slane %v754, 4
      %v757 = vshll.u32 %v192, 16
      %v759 = vrot.slane %v757, 5
      %v760 = vsel %vm199, %v755, %v759
      %v761 = vshrl.u32 %v192, 16
      %v763 = vrot.slane %v761, 4
      %v764 = vor.u32 %v763, %v759
      %v765 = vrot.slane %v764, 4
      %v767 = vshll.u32 %v193, 16
      %v769 = vrot.slane %v767, 5
      %v770 = vsel %vm199, %v765, %v769
      %v774 = vrot.slane %v191, 5
      %v775 = vrot.slane %v774, 4
      %v776 = vrot.slane %v192, 5
      %v777 = vsel %vm634, %v775, %v776
      %v778 = vrot.slane %v776, 4
      %v779 = vrot.slane %v193, 5
      %v780 = vsel %vm634, %v778, %v779
      %v782 = vshrl.u32 %v194, 16
      %v784 = vrot.slane %v782, 4
      %v785 = vshll.u32 %v194, 16
      %v787 = vrot.slane %v785, 5
      %v788 = vor.u32 %v784, %v787
      %v789 = vrot.slane %v788, 4
      %v791 = vshll.u32 %v195, 16
      %v793 = vrot.slane %v791, 5
      %v794 = vsel %vm199, %v789, %v793
      %v795 = vshrl.u32 %v195, 16
      %v797 = vrot.slane %v795, 4
      %v798 = vor.u32 %v797, %v793
      %v799 = vrot.slane %v798, 4
      %v801 = vshll.u32 %v196, 16
      %v803 = vrot.slane %v801, 5
      %v804 = vsel %vm199, %v799, %v803
      %v808 = vrot.slane %v194, 5
      %v809 = vrot.slane %v808, 4
      %v810 = vrot.slane %v195, 5
      %v811 = vsel %vm634, %v809, %v810
      %v812 = vrot.slane %v810, 4
      %v813 = vrot.slane %v196, 5
      %v814 = vsel %vm634, %v812, %v813
      %v815 = vunpack.c.l.b16 %v143
      %v816 = vunpack.c.l.b16 %v144
      %v817 = vunpack.c.l.b16 %v146
      %v818 = vunpack.c.l.b16 %v147
      %v819 = vunpack.c.l.b16 %v149
      %v820 = vunpack.c.l.b16 %v150
      %v821 = vunpack.c.l.b16 %v152
      %v822 = vunpack.c.l.b16 %v153
      %v823 = vunpack.c.l.b16 %v155
      %v824 = vunpack.c.l.b16 %v156
      %v825 = vunpack.c.l.b16 %v158
      %v826 = vunpack.c.l.b16 %v159
      %v827 = vunpack.c.l.b16 %v161
      %v828 = vunpack.c.l.b16 %v162
      %v829 = vunpack.c.l.b16 %v164
      %v830 = vunpack.c.l.b16 %v165
      %v831 = vunpack.c.l.b16 %v167
      %v832 = vunpack.c.l.b16 %v168
      %v833 = vunpack.c.l.b16 %v170
      %v834 = vunpack.c.l.b16 %v171
      %v835 = vunpack.c.l.b16 %v173
      %v836 = vunpack.c.l.b16 %v174
      %v837 = vunpack.c.l.b16 %v176
      %v838 = vunpack.c.l.b16 %v177
      %v839 = vunpack.c.l.b16 %v179
      %v840 = vunpack.c.l.b16 %v180
      %v841 = vunpack.c.l.b16 %v182
      %v842 = vunpack.c.l.b16 %v183
      %v843 = vunpack.c.l.b16 %v185
      %v844 = vunpack.c.l.b16 %v186
      %v845 = vunpack.c.l.b16 %v188
      %v846 = vunpack.c.l.b16 %v189
      %v847 = vpack.c.b16 %v816, %v815
      %v848 = vpack.c.b16 %v818, %v817
      %v849 = vpack.c.b16 %v820, %v819
      %v850 = vpack.c.b16 %v822, %v821
      %v851 = vpack.c.b16 %v824, %v823
      %v852 = vpack.c.b16 %v826, %v825
      %v853 = vpack.c.b16 %v828, %v827
      %v854 = vpack.c.b16 %v830, %v829
      %v855 = vpack.c.b16 %v832, %v831
      %v856 = vpack.c.b16 %v834, %v833
      %v857 = vpack.c.b16 %v836, %v835
      %v858 = vpack.c.b16 %v838, %v837
      %v859 = vpack.c.b16 %v840, %v839
      %v860 = vpack.c.b16 %v842, %v841
      %v861 = vpack.c.b16 %v844, %v843
      %v862 = vpack.c.b16 %v846, %v845
      %v863 = vunpack.c.l.b16 %v213
      %v864 = vunpack.c.l.b16 %v223
      %v865 = vunpack.c.l.b16 %v237
      %v866 = vunpack.c.l.b16 %v247
      %v867 = vunpack.c.l.b16 %v261
      %v868 = vunpack.c.l.b16 %v271
      %v869 = vunpack.c.l.b16 %v285
      %v870 = vunpack.c.l.b16 %v295
      %v871 = vunpack.c.l.b16 %v309
      %v872 = vunpack.c.l.b16 %v319
      %v873 = vunpack.c.l.b16 %v333
      %v874 = vunpack.c.l.b16 %v343
      %v875 = vunpack.c.l.b16 %v357
      %v876 = vunpack.c.l.b16 %v367
      %v877 = vunpack.c.l.b16 %v381
      %v878 = vunpack.c.l.b16 %v391
      %v879 = vunpack.c.l.b16 %v405
      %v880 = vunpack.c.l.b16 %v415
      %v881 = vunpack.c.l.b16 %v429
      %v882 = vunpack.c.l.b16 %v439
      %v883 = vunpack.c.l.b16 %v453
      %v884 = vunpack.c.l.b16 %v463
      %v885 = vunpack.c.l.b16 %v477
      %v886 = vunpack.c.l.b16 %v487
      %v887 = vunpack.c.l.b16 %v501
      %v888 = vunpack.c.l.b16 %v511
      %v889 = vunpack.c.l.b16 %v525
      %v890 = vunpack.c.l.b16 %v535
      %v891 = vunpack.c.l.b16 %v549
      %v892 = vunpack.c.l.b16 %v559
      %v893 = vunpack.c.l.b16 %v573
      %v894 = vunpack.c.l.b16 %v583
      %v895 = vpack.c.b16 %v864, %v863
      %v896 = vpack.c.b16 %v866, %v865
      %v897 = vpack.c.b16 %v868, %v867
      %v898 = vpack.c.b16 %v870, %v869
      %v899 = vpack.c.b16 %v872, %v871
      %v900 = vpack.c.b16 %v874, %v873
      %v901 = vpack.c.b16 %v876, %v875
      %v902 = vpack.c.b16 %v878, %v877
      %v903 = vpack.c.b16 %v880, %v879
      %v904 = vpack.c.b16 %v882, %v881
      %v905 = vpack.c.b16 %v884, %v883
      %v906 = vpack.c.b16 %v886, %v885
      %v907 = vpack.c.b16 %v888, %v887
      %v908 = vpack.c.b16 %v890, %v889
      %v909 = vpack.c.b16 %v892, %v891
      %v910 = vpack.c.b16 %v894, %v893
      %911 = vrot.lane.b32.xlu0 %v895, 4
      %v912 = vpop.permute.xlu0 %911
      %913 = vrot.lane.b32.xlu0 %v896, 4
      %v914 = vpop.permute.xlu0 %913
      %915 = vrot.lane.b32.xlu0 %v897, 4
      %v916 = vpop.permute.xlu0 %915
      %917 = vrot.lane.b32.xlu0 %v898, 4
      %v918 = vpop.permute.xlu0 %917
      %919 = vrot.lane.b32.xlu0 %v899, 4
      %v920 = vpop.permute.xlu0 %919
      %921 = vrot.lane.b32.xlu0 %v900, 4
      %v922 = vpop.permute.xlu0 %921
      %923 = vrot.lane.b32.xlu0 %v901, 4
      %v924 = vpop.permute.xlu0 %923
      %925 = vrot.lane.b32.xlu0 %v902, 4
      %v926 = vpop.permute.xlu0 %925
      %927 = vrot.lane.b32.xlu0 %v903, 4
      %v928 = vpop.permute.xlu0 %927
      %929 = vrot.lane.b32.xlu0 %v904, 4
      %v930 = vpop.permute.xlu0 %929
      %931 = vrot.lane.b32.xlu0 %v905, 4
      %v932 = vpop.permute.xlu0 %931
      %933 = vrot.lane.b32.xlu0 %v906, 4
      %v934 = vpop.permute.xlu0 %933
      %935 = vrot.lane.b32.xlu0 %v907, 4
      %v936 = vpop.permute.xlu0 %935
      %937 = vrot.lane.b32.xlu0 %v908, 4
      %v938 = vpop.permute.xlu0 %937
      %939 = vrot.lane.b32.xlu0 %v909, 4
      %v940 = vpop.permute.xlu0 %939
      %941 = vrot.lane.b32.xlu0 %v910, 4
      %v942 = vpop.permute.xlu0 %941
      %v943 = vunpack.c.l.b16 %v638
      %v944 = vunpack.c.l.b16 %v641
      %v945 = vunpack.c.l.b16 %v645
      %v946 = vunpack.c.l.b16 %v648
      %v947 = vunpack.c.l.b16 %v652
      %v948 = vunpack.c.l.b16 %v655
      %v949 = vunpack.c.l.b16 %v659
      %v950 = vunpack.c.l.b16 %v662
      %v951 = vunpack.c.l.b16 %v666
      %v952 = vunpack.c.l.b16 %v669
      %v953 = vunpack.c.l.b16 %v673
      %v954 = vunpack.c.l.b16 %v676
      %v955 = vunpack.c.l.b16 %v680
      %v956 = vunpack.c.l.b16 %v683
      %v957 = vunpack.c.l.b16 %v687
      %v958 = vunpack.c.l.b16 %v690
      %v959 = vunpack.c.l.b16 %v694
      %v960 = vunpack.c.l.b16 %v697
      %v961 = vunpack.c.l.b16 %v701
      %v962 = vunpack.c.l.b16 %v704
      %v963 = vunpack.c.l.b16 %v708
      %v964 = vunpack.c.l.b16 %v711
      %v965 = vunpack.c.l.b16 %v715
      %v966 = vunpack.c.l.b16 %v718
      %v967 = vunpack.c.l.b16 %v722
      %v968 = vunpack.c.l.b16 %v725
      %v969 = vunpack.c.l.b16 %v729
      %v970 = vunpack.c.l.b16 %v732
      %v971 = vunpack.c.l.b16 %v736
      %v972 = vunpack.c.l.b16 %v739
      %v973 = vunpack.c.l.b16 %v743
      %v974 = vunpack.c.l.b16 %v746
      %v975 = vpack.c.b16 %v944, %v943
      %v976 = vpack.c.b16 %v946, %v945
      %v977 = vpack.c.b16 %v948, %v947
      %v978 = vpack.c.b16 %v950, %v949
      %v979 = vpack.c.b16 %v952, %v951
      %v980 = vpack.c.b16 %v954, %v953
      %v981 = vpack.c.b16 %v956, %v955
      %v982 = vpack.c.b16 %v958, %v957
      %v983 = vpack.c.b16 %v960, %v959
      %v984 = vpack.c.b16 %v962, %v961
      %v985 = vpack.c.b16 %v964, %v963
      %v986 = vpack.c.b16 %v966, %v965
      %v987 = vpack.c.b16 %v968, %v967
      %v988 = vpack.c.b16 %v970, %v969
      %v989 = vpack.c.b16 %v972, %v971
      %v990 = vpack.c.b16 %v974, %v973
      %991 = vrot.lane.b32.xlu0 %v975, 8
      %v992 = vpop.permute.xlu0 %991
      %993 = vrot.lane.b32.xlu0 %v976, 8
      %v994 = vpop.permute.xlu0 %993
      %995 = vrot.lane.b32.xlu0 %v977, 8
      %v996 = vpop.permute.xlu0 %995
      %997 = vrot.lane.b32.xlu0 %v978, 8
      %v998 = vpop.permute.xlu0 %997
      %999 = vrot.lane.b32.xlu0 %v979, 8
      %v1000 = vpop.permute.xlu0 %999
      %1001 = vrot.lane.b32.xlu0 %v980, 8
      %v1002 = vpop.permute.xlu0 %1001
      %1003 = vrot.lane.b32.xlu0 %v981, 8
      %v1004 = vpop.permute.xlu0 %1003
      %1005 = vrot.lane.b32.xlu0 %v982, 8
      %v1006 = vpop.permute.xlu0 %1005
      %1007 = vrot.lane.b32.xlu0 %v983, 8
      %v1008 = vpop.permute.xlu0 %1007
      %1009 = vrot.lane.b32.xlu0 %v984, 8
      %v1010 = vpop.permute.xlu0 %1009
      %1011 = vrot.lane.b32.xlu0 %v985, 8
      %v1012 = vpop.permute.xlu0 %1011
      %1013 = vrot.lane.b32.xlu0 %v986, 8
      %v1014 = vpop.permute.xlu0 %1013
      %1015 = vrot.lane.b32.xlu0 %v987, 8
      %v1016 = vpop.permute.xlu0 %1015
      %1017 = vrot.lane.b32.xlu0 %v988, 8
      %v1018 = vpop.permute.xlu0 %1017
      %1019 = vrot.lane.b32.xlu0 %v989, 8
      %v1020 = vpop.permute.xlu0 %1019
      %1021 = vrot.lane.b32.xlu0 %v990, 8
      %v1022 = vpop.permute.xlu0 %1021
      %v1023 = vunpack.c.l.b16 %v191
      %v1024 = vunpack.c.l.b16 %v192
      %v1025 = vpack.c.b16 %v1024, %v1023
      %1026 = vrot.lane.b32.xlu0 %v848, 12
      %v1027 = vpop.permute.xlu0 %1026
      %1028 = vrot.lane.b32.xlu0 %v849, 12
      %v1029 = vpop.permute.xlu0 %1028
      %1030 = vrot.lane.b32.xlu0 %v850, 12
      %v1031 = vpop.permute.xlu0 %1030
      %1032 = vrot.lane.b32.xlu0 %v851, 12
      %v1033 = vpop.permute.xlu0 %1032
      %1034 = vrot.lane.b32.xlu0 %v852, 12
      %v1035 = vpop.permute.xlu0 %1034
      %1036 = vrot.lane.b32.xlu0 %v853, 12
      %v1037 = vpop.permute.xlu0 %1036
      %1038 = vrot.lane.b32.xlu0 %v854, 12
      %v1039 = vpop.permute.xlu0 %1038
      %1040 = vrot.lane.b32.xlu0 %v855, 12
      %v1041 = vpop.permute.xlu0 %1040
      %1042 = vrot.lane.b32.xlu0 %v856, 12
      %v1043 = vpop.permute.xlu0 %1042
      %1044 = vrot.lane.b32.xlu0 %v857, 12
      %v1045 = vpop.permute.xlu0 %1044
      %1046 = vrot.lane.b32.xlu0 %v858, 12
      %v1047 = vpop.permute.xlu0 %1046
      %1048 = vrot.lane.b32.xlu0 %v859, 12
      %v1049 = vpop.permute.xlu0 %1048
      %1050 = vrot.lane.b32.xlu0 %v860, 12
      %v1051 = vpop.permute.xlu0 %1050
      %1052 = vrot.lane.b32.xlu0 %v861, 12
      %v1053 = vpop.permute.xlu0 %1052
      %1054 = vrot.lane.b32.xlu0 %v862, 12
      %v1055 = vpop.permute.xlu0 %1054
      %1056 = vrot.lane.b32.xlu0 %v1025, 12
      %v1057 = vpop.permute.xlu0 %1056
      %v1058 = vunpack.c.l.b16 %v760
      %v1059 = vunpack.c.l.b16 %v770
      %v1060 = vpack.c.b16 %v1059, %v1058
      %1061 = vrot.lane.b32.xlu0 %v896, 16
      %v1062 = vpop.permute.xlu0 %1061
      %1063 = vrot.lane.b32.xlu0 %v897, 16
      %v1064 = vpop.permute.xlu0 %1063
      %1065 = vrot.lane.b32.xlu0 %v898, 16
      %v1066 = vpop.permute.xlu0 %1065
      %1067 = vrot.lane.b32.xlu0 %v899, 16
      %v1068 = vpop.permute.xlu0 %1067
      %1069 = vrot.lane.b32.xlu0 %v900, 16
      %v1070 = vpop.permute.xlu0 %1069
      %1071 = vrot.lane.b32.xlu0 %v901, 16
      %v1072 = vpop.permute.xlu0 %1071
      %1073 = vrot.lane.b32.xlu0 %v902, 16
      %v1074 = vpop.permute.xlu0 %1073
      %1075 = vrot.lane.b32.xlu0 %v903, 16
      %v1076 = vpop.permute.xlu0 %1075
      %1077 = vrot.lane.b32.xlu0 %v904, 16
      %v1078 = vpop.permute.xlu0 %1077
      %1079 = vrot.lane.b32.xlu0 %v905, 16
      %v1080 = vpop.permute.xlu0 %1079
      %1081 = vrot.lane.b32.xlu0 %v906, 16
      %v1082 = vpop.permute.xlu0 %1081
      %1083 = vrot.lane.b32.xlu0 %v907, 16
      %v1084 = vpop.permute.xlu0 %1083
      %1085 = vrot.lane.b32.xlu0 %v908, 16
      %v1086 = vpop.permute.xlu0 %1085
      %1087 = vrot.lane.b32.xlu0 %v909, 16
      %v1088 = vpop.permute.xlu0 %1087
      %1089 = vrot.lane.b32.xlu0 %v910, 16
      %v1090 = vpop.permute.xlu0 %1089
      %1091 = vrot.lane.b32.xlu0 %v1060, 16
      %v1092 = vpop.permute.xlu0 %1091
      %v1093 = vunpack.c.l.b16 %v777
      %v1094 = vunpack.c.l.b16 %v780
      %v1095 = vpack.c.b16 %v1094, %v1093
      %1096 = vrot.lane.b32.xlu0 %v976, 20
      %v1097 = vpop.permute.xlu0 %1096
      %1098 = vrot.lane.b32.xlu0 %v977, 20
      %v1099 = vpop.permute.xlu0 %1098
      %1100 = vrot.lane.b32.xlu0 %v978, 20
      %v1101 = vpop.permute.xlu0 %1100
      %1102 = vrot.lane.b32.xlu0 %v979, 20
      %v1103 = vpop.permute.xlu0 %1102
      %1104 = vrot.lane.b32.xlu0 %v980, 20
      %v1105 = vpop.permute.xlu0 %1104
      %1106 = vrot.lane.b32.xlu0 %v981, 20
      %v1107 = vpop.permute.xlu0 %1106
      %1108 = vrot.lane.b32.xlu0 %v982, 20
      %v1109 = vpop.permute.xlu0 %1108
      %1110 = vrot.lane.b32.xlu0 %v983, 20
      %v1111 = vpop.permute.xlu0 %1110
      %1112 = vrot.lane.b32.xlu0 %v984, 20
      %v1113 = vpop.permute.xlu0 %1112
      %1114 = vrot.lane.b32.xlu0 %v985, 20
      %v1115 = vpop.permute.xlu0 %1114
      %1116 = vrot.lane.b32.xlu0 %v986, 20
      %v1117 = vpop.permute.xlu0 %1116
      %1118 = vrot.lane.b32.xlu0 %v987, 20
      %v1119 = vpop.permute.xlu0 %1118
      %1120 = vrot.lane.b32.xlu0 %v988, 20
      %v1121 = vpop.permute.xlu0 %1120
      %1122 = vrot.lane.b32.xlu0 %v989, 20
      %v1123 = vpop.permute.xlu0 %1122
      %1124 = vrot.lane.b32.xlu0 %v990, 20
      %v1125 = vpop.permute.xlu0 %1124
      %1126 = vrot.lane.b32.xlu0 %v1095, 20
      %v1127 = vpop.permute.xlu0 %1126
      %v1128 = vunpack.c.l.b16 %v194
      %v1129 = vunpack.c.l.b16 %v195
      %v1130 = vpack.c.b16 %v1129, %v1128
      %1131 = vrot.lane.b32.xlu0 %v849, 24
      %v1132 = vpop.permute.xlu0 %1131
      %1133 = vrot.lane.b32.xlu0 %v850, 24
      %v1134 = vpop.permute.xlu0 %1133
      %1135 = vrot.lane.b32.xlu0 %v851, 24
      %v1136 = vpop.permute.xlu0 %1135
      %1137 = vrot.lane.b32.xlu0 %v852, 24
      %v1138 = vpop.permute.xlu0 %1137
      %1139 = vrot.lane.b32.xlu0 %v853, 24
      %v1140 = vpop.permute.xlu0 %1139
      %1141 = vrot.lane.b32.xlu0 %v854, 24
      %v1142 = vpop.permute.xlu0 %1141
      %1143 = vrot.lane.b32.xlu0 %v855, 24
      %v1144 = vpop.permute.xlu0 %1143
      %1145 = vrot.lane.b32.xlu0 %v856, 24
      %v1146 = vpop.permute.xlu0 %1145
      %1147 = vrot.lane.b32.xlu0 %v857, 24
      %v1148 = vpop.permute.xlu0 %1147
      %1149 = vrot.lane.b32.xlu0 %v858, 24
      %v1150 = vpop.permute.xlu0 %1149
      %1151 = vrot.lane.b32.xlu0 %v859, 24
      %v1152 = vpop.permute.xlu0 %1151
      %1153 = vrot.lane.b32.xlu0 %v860, 24
      %v1154 = vpop.permute.xlu0 %1153
      %1155 = vrot.lane.b32.xlu0 %v861, 24
      %v1156 = vpop.permute.xlu0 %1155
      %1157 = vrot.lane.b32.xlu0 %v862, 24
      %v1158 = vpop.permute.xlu0 %1157
      %1159 = vrot.lane.b32.xlu0 %v1025, 24
      %v1160 = vpop.permute.xlu0 %1159
      %1161 = vrot.lane.b32.xlu0 %v1130, 24
      %v1162 = vpop.permute.xlu0 %1161
      %v1163 = vunpack.c.l.b16 %v794
      %v1164 = vunpack.c.l.b16 %v804
      %v1165 = vpack.c.b16 %v1164, %v1163
      %1166 = vrot.lane.b32.xlu0 %v897, 28
      %v1167 = vpop.permute.xlu0 %1166
      %1168 = vrot.lane.b32.xlu0 %v898, 28
      %v1169 = vpop.permute.xlu0 %1168
      %1170 = vrot.lane.b32.xlu0 %v899, 28
      %v1171 = vpop.permute.xlu0 %1170
      %1172 = vrot.lane.b32.xlu0 %v900, 28
      %v1173 = vpop.permute.xlu0 %1172
      %1174 = vrot.lane.b32.xlu0 %v901, 28
      %v1175 = vpop.permute.xlu0 %1174
      %1176 = vrot.lane.b32.xlu0 %v902, 28
      %v1177 = vpop.permute.xlu0 %1176
      %1178 = vrot.lane.b32.xlu0 %v903, 28
      %v1179 = vpop.permute.xlu0 %1178
      %1180 = vrot.lane.b32.xlu0 %v904, 28
      %v1181 = vpop.permute.xlu0 %1180
      %1182 = vrot.lane.b32.xlu0 %v905, 28
      %v1183 = vpop.permute.xlu0 %1182
      %1184 = vrot.lane.b32.xlu0 %v906, 28
      %v1185 = vpop.permute.xlu0 %1184
      %1186 = vrot.lane.b32.xlu0 %v907, 28
      %v1187 = vpop.permute.xlu0 %1186
      %1188 = vrot.lane.b32.xlu0 %v908, 28
      %v1189 = vpop.permute.xlu0 %1188
      %1190 = vrot.lane.b32.xlu0 %v909, 28
      %v1191 = vpop.permute.xlu0 %1190
      %1192 = vrot.lane.b32.xlu0 %v910, 28
      %v1193 = vpop.permute.xlu0 %1192
      %1194 = vrot.lane.b32.xlu0 %v1060, 28
      %v1195 = vpop.permute.xlu0 %1194
      %1196 = vrot.lane.b32.xlu0 %v1165, 28
      %v1197 = vpop.permute.xlu0 %1196
      %v1198 = vunpack.c.l.b16 %v811
      %v1199 = vunpack.c.l.b16 %v814
      %v1200 = vpack.c.b16 %v1199, %v1198
      %1201 = vrot.lane.b32.xlu0 %v977, 32
      %v1202 = vpop.permute.xlu0 %1201
      %1203 = vrot.lane.b32.xlu0 %v978, 32
      %v1204 = vpop.permute.xlu0 %1203
      %1205 = vrot.lane.b32.xlu0 %v979, 32
      %v1206 = vpop.permute.xlu0 %1205
      %1207 = vrot.lane.b32.xlu0 %v980, 32
      %v1208 = vpop.permute.xlu0 %1207
      %1209 = vrot.lane.b32.xlu0 %v981, 32
      %v1210 = vpop.permute.xlu0 %1209
      %1211 = vrot.lane.b32.xlu0 %v982, 32
      %v1212 = vpop.permute.xlu0 %1211
      %1213 = vrot.lane.b32.xlu0 %v983, 32
      %v1214 = vpop.permute.xlu0 %1213
      %1215 = vrot.lane.b32.xlu0 %v984, 32
      %v1216 = vpop.permute.xlu0 %1215
      %1217 = vrot.lane.b32.xlu0 %v985, 32
      %v1218 = vpop.permute.xlu0 %1217
      %1219 = vrot.lane.b32.xlu0 %v986, 32
      %v1220 = vpop.permute.xlu0 %1219
      %1221 = vrot.lane.b32.xlu0 %v987, 32
      %v1222 = vpop.permute.xlu0 %1221
      %1223 = vrot.lane.b32.xlu0 %v988, 32
      %v1224 = vpop.permute.xlu0 %1223
      %1225 = vrot.lane.b32.xlu0 %v989, 32
      %v1226 = vpop.permute.xlu0 %1225
      %1227 = vrot.lane.b32.xlu0 %v990, 32
      %v1228 = vpop.permute.xlu0 %1227
      %1229 = vrot.lane.b32.xlu0 %v1095, 32
      %v1230 = vpop.permute.xlu0 %1229
      %1231 = vrot.lane.b32.xlu0 %v1200, 32
      %v1232 = vpop.permute.xlu0 %1231
      %vm1233 = vcmask 31744
      %v1236 = vsel %vm1233, %v847, %v912
      %v1239 = vsel %vm1233, %v848, %v914
      %v1242 = vsel %vm1233, %v849, %v916
      %v1245 = vsel %vm1233, %v850, %v918
      %v1248 = vsel %vm1233, %v851, %v920
      %v1251 = vsel %vm1233, %v852, %v922
      %v1254 = vsel %vm1233, %v853, %v924
      %v1257 = vsel %vm1233, %v854, %v926
      %v1260 = vsel %vm1233, %v855, %v928
      %v1263 = vsel %vm1233, %v856, %v930
      %v1266 = vsel %vm1233, %v857, %v932
      %v1269 = vsel %vm1233, %v858, %v934
      %v1272 = vsel %vm1233, %v859, %v936
      %v1275 = vsel %vm1233, %v860, %v938
      %v1278 = vsel %vm1233, %v861, %v940
      %v1281 = vsel %vm1233, %v862, %v942
      %vm1282 = vcmask 64512
      %v1284 = vsel %vm1282, %v1236, %v992
      %v1286 = vsel %vm1282, %v1239, %v994
      %v1288 = vsel %vm1282, %v1242, %v996
      %v1290 = vsel %vm1282, %v1245, %v998
      %v1292 = vsel %vm1282, %v1248, %v1000
      %v1294 = vsel %vm1282, %v1251, %v1002
      %v1296 = vsel %vm1282, %v1254, %v1004
      %v1298 = vsel %vm1282, %v1257, %v1006
      %v1300 = vsel %vm1282, %v1260, %v1008
      %v1302 = vsel %vm1282, %v1263, %v1010
      %v1304 = vsel %vm1282, %v1266, %v1012
      %v1306 = vsel %vm1282, %v1269, %v1014
      %v1308 = vsel %vm1282, %v1272, %v1016
      %v1310 = vsel %vm1282, %v1275, %v1018
      %v1312 = vsel %vm1282, %v1278, %v1020
      %v1314 = vsel %vm1282, %v1281, %v1022
      %vm1315 = vcmask 97280
      %v1317 = vsel %vm1315, %v1284, %v1027
      %v1319 = vsel %vm1315, %v1286, %v1029
      %v1321 = vsel %vm1315, %v1288, %v1031
      %v1323 = vsel %vm1315, %v1290, %v1033
      %v1325 = vsel %vm1315, %v1292, %v1035
      %v1327 = vsel %vm1315, %v1294, %v1037
      %v1329 = vsel %vm1315, %v1296, %v1039
      %v1331 = vsel %vm1315, %v1298, %v1041
      %v1333 = vsel %vm1315, %v1300, %v1043
      %v1335 = vsel %vm1315, %v1302, %v1045
      %v1337 = vsel %vm1315, %v1304, %v1047
      %v1339 = vsel %vm1315, %v1306, %v1049
      %v1341 = vsel %vm1315, %v1308, %v1051
      %v1343 = vsel %vm1315, %v1310, %v1053
      %v1345 = vsel %vm1315, %v1312, %v1055
      %v1347 = vsel %vm1315, %v1314, %v1057
      %vm1348 = vcmask 130048
      %v1350 = vsel %vm1348, %v1317, %v1062
      %v1352 = vsel %vm1348, %v1319, %v1064
      %v1354 = vsel %vm1348, %v1321, %v1066
      %v1356 = vsel %vm1348, %v1323, %v1068
      %v1358 = vsel %vm1348, %v1325, %v1070
      %v1360 = vsel %vm1348, %v1327, %v1072
      %v1362 = vsel %vm1348, %v1329, %v1074
      %v1364 = vsel %vm1348, %v1331, %v1076
      %v1366 = vsel %vm1348, %v1333, %v1078
      %v1368 = vsel %vm1348, %v1335, %v1080
      %v1370 = vsel %vm1348, %v1337, %v1082
      %v1372 = vsel %vm1348, %v1339, %v1084
      %v1374 = vsel %vm1348, %v1341, %v1086
      %v1376 = vsel %vm1348, %v1343, %v1088
      %v1378 = vsel %vm1348, %v1345, %v1090
      %v1380 = vsel %vm1348, %v1347, %v1092
      %vm1381 = vcmask 162816
      %v1383 = vsel %vm1381, %v1350, %v1097
      %v1385 = vsel %vm1381, %v1352, %v1099
      %v1387 = vsel %vm1381, %v1354, %v1101
      %v1389 = vsel %vm1381, %v1356, %v1103
      %v1391 = vsel %vm1381, %v1358, %v1105
      %v1393 = vsel %vm1381, %v1360, %v1107
      %v1395 = vsel %vm1381, %v1362, %v1109
      %v1397 = vsel %vm1381, %v1364, %v1111
      %v1399 = vsel %vm1381, %v1366, %v1113
      %v1401 = vsel %vm1381, %v1368, %v1115
      %v1403 = vsel %vm1381, %v1370, %v1117
      %v1405 = vsel %vm1381, %v1372, %v1119
      %v1407 = vsel %vm1381, %v1374, %v1121
      %v1409 = vsel %vm1381, %v1376, %v1123
      %v1411 = vsel %vm1381, %v1378, %v1125
      %v1413 = vsel %vm1381, %v1380, %v1127
      %vm1414 = vcmask 195584
      %v1416 = vsel %vm1414, %v1383, %v1132
      %v1418 = vsel %vm1414, %v1385, %v1134
      %v1420 = vsel %vm1414, %v1387, %v1136
      %v1422 = vsel %vm1414, %v1389, %v1138
      %v1424 = vsel %vm1414, %v1391, %v1140
      %v1426 = vsel %vm1414, %v1393, %v1142
      %v1428 = vsel %vm1414, %v1395, %v1144
      %v1430 = vsel %vm1414, %v1397, %v1146
      %v1432 = vsel %vm1414, %v1399, %v1148
      %v1434 = vsel %vm1414, %v1401, %v1150
      %v1436 = vsel %vm1414, %v1403, %v1152
      %v1438 = vsel %vm1414, %v1405, %v1154
      %v1440 = vsel %vm1414, %v1407, %v1156
      %v1442 = vsel %vm1414, %v1409, %v1158
      %v1444 = vsel %vm1414, %v1411, %v1160
      %v1446 = vsel %vm1414, %v1413, %v1162
      %vm1447 = vcmask 228352
      %v1449 = vsel %vm1447, %v1416, %v1167
      %v1451 = vsel %vm1447, %v1418, %v1169
      %v1453 = vsel %vm1447, %v1420, %v1171
      %v1455 = vsel %vm1447, %v1422, %v1173
      %v1457 = vsel %vm1447, %v1424, %v1175
      %v1459 = vsel %vm1447, %v1426, %v1177
      %v1461 = vsel %vm1447, %v1428, %v1179
      %v1463 = vsel %vm1447, %v1430, %v1181
      %v1465 = vsel %vm1447, %v1432, %v1183
      %v1467 = vsel %vm1447, %v1434, %v1185
      %v1469 = vsel %vm1447, %v1436, %v1187
      %v1471 = vsel %vm1447, %v1438, %v1189
      %v1473 = vsel %vm1447, %v1440, %v1191
      %v1475 = vsel %vm1447, %v1442, %v1193
      %v1477 = vsel %vm1447, %v1444, %v1195
      %v1479 = vsel %vm1447, %v1446, %v1197
      %vm1480 = vcmask 261120
      %v1482 = vsel %vm1480, %v1449, %v1202
      %v1484 = vsel %vm1480, %v1451, %v1204
      %v1486 = vsel %vm1480, %v1453, %v1206
      %v1488 = vsel %vm1480, %v1455, %v1208
      %v1490 = vsel %vm1480, %v1457, %v1210
      %v1492 = vsel %vm1480, %v1459, %v1212
      %v1494 = vsel %vm1480, %v1461, %v1214
      %v1496 = vsel %vm1480, %v1463, %v1216
      %v1498 = vsel %vm1480, %v1465, %v1218
      %v1500 = vsel %vm1480, %v1467, %v1220
      %v1502 = vsel %vm1480, %v1469, %v1222
      %v1504 = vsel %vm1480, %v1471, %v1224
      %v1506 = vsel %vm1480, %v1473, %v1226
      %v1508 = vsel %vm1480, %v1475, %v1228
      %v1510 = vsel %vm1480, %v1477, %v1230
      %v1512 = vsel %vm1480, %v1479, %v1232
      %v1513 = vld [vmem:[%s1] sm:$0xf]
      %v1514 = vld [vmem:[%s1 + $0x4] sm:$0xf]
      %v1515 = vld [vmem:[%s1 + $0x8] sm:$0xf]
      %v1516 = vld [vmem:[%s1 + $0xc] sm:$0xf]
      %v1517 = vld [vmem:[%s1 + $0x10] sm:$0x3]
      %v1523 = vunpack.c.l.b16 %v1513
      %v1524 = vunpack.c.l.b16 %v1514
      %v1525 = vunpack.c.l.b16 %v1515
      %v1526 = vunpack.c.l.b16 %v1516
      %v1527 = vunpack.c.l.b16 %v1517
      %v1528 = vpack.c.b16 %v1524, %v1523
      %v1529 = vpack.c.b16 %v1526, %v1525
      %v1530 = vpack.c.b16 %v1527, %v1527
      %vm1533 = vcmask 293888
      %v1534 = vsel %vm1533, %v1482, 0
      %v1536 = vsel %vm1533, %v1484, 0
      %v1538 = vsel %vm1533, %v1486, 0
      %v1540 = vsel %vm1533, %v1488, 0
      %v1542 = vsel %vm1533, %v1490, 0
      %v1544 = vsel %vm1533, %v1492, 0
      %v1546 = vsel %vm1533, %v1494, 0
      %v1548 = vsel %vm1533, %v1496, 0
      %v1550 = vsel %vm1533, %v1498, 0
      %v1552 = vsel %vm1533, %v1500, 0
      %v1554 = vsel %vm1533, %v1502, 0
      %v1556 = vsel %vm1533, %v1504, 0
      %v1558 = vsel %vm1533, %v1506, 0
      %v1560 = vsel %vm1533, %v1508, 0
      %v1562 = vsel %vm1533, %v1510, 0
      %v1564 = vsel %vm1533, %v1512, 0
      %vm1566 = vcmask 1041408
      %v1568 = vsel %vm1566, %v1530, 0
      %1570 = vmatprep.subr.bf16.mxu0 0
      %1571 = vmatpush1.bf16.msra.mxu0 %v1528
      %1572 = vmatprep.subr.bf16.mxu0 0
      %1573 = vmatpush1.bf16.msra.mxu0 %v1529
      %1574 = vmatprep.subr.bf16.mxu0 0
      %1575 = vmatpush1.bf16.msra.mxu0 %v1568
      %1576 = vmatprep.subr.bf16.mxu0 0
      %1577 = vmatpush1.bf16.msra.mxu0 0
      %1578 = vmatprep.subr.bf16.mxu0 0
      %1579 = vmatpush1.bf16.msra.mxu0 0
      %1580 = vmatprep.subr.bf16.mxu0 0
      %1581 = vmatpush1.bf16.msra.mxu0 0
      %1582 = vmatprep.subr.bf16.mxu0 0
      %1583 = vmatpush1.bf16.msra.mxu0 0
      %1584 = vmatprep.subr.bf16.mxu0 0
      %1585 = vmatpush1.bf16.msra.mxu0 0
      %1586 = vmatprep.subr.bf16.mxu0 0
      %1587 = vmatpush1.bf16.msra.mxu0 0
      %1588 = vmatprep.subr.bf16.mxu0 0
      %1589 = vmatpush1.bf16.msra.mxu0 0
      %1590 = vmatprep.subr.bf16.mxu0 0
      %1591 = vmatpush1.bf16.msra.mxu0 0
      %1592 = vmatprep.subr.bf16.mxu0 0
      %1593 = vmatpush1.bf16.msra.mxu0 0
      %1594 = vmatprep.subr.bf16.mxu0 0
      %1595 = vmatpush1.bf16.msra.mxu0 0
      %1596 = vmatprep.subr.bf16.mxu0 0
      %1597 = vmatpush1.bf16.msra.mxu0 0
      %1598 = vmatprep.subr.bf16.mxu0 0
      %1599 = vmatpush1.bf16.msra.mxu0 0
      %1600 = vmatprep.subr.bf16.mxu0 0
      %1601 = vmatpush1.bf16.msra.mxu0 0
      %1602 = vmatprep.mubr.bf16.mxu0 0
      %1603 = vmatmul.mubr.bf16.gmra.mrb[0].mxu0 %v1534
      %v1604 = vpop.f32.mrb[0].mxu0
      %v1605 = vadd.f32 0.0, %v1604
      %v1606 = vpop.f32.mrb[0].mxu0
      %v1607 = vpop.f32.mrb[0].mxu0
      %v1608 = vadd.f32 0.0, %v1607
      %v1609 = vpop.f32.mrb[0].mxu0
      %1610 = vmatprep.mubr.bf16.mxu0 0
      %1611 = vmatmul.mubr.bf16.gmra.mrb[0].mxu0 %v1536
      %v1612 = vpop.f32.mrb[0].mxu0
      %v1613 = vadd.f32 0.0, %v1612
      %v1614 = vpop.f32.mrb[0].mxu0
      %v1615 = vpop.f32.mrb[0].mxu0
      %v1616 = vadd.f32 0.0, %v1615
      %v1617 = vpop.f32.mrb[0].mxu0
      %1618 = vmatprep.mubr.bf16.mxu0 0
      %1619 = vmatmul.mubr.bf16.gmra.mrb[0].mxu0 %v1538
      %v1620 = vpop.f32.mrb[0].mxu0
      %v1621 = vadd.f32 0.0, %v1620
      %v1622 = vpop.f32.mrb[0].mxu0
      %v1623 = vpop.f32.mrb[0].mxu0
      %v1624 = vadd.f32 0.0, %v1623
      %v1625 = vpop.f32.mrb[0].mxu0
      %1626 = vmatprep.mubr.bf16.mxu0 0
      %1627 = vmatmul.mubr.bf16.gmra.mrb[0].mxu0 %v1540
      %v1628 = vpop.f32.mrb[0].mxu0
      %v1629 = vadd.f32 0.0, %v1628
      %v1630 = vpop.f32.mrb[0].mxu0
      %v1631 = vpop.f32.mrb[0].mxu0
      %v1632 = vadd.f32 0.0, %v1631
      %v1633 = vpop.f32.mrb[0].mxu0
      %1634 = vmatprep.mubr.bf16.mxu0 0
      %1635 = vmatmul.mubr.bf16.gmra.mrb[0].mxu0 %v1542
      %v1636 = vpop.f32.mrb[0].mxu0
      %v1637 = vadd.f32 0.0, %v1636
      %v1638 = vpop.f32.mrb[0].mxu0
      %v1639 = vpop.f32.mrb[0].mxu0
      %v1640 = vadd.f32 0.0, %v1639
      %v1641 = vpop.f32.mrb[0].mxu0
      %1642 = vmatprep.mubr.bf16.mxu0 0
      %1643 = vmatmul.mubr.bf16.gmra.mrb[0].mxu0 %v1544
      %v1644 = vpop.f32.mrb[0].mxu0
      %v1645 = vadd.f32 0.0, %v1644
      %v1646 = vpop.f32.mrb[0].mxu0
      %v1647 = vpop.f32.mrb[0].mxu0
      %v1648 = vadd.f32 0.0, %v1647
      %v1649 = vpop.f32.mrb[0].mxu0
      %1650 = vmatprep.mubr.bf16.mxu0 0
      %1651 = vmatmul.mubr.bf16.gmra.mrb[0].mxu0 %v1546
      %v1652 = vpop.f32.mrb[0].mxu0
      %v1653 = vadd.f32 0.0, %v1652
      %v1654 = vpop.f32.mrb[0].mxu0
      %v1655 = vpop.f32.mrb[0].mxu0
      %v1656 = vadd.f32 0.0, %v1655
      %v1657 = vpop.f32.mrb[0].mxu0
      %1658 = vmatprep.mubr.bf16.mxu0 0
      %1659 = vmatmul.mubr.bf16.gmra.mrb[0].mxu0 %v1548
      %v1660 = vpop.f32.mrb[0].mxu0
      %v1661 = vadd.f32 0.0, %v1660
      %v1662 = vpop.f32.mrb[0].mxu0
      %v1663 = vpop.f32.mrb[0].mxu0
      %v1664 = vadd.f32 0.0, %v1663
      %v1665 = vpop.f32.mrb[0].mxu0
      %1666 = vmatprep.mubr.bf16.mxu0 0
      %1667 = vmatmul.mubr.bf16.gmra.mrb[0].mxu0 %v1550
      %v1668 = vpop.f32.mrb[0].mxu0
      %v1669 = vadd.f32 0.0, %v1668
      %v1670 = vpop.f32.mrb[0].mxu0
      %v1671 = vpop.f32.mrb[0].mxu0
      %v1672 = vadd.f32 0.0, %v1671
      %v1673 = vpop.f32.mrb[0].mxu0
      %1674 = vmatprep.mubr.bf16.mxu0 0
      %1675 = vmatmul.mubr.bf16.gmra.mrb[0].mxu0 %v1552
      %v1676 = vpop.f32.mrb[0].mxu0
      %v1677 = vadd.f32 0.0, %v1676
      %v1678 = vpop.f32.mrb[0].mxu0
      %v1679 = vpop.f32.mrb[0].mxu0
      %v1680 = vadd.f32 0.0, %v1679
      %v1681 = vpop.f32.mrb[0].mxu0
      %1682 = vmatprep.mubr.bf16.mxu0 0
      %1683 = vmatmul.mubr.bf16.gmra.mrb[0].mxu0 %v1554
      %v1684 = vpop.f32.mrb[0].mxu0
      %v1685 = vadd.f32 0.0, %v1684
      %v1686 = vpop.f32.mrb[0].mxu0
      %v1687 = vpop.f32.mrb[0].mxu0
      %v1688 = vadd.f32 0.0, %v1687
      %v1689 = vpop.f32.mrb[0].mxu0
      %1690 = vmatprep.mubr.bf16.mxu0 0
      %1691 = vmatmul.mubr.bf16.gmra.mrb[0].mxu0 %v1556
      %v1692 = vpop.f32.mrb[0].mxu0
      %v1693 = vadd.f32 0.0, %v1692
      %v1694 = vpop.f32.mrb[0].mxu0
      %v1695 = vpop.f32.mrb[0].mxu0
      %v1696 = vadd.f32 0.0, %v1695
      %v1697 = vpop.f32.mrb[0].mxu0
      %1698 = vmatprep.mubr.bf16.mxu0 0
      %1699 = vmatmul.mubr.bf16.gmra.mrb[0].mxu0 %v1558
      %v1700 = vpop.f32.mrb[0].mxu0
      %v1701 = vadd.f32 0.0, %v1700
      %v1702 = vpop.f32.mrb[0].mxu0
      %v1703 = vpop.f32.mrb[0].mxu0
      %v1704 = vadd.f32 0.0, %v1703
      %v1705 = vpop.f32.mrb[0].mxu0
      %1706 = vmatprep.mubr.bf16.mxu0 0
      %1707 = vmatmul.mubr.bf16.gmra.mrb[0].mxu0 %v1560
      %v1708 = vpop.f32.mrb[0].mxu0
      %v1709 = vadd.f32 0.0, %v1708
      %v1710 = vpop.f32.mrb[0].mxu0
      %v1711 = vpop.f32.mrb[0].mxu0
      %v1712 = vadd.f32 0.0, %v1711
      %v1713 = vpop.f32.mrb[0].mxu0
      %1714 = vmatprep.mubr.bf16.mxu0 0
      %1715 = vmatmul.mubr.bf16.gmra.mrb[0].mxu0 %v1562
      %v1716 = vpop.f32.mrb[0].mxu0
      %v1717 = vadd.f32 0.0, %v1716
      %v1718 = vpop.f32.mrb[0].mxu0
      %v1719 = vpop.f32.mrb[0].mxu0
      %v1720 = vadd.f32 0.0, %v1719
      %v1721 = vpop.f32.mrb[0].mxu0
      %1722 = vmatprep.mubr.bf16.mxu0 0
      %1723 = vmatmul.mubr.bf16.gmra.mrb[0].mxu0 %v1564
      %v1724 = vpop.f32.mrb[0].mxu0
      %v1725 = vadd.f32 0.0, %v1724
      %v1726 = vpop.f32.mrb[0].mxu0
      %v1727 = vpop.f32.mrb[0].mxu0
      %v1728 = vadd.f32 0.0, %v1727
      %v1729 = vpop.f32.mrb[0].mxu0
      %1730 = vdwg.mxu0
      %v1731 = vadd.f32 %v1605, %v1608
      %v1732 = vadd.f32 %v1731, %v1613
      %v1733 = vadd.f32 %v1732, %v1616
      %v1734 = vadd.f32 %v1733, %v1621
      %v1735 = vadd.f32 %v1734, %v1624
      %v1736 = vadd.f32 %v1735, %v1629
      %v1737 = vadd.f32 %v1736, %v1632
      %v1738 = vadd.f32 %v1737, %v1637
      %v1739 = vadd.f32 %v1738, %v1640
      %v1740 = vadd.f32 %v1739, %v1645
      %v1741 = vadd.f32 %v1740, %v1648
      %v1742 = vadd.f32 %v1741, %v1653
      %v1743 = vadd.f32 %v1742, %v1656
      %v1744 = vadd.f32 %v1743, %v1661
      %v1745 = vadd.f32 %v1744, %v1664
      %v1746 = vadd.f32 %v1745, %v1669
      %v1747 = vadd.f32 %v1746, %v1672
      %v1748 = vadd.f32 %v1747, %v1677
      %v1749 = vadd.f32 %v1748, %v1680
      %v1750 = vadd.f32 %v1749, %v1685
      %v1751 = vadd.f32 %v1750, %v1688
      %v1752 = vadd.f32 %v1751, %v1693
      %v1753 = vadd.f32 %v1752, %v1696
      %v1754 = vadd.f32 %v1753, %v1701
      %v1755 = vadd.f32 %v1754, %v1704
      %v1756 = vadd.f32 %v1755, %v1709
      %v1757 = vadd.f32 %v1756, %v1712
      %v1758 = vadd.f32 %v1757, %v1717
      %v1759 = vadd.f32 %v1758, %v1720
      %v1760 = vadd.f32 %v1759, %v1725
      %v1761 = vadd.f32 %v1760, %v1728
      %v1762 = vrot.slane %v1761, 4
      %v1763 = vadd.f32 %v1761, %v1762
      %v1764 = vrot.slane %v1763, 2
      %v1765 = vadd.f32 %v1763, %v1764
      %v1766 = vrot.slane %v1765, 1
      %v1767 = vadd.f32 %v1765, %v1766
      %v1768 = vmul.f32 %v1767, 0.00390625
      %v1769 = vsub.f32 %v1605, %v1768
      %v1770 = vsub.f32 %v1608, %v1768
      %v1771 = vsub.f32 %v1613, %v1768
      %v1772 = vsub.f32 %v1616, %v1768
      %v1773 = vsub.f32 %v1621, %v1768
      %v1774 = vsub.f32 %v1624, %v1768
      %v1775 = vsub.f32 %v1629, %v1768
      %v1776 = vsub.f32 %v1632, %v1768
      %v1777 = vsub.f32 %v1637, %v1768
      %v1778 = vsub.f32 %v1640, %v1768
      %v1779 = vsub.f32 %v1645, %v1768
      %v1780 = vsub.f32 %v1648, %v1768
      %v1781 = vsub.f32 %v1653, %v1768
      %v1782 = vsub.f32 %v1656, %v1768
      %v1783 = vsub.f32 %v1661, %v1768
      %v1784 = vsub.f32 %v1664, %v1768
      %v1785 = vsub.f32 %v1669, %v1768
      %v1786 = vsub.f32 %v1672, %v1768
      %v1787 = vsub.f32 %v1677, %v1768
      %v1788 = vsub.f32 %v1680, %v1768
      %v1789 = vsub.f32 %v1685, %v1768
      %v1790 = vsub.f32 %v1688, %v1768
      %v1791 = vsub.f32 %v1693, %v1768
      %v1792 = vsub.f32 %v1696, %v1768
      %v1793 = vsub.f32 %v1701, %v1768
      %v1794 = vsub.f32 %v1704, %v1768
      %v1795 = vsub.f32 %v1709, %v1768
      %v1796 = vsub.f32 %v1712, %v1768
      %v1797 = vsub.f32 %v1717, %v1768
      %v1798 = vsub.f32 %v1720, %v1768
      %v1799 = vsub.f32 %v1725, %v1768
      %v1800 = vsub.f32 %v1728, %v1768
      %1801 = vst [vmem:[%s141] sm:$0x1] %v1767
      %v1802 = vmul.f32 %v1769, %v1769
      %v1803 = vmul.f32 %v1770, %v1770
      %v1804 = vmul.f32 %v1771, %v1771
      %v1805 = vmul.f32 %v1772, %v1772
      %v1806 = vmul.f32 %v1773, %v1773
      %v1807 = vmul.f32 %v1774, %v1774
      %v1808 = vmul.f32 %v1775, %v1775
      %v1809 = vmul.f32 %v1776, %v1776
      %v1810 = vmul.f32 %v1777, %v1777
      %v1811 = vmul.f32 %v1778, %v1778
      %v1812 = vmul.f32 %v1779, %v1779
      %v1813 = vmul.f32 %v1780, %v1780
      %v1814 = vmul.f32 %v1781, %v1781
      %v1815 = vmul.f32 %v1782, %v1782
      %v1816 = vmul.f32 %v1783, %v1783
      %v1817 = vmul.f32 %v1784, %v1784
      %v1818 = vmul.f32 %v1785, %v1785
      %v1819 = vmul.f32 %v1786, %v1786
      %v1820 = vmul.f32 %v1787, %v1787
      %v1821 = vmul.f32 %v1788, %v1788
      %v1822 = vmul.f32 %v1789, %v1789
      %v1823 = vmul.f32 %v1790, %v1790
      %v1824 = vmul.f32 %v1791, %v1791
      %v1825 = vmul.f32 %v1792, %v1792
      %v1826 = vmul.f32 %v1793, %v1793
      %v1827 = vmul.f32 %v1794, %v1794
      %v1828 = vmul.f32 %v1795, %v1795
      %v1829 = vmul.f32 %v1796, %v1796
      %v1830 = vmul.f32 %v1797, %v1797
      %v1831 = vmul.f32 %v1798, %v1798
      %v1832 = vmul.f32 %v1799, %v1799
      %v1833 = vmul.f32 %v1800, %v1800
      %v1834 = vadd.f32 %v1802, %v1803
      %v1835 = vadd.f32 %v1834, %v1804
      %v1836 = vadd.f32 %v1835, %v1805
      %v1837 = vadd.f32 %v1836, %v1806
      %v1838 = vadd.f32 %v1837, %v1807
      %v1839 = vadd.f32 %v1838, %v1808
      %v1840 = vadd.f32 %v1839, %v1809
      %v1841 = vadd.f32 %v1840, %v1810
      %v1842 = vadd.f32 %v1841, %v1811
      %v1843 = vadd.f32 %v1842, %v1812
      %v1844 = vadd.f32 %v1843, %v1813
      %v1845 = vadd.f32 %v1844, %v1814
      %v1846 = vadd.f32 %v1845, %v1815
      %v1847 = vadd.f32 %v1846, %v1816
      %v1848 = vadd.f32 %v1847, %v1817
      %v1849 = vadd.f32 %v1848, %v1818
      %v1850 = vadd.f32 %v1849, %v1819
      %v1851 = vadd.f32 %v1850, %v1820
      %v1852 = vadd.f32 %v1851, %v1821
      %v1853 = vadd.f32 %v1852, %v1822
      %v1854 = vadd.f32 %v1853, %v1823
      %v1855 = vadd.f32 %v1854, %v1824
      %v1856 = vadd.f32 %v1855, %v1825
      %v1857 = vadd.f32 %v1856, %v1826
      %v1858 = vadd.f32 %v1857, %v1827
      %v1859 = vadd.f32 %v1858, %v1828
      %v1860 = vadd.f32 %v1859, %v1829
      %v1861 = vadd.f32 %v1860, %v1830
      %v1862 = vadd.f32 %v1861, %v1831
      %v1863 = vadd.f32 %v1862, %v1832
      %v1864 = vadd.f32 %v1863, %v1833
      %v1865 = vrot.slane %v1864, 4
      %v1866 = vadd.f32 %v1864, %v1865
      %v1867 = vrot.slane %v1866, 2
      %v1868 = vadd.f32 %v1866, %v1867
      %v1869 = vrot.slane %v1868, 1
      %v1870 = vadd.f32 %v1868, %v1869
      %1871 = vst [vmem:[%s141 + $0x1] sm:$0x1] %v1870
      %p1872 = scmp.lt.s32.totalorder %s13, 1
      %s1873 = scalar_select %p1872, %s13, 1
      %s1874 = smul.addr %s1873, 2
      %s1875 = scalar_lea.vmem %s2, %s1874
      // Predicated region
      $region29: #{conv_block_forward.2} parent=27 // pred_check
        %p1876 = pneg %p78
      $region30: #{conv_block_forward.2} parent=27 // pred_check_branch
        %1878 = sbr.rel (%p1876) target = $region32
      $region31: #{conv_block_forward.2} parent=27 // pred_region
        _
      $region32: #{conv_block_forward.2} parent=27 // pred_fallthru
        _
    $region28: #{conv_block_forward.2} parent=5 // pred_fallthru
      _
    %p1879 = scmp.le.s32.totalorder 2, %s8
    // Predicated region
    $region33: #{conv_block_forward.2} parent=5 // pred_check
      %p1880 = pneg %p1879
    $region34: #{conv_block_forward.2} parent=5 // pred_check_branch
      %1882 = sbr.rel (%p1880) target = $region36
    $region35: #{conv_block_forward.2} parent=5 // pred_region
      %s1883 = ssub.s32 %s8, 2
      // Predicated region
      $region37: #{conv_block_forward.2} parent=35 // pred_check
        %p1884 = pneg %p84
      $region38: #{conv_block_forward.2} parent=35 // pred_check_branch
        %1886 = sbr.rel (%p1884) target = $region40
      $region39: #{conv_block_forward.2} parent=35 // pred_region
        %p1887 = scmp.lt.s32.totalorder %s14, 1
        %s1888 = scalar_select %p1887, %s14, 1
        %s1889 = smul.addr %s1888, 2
        %s1890 = scalar_lea.vmem %s2, %s1889
      $region40: #{conv_block_forward.2} parent=35 // pred_fallthru
        _
    $region36: #{conv_block_forward.2} parent=5 // pred_fallthru
      _
  $region6: #{conv_block_forward.2} parent=0 // loop_footer
    %s12 = sadd.s32 1, %s8
  $region7: #{conv_block_forward.2} parent=0 // loop_footer_branch
    %7 = sbr.rel target = $region3
  $region8: #{conv_block_forward.2} parent=0 // loop_exit
    _

// kernel: conv_block_forward.3
$region0: #{conv_block_forward.3}
  #allocation0 [shape = 'u32[]', space=smem, size = 0x4, offset = 0x4, fixed_abs, tag = 'smem constant byte address 0x4 - core index']
  #allocation1 [shape = 'u32[144,128]{1,0:T(1,128)}', space=vmem, size = 0x12000, scoped, tag = 'internal scratch']
  %s0 = inlined_call_operand.vmem [shape: bf16[2,18,18,4], index: 0, kind: input, shape index: {}]
  %s1 = inlined_call_operand.vmem [shape: bf16[36,128], index: 1, kind: input, shape index: {}]
  %s2 = inlined_call_operand.vmem [shape: f32[1,128], index: 2, kind: input, shape index: {}]
  %s3 = inlined_call_operand.vmem [shape: f32[1,128], index: 3, kind: input, shape index: {}]
  %s4 = inlined_call_operand.vmem [shape: f32[512,128], index: 4, kind: output, shape index: {}]
  %s5 = sld [smem:[#allocation0]]
  $region49: #{conv_block_forward.3} parent=0
    _
  %s7 = ssub.s32 1, %s5
  %s8 = scalar_select 0, %s7, %s5
  loop: start=0, step=1, limit=4
  $region2: #{conv_block_forward.3} parent=0 // loop_pre_header
    _
  $region3: #{conv_block_forward.3} parent=0 // loop_header
    %s10 = sphi 0, %s14
    %p11 = scmp.ge.s32.totalorder %s10, 4
    %s20 = sphi 0, %s22
    %s23 = sphi 0, %s20
    %s24 = sphi 0, %s23
    %s40 = sphi 0, %s24
    %s44 = sphi 0, %s44
    %s46 = sphi 0, %s44
    %s47 = sphi 0, %s46
    %s61 = sphi 0, %s47
    %s65 = sphi 0, %s65
    %s67 = sphi 0, %s65
    %s68 = sphi 0, %s67
    %s82 = sphi 0, %s68
    %s86 = sphi 0, %s86
    %s88 = sphi 0, %s86
    %s89 = sphi 0, %s88
    %s103 = sphi 0, %s89
    %s109 = sphi 0, %s111
    %s112 = sphi 0, %s109
    %s113 = sphi 0, %s112
    %s129 = sphi 0, %s113
  $region4: #{conv_block_forward.3} parent=0 // loop_header_branch
    %13 = sbr.rel (%p11) target = $region8
  $region5: #{conv_block_forward.3} parent=0 // loop_body
    %s15 = ssub.s32 %s10, 1
    %s16 = ssub.s32 %s10, 2
    %s17 = sadd.s32 %s10, 1
    %s18 = ssub.s32 %s10, %s17
    %p19 = scmp.eq.s32.totalorder %s18, 0
    %s21 = sadd.s32 %s20, 1
    %s22 = scalar_select %p19, %s20, %s21
    %p25 = pneg %p19
    %p26 = scmp.eq.s32.totalorder %s10, 1
    %p27 = por %p25, %p26
    %p28 = scmp.ne.s32.totalorder %s20, %s23
    %p29 = scmp.eq.s32.totalorder %s10, 0
    %p30 = por %p28, %p29
    %p31 = scmp.ne.s32.totalorder %s20, %s23
    %p32 = scmp.eq.s32.totalorder %s15, 1
    %p33 = por %p31, %p32
    %p34 = scmp.ne.s32.totalorder %s23, %s24
    %p35 = scmp.eq.s32.totalorder %s15, 0
    %p36 = por %p34, %p35
    %p37 = scmp.ne.s32.totalorder %s23, %s24
    %p38 = scmp.eq.s32.totalorder %s16, 1
    %p39 = por %p37, %p38
    %p41 = scmp.ne.s32.totalorder %s24, %s40
    %p42 = scmp.eq.s32.totalorder %s16, 0
    %p43 = por %p41, %p42
    %s45 = sadd.s32 %s44, 1
    %p48 = scmp.eq.s32.totalorder %s10, 1
    %p49 = scmp.ne.s32.totalorder %s44, %s46
    %p50 = scmp.eq.s32.totalorder %s10, 0
    %p51 = por %p49, %p50
    %p52 = scmp.ne.s32.totalorder %s44, %s46
    %p53 = scmp.eq.s32.totalorder %s15, 1
    %p54 = por %p52, %p53
    %p55 = scmp.ne.s32.totalorder %s46, %s47
    %p56 = scmp.eq.s32.totalorder %s15, 0
    %p57 = por %p55, %p56
    %p58 = scmp.ne.s32.totalorder %s46, %s47
    %p59 = scmp.eq.s32.totalorder %s16, 1
    %p60 = por %p58, %p59
    %p62 = scmp.ne.s32.totalorder %s47, %s61
    %p63 = scmp.eq.s32.totalorder %s16, 0
    %p64 = por %p62, %p63
    %s66 = sadd.s32 %s65, 1
    %p69 = scmp.eq.s32.totalorder %s10, 1
    %p70 = scmp.ne.s32.totalorder %s65, %s67
    %p71 = scmp.eq.s32.totalorder %s10, 0
    %p72 = por %p70, %p71
    %p73 = scmp.ne.s32.totalorder %s65, %s67
    %p74 = scmp.eq.s32.totalorder %s15, 1
    %p75 = por %p73, %p74
    %p76 = scmp.ne.s32.totalorder %s67, %s68
    %p77 = scmp.eq.s32.totalorder %s15, 0
    %p78 = por %p76, %p77
    %p79 = scmp.ne.s32.totalorder %s67, %s68
    %p80 = scmp.eq.s32.totalorder %s16, 1
    %p81 = por %p79, %p80
    %p83 = scmp.ne.s32.totalorder %s68, %s82
    %p84 = scmp.eq.s32.totalorder %s16, 0
    %p85 = por %p83, %p84
    %s87 = sadd.s32 %s86, 1
    %p90 = scmp.eq.s32.totalorder %s10, 1
    %p91 = scmp.ne.s32.totalorder %s86, %s88
    %p92 = scmp.eq.s32.totalorder %s10, 0
    %p93 = por %p91, %p92
    %p94 = scmp.ne.s32.totalorder %s86, %s88
    %p95 = scmp.eq.s32.totalorder %s15, 1
    %p96 = por %p94, %p95
    %p97 = scmp.ne.s32.totalorder %s88, %s89
    %p98 = scmp.eq.s32.totalorder %s15, 0
    %p99 = por %p97, %p98
    %p100 = scmp.ne.s32.totalorder %s88, %s89
    %p101 = scmp.eq.s32.totalorder %s16, 1
    %p102 = por %p100, %p101
    %p104 = scmp.ne.s32.totalorder %s89, %s103
    %p105 = scmp.eq.s32.totalorder %s16, 0
    %p106 = por %p104, %p105
    %s107 = ssub.s32 %s10, %s17
    %p108 = scmp.eq.s32.totalorder %s107, 0
    %s110 = sadd.s32 %s109, 1
    %s111 = scalar_select %p108, %s109, %s110
    %p114 = pneg %p108
    %p115 = scmp.eq.s32.totalorder %s10, 1
    %p116 = por %p114, %p115
    %p117 = scmp.ne.s32.totalorder %s109, %s112
    %p118 = scmp.eq.s32.totalorder %s10, 0
    %p119 = por %p117, %p118
    %p120 = scmp.ne.s32.totalorder %s109, %s112
    %p121 = scmp.eq.s32.totalorder %s15, 1
    %p122 = por %p120, %p121
    %p123 = scmp.ne.s32.totalorder %s112, %s113
    %p124 = scmp.eq.s32.totalorder %s15, 0
    %p125 = por %p123, %p124
    %p126 = scmp.ne.s32.totalorder %s112, %s113
    %p127 = scmp.eq.s32.totalorder %s16, 1
    %p128 = por %p126, %p127
    %p130 = scmp.ne.s32.totalorder %s113, %s129
    %p131 = scmp.eq.s32.totalorder %s16, 0
    %p132 = por %p130, %p131
    %p133 = scmp.le.s32.totalorder 1, %s10
    %p134 = scmp.lt.s32.totalorder %s10, 3
    %p135 = pnand %p133, %p134
    %p136 = pneg %p135
    // Predicated region
    $region9: #{conv_block_forward.3} parent=5 // pred_check
      _
    $region10: #{conv_block_forward.3} parent=5 // pred_check_branch
      %138 = sbr.rel (%p135) target = $region12
    $region11: #{conv_block_forward.3} parent=5 // pred_region
      %s139 = ssub.s32 %s10, 1
      // Predicated region
      $region13: #{conv_block_forward.3} parent=11 // pred_check
        %p140 = pneg %p57
      $region14: #{conv_block_forward.3} parent=11 // pred_check_branch
        %142 = sbr.rel (%p140) target = $region16
      $region15: #{conv_block_forward.3} parent=11 // pred_region
        _
      $region16: #{conv_block_forward.3} parent=11 // pred_fallthru
        _
      // Predicated region
      $region17: #{conv_block_forward.3} parent=11 // pred_check
        %p143 = pneg %p78
      $region18: #{conv_block_forward.3} parent=11 // pred_check_branch
        %145 = sbr.rel (%p143) target = $region20
      $region19: #{conv_block_forward.3} parent=11 // pred_region
        _
      $region20: #{conv_block_forward.3} parent=11 // pred_fallthru
        _
      // Predicated region
      $region21: #{conv_block_forward.3} parent=11 // pred_check
        %p146 = pneg %p99
      $region22: #{conv_block_forward.3} parent=11 // pred_check_branch
        %148 = sbr.rel (%p146) target = $region24
      $region23: #{conv_block_forward.3} parent=11 // pred_region
        _
      $region24: #{conv_block_forward.3} parent=11 // pred_fallthru
        _
    $region12: #{conv_block_forward.3} parent=5 // pred_fallthru
      _
    %p149 = scmp.lt.s32.totalorder %s10, 2
    // Predicated region
    $region25: #{conv_block_forward.3} parent=5 // pred_check
      %p150 = pneg %p149
    $region26: #{conv_block_forward.3} parent=5 // pred_check_branch
      %152 = sbr.rel (%p150) target = $region28
    $region27: #{conv_block_forward.3} parent=5 // pred_region
      // Predicated region
      $region29: #{conv_block_forward.3} parent=27 // pred_check
        %p153 = pneg %p30
      $region30: #{conv_block_forward.3} parent=27 // pred_check_branch
        %155 = sbr.rel (%p153) target = $region32
      $region31: #{conv_block_forward.3} parent=27 // pred_region
        %p156 = scmp.lt.s32.totalorder %s10, 1
        %s157 = scalar_select %p156, %s10, 1
        %s158 = smul.addr %s157, 54
        %s159 = smul.addr %s158, 4
        %s160 = scalar_lea.vmem %s0, %s159
      $region32: #{conv_block_forward.3} parent=27 // pred_fallthru
        _
    $region28: #{conv_block_forward.3} parent=5 // pred_fallthru
      _
    %p161 = scmp.le.s32.totalorder 1, %s10
    %p162 = scmp.lt.s32.totalorder %s10, 3
    %p163 = pnand %p161, %p162
    %p164 = pneg %p163
    // Predicated region
    $region33: #{conv_block_forward.3} parent=5 // pred_check
      _
    $region34: #{conv_block_forward.3} parent=5 // pred_check_branch
      %166 = sbr.rel (%p163) target = $region36
    $region35: #{conv_block_forward.3} parent=5 // pred_region
      %s167 = ssub.s32 %s10, 1
      %p168 = scmp.lt.s32.totalorder %s15, 1
      %s169 = scalar_select %p168, %s15, 1
      %s170 = smul.addr %s169, 54
      %s171 = smul.addr %s170, 4
      %s172 = scalar_lea.vmem %s0, %s171
      %p173 = pneg %p36
      %p174 = pneg %p33
      %p175 = pneg %p57
      %p176 = pneg %p54
      %p177 = pneg %p78
      %p178 = pneg %p75
      %p179 = pneg %p99
      %p180 = pneg %p96
      %p181 = pneg %p125
      %p182 = pneg %p122
      %s183 = smul.u32 32, %s15
      %p184 = scmp.lt.s32.totalorder %s183, 63
      %s185 = scalar_select %p184, %s183, 63
      %s186 = smul.addr %s185, 8
      %s187 = scalar_lea.vmem %s4, %s186
      %p188 = scmp.lt.s32.totalorder %s15, 1
      %s189 = scalar_select %p188, %s15, 1
      %s190 = smul.addr %s189, 54
      %s191 = smul.addr %s190, 4
      %s192 = scalar_lea.vmem %s0, %s191
      %s193 = smul.u32 32, %s15
      %p194 = scmp.lt.s32.totalorder %s193, 63
      %s195 = scalar_select %p194, %s193, 63
      %s196 = smul.addr %s195, 8
      %s197 = scalar_lea.vmem %s4, %s196
      %s198 = smul.u32 32, %s15
      %v200 = vld [vmem:[%s192] sm:$0xf]
      %v201 = vld [vmem:[%s192 + $0x4] sm:$0xf]
      %v202 = vld [vmem:[%s192 + $0x8] sm:$0x1]
      %v203 = vld [vmem:[%s192 + $0xc] sm:$0xf]
      %v204 = vld [vmem:[%s192 + $0x10] sm:$0xf]
      %v205 = vld [vmem:[%s192 + $0x14] sm:$0x1]
      %v206 = vld [vmem:[%s192 + $0x18] sm:$0xf]
      %v207 = vld [vmem:[%s192 + $0x1c] sm:$0xf]
      %v208 = vld [vmem:[%s192 + $0x20] sm:$0x1]
      %v209 = vld [vmem:[%s192 + $0x24] sm:$0xf]
      %v210 = vld [vmem:[%s192 + $0x28] sm:$0xf]
      %v211 = vld [vmem:[%s192 + $0x2c] sm:$0x1]
      %v212 = vld [vmem:[%s192 + $0x30] sm:$0xf]
      %v213 = vld [vmem:[%s192 + $0x34] sm:$0xf]
      %v214 = vld [vmem:[%s192 + $0x38] sm:$0x1]
      %v215 = vld [vmem:[%s192 + $0x3c] sm:$0xf]
      %v216 = vld [vmem:[%s192 + $0x40] sm:$0xf]
      %v217 = vld [vmem:[%s192 + $0x44] sm:$0x1]
      %v218 = vld [vmem:[%s192 + $0x48] sm:$0xf]
      %v219 = vld [vmem:[%s192 + $0x4c] sm:$0xf]
      %v220 = vld [vmem:[%s192 + $0x50] sm:$0x1]
      %v221 = vld [vmem:[%s192 + $0x54] sm:$0xf]
      %v222 = vld [vmem:[%s192 + $0x58] sm:$0xf]
      %v223 = vld [vmem:[%s192 + $0x5c] sm:$0x1]
      %v224 = vld [vmem:[%s192 + $0x60] sm:$0xf]
      %v225 = vld [vmem:[%s192 + $0x64] sm:$0xf]
      %v226 = vld [vmem:[%s192 + $0x68] sm:$0x1]
      %v227 = vld [vmem:[%s192 + $0x6c] sm:$0xf]
      %v228 = vld [vmem:[%s192 + $0x70] sm:$0xf]
      %v229 = vld [vmem:[%s192 + $0x74] sm:$0x1]
      %v230 = vld [vmem:[%s192 + $0x78] sm:$0xf]
      %v231 = vld [vmem:[%s192 + $0x7c] sm:$0xf]
      %v232 = vld [vmem:[%s192 + $0x80] sm:$0x1]
      %v233 = vld [vmem:[%s192 + $0x84] sm:$0xf]
      %v234 = vld [vmem:[%s192 + $0x88] sm:$0xf]
      %v235 = vld [vmem:[%s192 + $0x8c] sm:$0x1]
      %v236 = vld [vmem:[%s192 + $0x90] sm:$0xf]
      %v237 = vld [vmem:[%s192 + $0x94] sm:$0xf]
      %v238 = vld [vmem:[%s192 + $0x98] sm:$0x1]
      %v239 = vld [vmem:[%s192 + $0x9c] sm:$0xf]
      %v240 = vld [vmem:[%s192 + $0xa0] sm:$0xf]
      %v241 = vld [vmem:[%s192 + $0xa4] sm:$0x1]
      %v242 = vld [vmem:[%s192 + $0xa8] sm:$0xf]
      %v243 = vld [vmem:[%s192 + $0xac] sm:$0xf]
      %v244 = vld [vmem:[%s192 + $0xb0] sm:$0x1]
      %v245 = vld [vmem:[%s192 + $0xb4] sm:$0xf]
      %v246 = vld [vmem:[%s192 + $0xb8] sm:$0xf]
      %v247 = vld [vmem:[%s192 + $0xbc] sm:$0x1]
      %v248 = vld [vmem:[%s192 + $0xc0] sm:$0xf]
      %v249 = vld [vmem:[%s192 + $0xc4] sm:$0xf]
      %v250 = vld [vmem:[%s192 + $0xc8] sm:$0x1]
      %v251 = vld [vmem:[%s192 + $0xcc] sm:$0xf]
      %v252 = vld [vmem:[%s192 + $0xd0] sm:$0xf]
      %v253 = vld [vmem:[%s192 + $0xd4] sm:$0x1]
      %vm254 = vsmask.f32 3328
      %vm255 = vsmask.f32 7440
      %vm256 = vmor %vm254, %vm255
      %v258 = vshrl.u32 %v200, 16
      %v260 = vrot.slane %v258, 4
      %v261 = vshll.u32 %v200, 16
      %v263 = vrot.slane %v261, 5
      %v264 = vor.u32 %v260, %v263
      %v265 = vrot.slane %v264, 4
      %v267 = vshll.u32 %v201, 16
      %v269 = vrot.slane %v267, 5
      %v270 = vsel %vm256, %v265, %v269
      %v271 = vshrl.u32 %v201, 16
      %v273 = vrot.slane %v271, 4
      %v274 = vor.u32 %v273, %v269
      %v275 = vrot.slane %v274, 4
      %v277 = vshll.u32 %v202, 16
      %v279 = vrot.slane %v277, 5
      %v280 = vsel %vm256, %v275, %v279
      %v282 = vshrl.u32 %v203, 16
      %v284 = vrot.slane %v282, 4
      %v285 = vshll.u32 %v203, 16
      %v287 = vrot.slane %v285, 5
      %v288 = vor.u32 %v284, %v287
      %v289 = vrot.slane %v288, 4
      %v291 = vshll.u32 %v204, 16
      %v293 = vrot.slane %v291, 5
      %v294 = vsel %vm256, %v289, %v293
      %v295 = vshrl.u32 %v204, 16
      %v297 = vrot.slane %v295, 4
      %v298 = vor.u32 %v297, %v293
      %v299 = vrot.slane %v298, 4
      %v301 = vshll.u32 %v205, 16
      %v303 = vrot.slane %v301, 5
      %v304 = vsel %vm256, %v299, %v303
      %v306 = vshrl.u32 %v206, 16
      %v308 = vrot.slane %v306, 4
      %v309 = vshll.u32 %v206, 16
      %v311 = vrot.slane %v309, 5
      %v312 = vor.u32 %v308, %v311
      %v313 = vrot.slane %v312, 4
      %v315 = vshll.u32 %v207, 16
      %v317 = vrot.slane %v315, 5
      %v318 = vsel %vm256, %v313, %v317
      %v319 = vshrl.u32 %v207, 16
      %v321 = vrot.slane %v319, 4
      %v322 = vor.u32 %v321, %v317
      %v323 = vrot.slane %v322, 4
      %v325 = vshll.u32 %v208, 16
      %v327 = vrot.slane %v325, 5
      %v328 = vsel %vm256, %v323, %v327
      %v330 = vshrl.u32 %v209, 16
      %v332 = vrot.slane %v330, 4
      %v333 = vshll.u32 %v209, 16
      %v335 = vrot.slane %v333, 5
      %v336 = vor.u32 %v332, %v335
      %v337 = vrot.slane %v336, 4
      %v339 = vshll.u32 %v210, 16
      %v341 = vrot.slane %v339, 5
      %v342 = vsel %vm256, %v337, %v341
      %v343 = vshrl.u32 %v210, 16
      %v345 = vrot.slane %v343, 4
      %v346 = vor.u32 %v345, %v341
      %v347 = vrot.slane %v346, 4
      %v349 = vshll.u32 %v211, 16
      %v351 = vrot.slane %v349, 5
      %v352 = vsel %vm256, %v347, %v351
      %v354 = vshrl.u32 %v212, 16
      %v356 = vrot.slane %v354, 4
      %v357 = vshll.u32 %v212, 16
      %v359 = vrot.slane %v357, 5
      %v360 = vor.u32 %v356, %v359
      %v361 = vrot.slane %v360, 4
      %v363 = vshll.u32 %v213, 16
      %v365 = vrot.slane %v363, 5
      %v366 = vsel %vm256, %v361, %v365
      %v367 = vshrl.u32 %v213, 16
      %v369 = vrot.slane %v367, 4
      %v370 = vor.u32 %v369, %v365
      %v371 = vrot.slane %v370, 4
      %v373 = vshll.u32 %v214, 16
      %v375 = vrot.slane %v373, 5
      %v376 = vsel %vm256, %v371, %v375
      %v378 = vshrl.u32 %v215, 16
      %v380 = vrot.slane %v378, 4
      %v381 = vshll.u32 %v215, 16
      %v383 = vrot.slane %v381, 5
      %v384 = vor.u32 %v380, %v383
      %v385 = vrot.slane %v384, 4
      %v387 = vshll.u32 %v216, 16
      %v389 = vrot.slane %v387, 5
      %v390 = vsel %vm256, %v385, %v389
      %v391 = vshrl.u32 %v216, 16
      %v393 = vrot.slane %v391, 4
      %v394 = vor.u32 %v393, %v389
      %v395 = vrot.slane %v394, 4
      %v397 = vshll.u32 %v217, 16
      %v399 = vrot.slane %v397, 5
      %v400 = vsel %vm256, %v395, %v399
      %v402 = vshrl.u32 %v218, 16
      %v404 = vrot.slane %v402, 4
      %v405 = vshll.u32 %v218, 16
      %v407 = vrot.slane %v405, 5
      %v408 = vor.u32 %v404, %v407
      %v409 = vrot.slane %v408, 4
      %v411 = vshll.u32 %v219, 16
      %v413 = vrot.slane %v411, 5
      %v414 = vsel %vm256, %v409, %v413
      %v415 = vshrl.u32 %v219, 16
      %v417 = vrot.slane %v415, 4
      %v418 = vor.u32 %v417, %v413
      %v419 = vrot.slane %v418, 4
      %v421 = vshll.u32 %v220, 16
      %v423 = vrot.slane %v421, 5
      %v424 = vsel %vm256, %v419, %v423
      %v426 = vshrl.u32 %v221, 16
      %v428 = vrot.slane %v426, 4
      %v429 = vshll.u32 %v221, 16
      %v431 = vrot.slane %v429, 5
      %v432 = vor.u32 %v428, %v431
      %v433 = vrot.slane %v432, 4
      %v435 = vshll.u32 %v222, 16
      %v437 = vrot.slane %v435, 5
      %v438 = vsel %vm256, %v433, %v437
      %v439 = vshrl.u32 %v222, 16
      %v441 = vrot.slane %v439, 4
      %v442 = vor.u32 %v441, %v437
      %v443 = vrot.slane %v442, 4
      %v445 = vshll.u32 %v223, 16
      %v447 = vrot.slane %v445, 5
      %v448 = vsel %vm256, %v443, %v447
      %v450 = vshrl.u32 %v224, 16
      %v452 = vrot.slane %v450, 4
      %v453 = vshll.u32 %v224, 16
      %v455 = vrot.slane %v453, 5
      %v456 = vor.u32 %v452, %v455
      %v457 = vrot.slane %v456, 4
      %v459 = vshll.u32 %v225, 16
      %v461 = vrot.slane %v459, 5
      %v462 = vsel %vm256, %v457, %v461
      %v463 = vshrl.u32 %v225, 16
      %v465 = vrot.slane %v463, 4
      %v466 = vor.u32 %v465, %v461
      %v467 = vrot.slane %v466, 4
      %v469 = vshll.u32 %v226, 16
      %v471 = vrot.slane %v469, 5
      %v472 = vsel %vm256, %v467, %v471
      %v474 = vshrl.u32 %v227, 16
      %v476 = vrot.slane %v474, 4
      %v477 = vshll.u32 %v227, 16
      %v479 = vrot.slane %v477, 5
      %v480 = vor.u32 %v476, %v479
      %v481 = vrot.slane %v480, 4
      %v483 = vshll.u32 %v228, 16
      %v485 = vrot.slane %v483, 5
      %v486 = vsel %vm256, %v481, %v485
      %v487 = vshrl.u32 %v228, 16
      %v489 = vrot.slane %v487, 4
      %v490 = vor.u32 %v489, %v485
      %v491 = vrot.slane %v490, 4
      %v493 = vshll.u32 %v229, 16
      %v495 = vrot.slane %v493, 5
      %v496 = vsel %vm256, %v491, %v495
      %v498 = vshrl.u32 %v230, 16
      %v500 = vrot.slane %v498, 4
      %v501 = vshll.u32 %v230, 16
      %v503 = vrot.slane %v501, 5
      %v504 = vor.u32 %v500, %v503
      %v505 = vrot.slane %v504, 4
      %v507 = vshll.u32 %v231, 16
      %v509 = vrot.slane %v507, 5
      %v510 = vsel %vm256, %v505, %v509
      %v511 = vshrl.u32 %v231, 16
      %v513 = vrot.slane %v511, 4
      %v514 = vor.u32 %v513, %v509
      %v515 = vrot.slane %v514, 4
      %v517 = vshll.u32 %v232, 16
      %v519 = vrot.slane %v517, 5
      %v520 = vsel %vm256, %v515, %v519
      %v522 = vshrl.u32 %v233, 16
      %v524 = vrot.slane %v522, 4
      %v525 = vshll.u32 %v233, 16
      %v527 = vrot.slane %v525, 5
      %v528 = vor.u32 %v524, %v527
      %v529 = vrot.slane %v528, 4
      %v531 = vshll.u32 %v234, 16
      %v533 = vrot.slane %v531, 5
      %v534 = vsel %vm256, %v529, %v533
      %v535 = vshrl.u32 %v234, 16
      %v537 = vrot.slane %v535, 4
      %v538 = vor.u32 %v537, %v533
      %v539 = vrot.slane %v538, 4
      %v541 = vshll.u32 %v235, 16
      %v543 = vrot.slane %v541, 5
      %v544 = vsel %vm256, %v539, %v543
      %v546 = vshrl.u32 %v236, 16
      %v548 = vrot.slane %v546, 4
      %v549 = vshll.u32 %v236, 16
      %v551 = vrot.slane %v549, 5
      %v552 = vor.u32 %v548, %v551
      %v553 = vrot.slane %v552, 4
      %v555 = vshll.u32 %v237, 16
      %v557 = vrot.slane %v555, 5
      %v558 = vsel %vm256, %v553, %v557
      %v559 = vshrl.u32 %v237, 16
      %v561 = vrot.slane %v559, 4
      %v562 = vor.u32 %v561, %v557
      %v563 = vrot.slane %v562, 4
      %v565 = vshll.u32 %v238, 16
      %v567 = vrot.slane %v565, 5
      %v568 = vsel %vm256, %v563, %v567
      %v570 = vshrl.u32 %v239, 16
      %v572 = vrot.slane %v570, 4
      %v573 = vshll.u32 %v239, 16
      %v575 = vrot.slane %v573, 5
      %v576 = vor.u32 %v572, %v575
      %v577 = vrot.slane %v576, 4
      %v579 = vshll.u32 %v240, 16
      %v581 = vrot.slane %v579, 5
      %v582 = vsel %vm256, %v577, %v581
      %v583 = vshrl.u32 %v240, 16
      %v585 = vrot.slane %v583, 4
      %v586 = vor.u32 %v585, %v581
      %v587 = vrot.slane %v586, 4
      %v589 = vshll.u32 %v241, 16
      %v591 = vrot.slane %v589, 5
      %v592 = vsel %vm256, %v587, %v591
      %v594 = vshrl.u32 %v242, 16
      %v596 = vrot.slane %v594, 4
      %v597 = vshll.u32 %v242, 16
      %v599 = vrot.slane %v597, 5
      %v600 = vor.u32 %v596, %v599
      %v601 = vrot.slane %v600, 4
      %v603 = vshll.u32 %v243, 16
      %v605 = vrot.slane %v603, 5
      %v606 = vsel %vm256, %v601, %v605
      %v607 = vshrl.u32 %v243, 16
      %v609 = vrot.slane %v607, 4
      %v610 = vor.u32 %v609, %v605
      %v611 = vrot.slane %v610, 4
      %v613 = vshll.u32 %v244, 16
      %v615 = vrot.slane %v613, 5
      %v616 = vsel %vm256, %v611, %v615
      %v618 = vshrl.u32 %v245, 16
      %v620 = vrot.slane %v618, 4
      %v621 = vshll.u32 %v245, 16
      %v623 = vrot.slane %v621, 5
      %v624 = vor.u32 %v620, %v623
      %v625 = vrot.slane %v624, 4
      %v627 = vshll.u32 %v246, 16
      %v629 = vrot.slane %v627, 5
      %v630 = vsel %vm256, %v625, %v629
      %v631 = vshrl.u32 %v246, 16
      %v633 = vrot.slane %v631, 4
      %v634 = vor.u32 %v633, %v629
      %v635 = vrot.slane %v634, 4
      %v637 = vshll.u32 %v247, 16
      %v639 = vrot.slane %v637, 5
      %v640 = vsel %vm256, %v635, %v639
      %vm689 = vcmask 1042432
      %vm690 = vcmask 1046532
      %vm691 = vmor %vm689, %vm690
      %v692 = vrot.slane %v200, 5
      %v693 = vrot.slane %v692, 4
      %v694 = vrot.slane %v201, 5
      %v695 = vsel %vm691, %v693, %v694
      %v696 = vrot.slane %v694, 4
      %v697 = vrot.slane %v202, 5
      %v698 = vsel %vm691, %v696, %v697
      %v699 = vrot.slane %v203, 5
      %v700 = vrot.slane %v699, 4
      %v701 = vrot.slane %v204, 5
      %v702 = vsel %vm691, %v700, %v701
      %v703 = vrot.slane %v701, 4
      %v704 = vrot.slane %v205, 5
      %v705 = vsel %vm691, %v703, %v704
      %v706 = vrot.slane %v206, 5
      %v707 = vrot.slane %v706, 4
      %v708 = vrot.slane %v207, 5
      %v709 = vsel %vm691, %v707, %v708
      %v710 = vrot.slane %v708, 4
      %v711 = vrot.slane %v208, 5
      %v712 = vsel %vm691, %v710, %v711
      %v713 = vrot.slane %v209, 5
      %v714 = vrot.slane %v713, 4
      %v715 = vrot.slane %v210, 5
      %v716 = vsel %vm691, %v714, %v715
      %v717 = vrot.slane %v715, 4
      %v718 = vrot.slane %v211, 5
      %v719 = vsel %vm691, %v717, %v718
      %v720 = vrot.slane %v212, 5
      %v721 = vrot.slane %v720, 4
      %v722 = vrot.slane %v213, 5
      %v723 = vsel %vm691, %v721, %v722
      %v724 = vrot.slane %v722, 4
      %v725 = vrot.slane %v214, 5
      %v726 = vsel %vm691, %v724, %v725
      %v727 = vrot.slane %v215, 5
      %v728 = vrot.slane %v727, 4
      %v729 = vrot.slane %v216, 5
      %v730 = vsel %vm691, %v728, %v729
      %v731 = vrot.slane %v729, 4
      %v732 = vrot.slane %v217, 5
      %v733 = vsel %vm691, %v731, %v732
      %v734 = vrot.slane %v218, 5
      %v735 = vrot.slane %v734, 4
      %v736 = vrot.slane %v219, 5
      %v737 = vsel %vm691, %v735, %v736
      %v738 = vrot.slane %v736, 4
      %v739 = vrot.slane %v220, 5
      %v740 = vsel %vm691, %v738, %v739
      %v741 = vrot.slane %v221, 5
      %v742 = vrot.slane %v741, 4
      %v743 = vrot.slane %v222, 5
      %v744 = vsel %vm691, %v742, %v743
      %v745 = vrot.slane %v743, 4
      %v746 = vrot.slane %v223, 5
      %v747 = vsel %vm691, %v745, %v746
      %v748 = vrot.slane %v224, 5
      %v749 = vrot.slane %v748, 4
      %v750 = vrot.slane %v225, 5
      %v751 = vsel %vm691, %v749, %v750
      %v752 = vrot.slane %v750, 4
      %v753 = vrot.slane %v226, 5
      %v754 = vsel %vm691, %v752, %v753
      %v755 = vrot.slane %v227, 5
      %v756 = vrot.slane %v755, 4
      %v757 = vrot.slane %v228, 5
      %v758 = vsel %vm691, %v756, %v757
      %v759 = vrot.slane %v757, 4
      %v760 = vrot.slane %v229, 5
      %v761 = vsel %vm691, %v759, %v760
      %v762 = vrot.slane %v230, 5
      %v763 = vrot.slane %v762, 4
      %v764 = vrot.slane %v231, 5
      %v765 = vsel %vm691, %v763, %v764
      %v766 = vrot.slane %v764, 4
      %v767 = vrot.slane %v232, 5
      %v768 = vsel %vm691, %v766, %v767
      %v769 = vrot.slane %v233, 5
      %v770 = vrot.slane %v769, 4
      %v771 = vrot.slane %v234, 5
      %v772 = vsel %vm691, %v770, %v771
      %v773 = vrot.slane %v771, 4
      %v774 = vrot.slane %v235, 5
      %v775 = vsel %vm691, %v773, %v774
      %v776 = vrot.slane %v236, 5
      %v777 = vrot.slane %v776, 4
      %v778 = vrot.slane %v237, 5
      %v779 = vsel %vm691, %v777, %v778
      %v780 = vrot.slane %v778, 4
      %v781 = vrot.slane %v238, 5
      %v782 = vsel %vm691, %v780, %v781
      %v783 = vrot.slane %v239, 5
      %v784 = vrot.slane %v783, 4
      %v785 = vrot.slane %v240, 5
      %v786 = vsel %vm691, %v784, %v785
      %v787 = vrot.slane %v785, 4
      %v788 = vrot.slane %v241, 5
      %v789 = vsel %vm691, %v787, %v788
      %v790 = vrot.slane %v242, 5
      %v791 = vrot.slane %v790, 4
      %v792 = vrot.slane %v243, 5
      %v793 = vsel %vm691, %v791, %v792
      %v794 = vrot.slane %v792, 4
      %v795 = vrot.slane %v244, 5
      %v796 = vsel %vm691, %v794, %v795
      %v797 = vrot.slane %v245, 5
      %v798 = vrot.slane %v797, 4
      %v799 = vrot.slane %v246, 5
      %v800 = vsel %vm691, %v798, %v799
      %v801 = vrot.slane %v799, 4
      %v802 = vrot.slane %v247, 5
      %v803 = vsel %vm691, %v801, %v802
      %v805 = vshrl.u32 %v248, 16
      %v807 = vrot.slane %v805, 4
      %v808 = vshll.u32 %v248, 16
      %v810 = vrot.slane %v808, 5
      %v811 = vor.u32 %v807, %v810
      %v812 = vrot.slane %v811, 4
      %v814 = vshll.u32 %v249, 16
      %v816 = vrot.slane %v814, 5
      %v817 = vsel %vm256, %v812, %v816
      %v818 = vshrl.u32 %v249, 16
      %v820 = vrot.slane %v818, 4
      %v821 = vor.u32 %v820, %v816
      %v822 = vrot.slane %v821, 4
      %v824 = vshll.u32 %v250, 16
      %v826 = vrot.slane %v824, 5
      %v827 = vsel %vm256, %v822, %v826
      %v831 = vrot.slane %v248, 5
      %v832 = vrot.slane %v831, 4
      %v833 = vrot.slane %v249, 5
      %v834 = vsel %vm691, %v832, %v833
      %v835 = vrot.slane %v833, 4
      %v836 = vrot.slane %v250, 5
      %v837 = vsel %vm691, %v835, %v836
      %v839 = vshrl.u32 %v251, 16
      %v841 = vrot.slane %v839, 4
      %v842 = vshll.u32 %v251, 16
      %v844 = vrot.slane %v842, 5
      %v845 = vor.u32 %v841, %v844
      %v846 = vrot.slane %v845, 4
      %v848 = vshll.u32 %v252, 16
      %v850 = vrot.slane %v848, 5
      %v851 = vsel %vm256, %v846, %v850
      %v852 = vshrl.u32 %v252, 16
      %v854 = vrot.slane %v852, 4
      %v855 = vor.u32 %v854, %v850
      %v856 = vrot.slane %v855, 4
      %v858 = vshll.u32 %v253, 16
      %v860 = vrot.slane %v858, 5
      %v861 = vsel %vm256, %v856, %v860
      %v865 = vrot.slane %v251, 5
      %v866 = vrot.slane %v865, 4
      %v867 = vrot.slane %v252, 5
      %v868 = vsel %vm691, %v866, %v867
      %v869 = vrot.slane %v867, 4
      %v870 = vrot.slane %v253, 5
      %v871 = vsel %vm691, %v869, %v870
      %v872 = vunpack.c.l.b16 %v200
      %v873 = vunpack.c.l.b16 %v201
      %v874 = vunpack.c.l.b16 %v203
      %v875 = vunpack.c.l.b16 %v204
      %v876 = vunpack.c.l.b16 %v206
      %v877 = vunpack.c.l.b16 %v207
      %v878 = vunpack.c.l.b16 %v209
      %v879 = vunpack.c.l.b16 %v210
      %v880 = vunpack.c.l.b16 %v212
      %v881 = vunpack.c.l.b16 %v213
      %v882 = vunpack.c.l.b16 %v215
      %v883 = vunpack.c.l.b16 %v216
      %v884 = vunpack.c.l.b16 %v218
      %v885 = vunpack.c.l.b16 %v219
      %v886 = vunpack.c.l.b16 %v221
      %v887 = vunpack.c.l.b16 %v222
      %v888 = vunpack.c.l.b16 %v224
      %v889 = vunpack.c.l.b16 %v225
      %v890 = vunpack.c.l.b16 %v227
      %v891 = vunpack.c.l.b16 %v228
      %v892 = vunpack.c.l.b16 %v230
      %v893 = vunpack.c.l.b16 %v231
      %v894 = vunpack.c.l.b16 %v233
      %v895 = vunpack.c.l.b16 %v234
      %v896 = vunpack.c.l.b16 %v236
      %v897 = vunpack.c.l.b16 %v237
      %v898 = vunpack.c.l.b16 %v239
      %v899 = vunpack.c.l.b16 %v240
      %v900 = vunpack.c.l.b16 %v242
      %v901 = vunpack.c.l.b16 %v243
      %v902 = vunpack.c.l.b16 %v245
      %v903 = vunpack.c.l.b16 %v246
      %v904 = vpack.c.b16 %v873, %v872
      %v905 = vpack.c.b16 %v875, %v874
      %v906 = vpack.c.b16 %v877, %v876
      %v907 = vpack.c.b16 %v879, %v878
      %v908 = vpack.c.b16 %v881, %v880
      %v909 = vpack.c.b16 %v883, %v882
      %v910 = vpack.c.b16 %v885, %v884
      %v911 = vpack.c.b16 %v887, %v886
      %v912 = vpack.c.b16 %v889, %v888
      %v913 = vpack.c.b16 %v891, %v890
      %v914 = vpack.c.b16 %v893, %v892
      %v915 = vpack.c.b16 %v895, %v894
      %v916 = vpack.c.b16 %v897, %v896
      %v917 = vpack.c.b16 %v899, %v898
      %v918 = vpack.c.b16 %v901, %v900
      %v919 = vpack.c.b16 %v903, %v902
      %v920 = vunpack.c.l.b16 %v270
      %v921 = vunpack.c.l.b16 %v280
      %v922 = vunpack.c.l.b16 %v294
      %v923 = vunpack.c.l.b16 %v304
      %v924 = vunpack.c.l.b16 %v318
      %v925 = vunpack.c.l.b16 %v328
      %v926 = vunpack.c.l.b16 %v342
      %v927 = vunpack.c.l.b16 %v352
      %v928 = vunpack.c.l.b16 %v366
      %v929 = vunpack.c.l.b16 %v376
      %v930 = vunpack.c.l.b16 %v390
      %v931 = vunpack.c.l.b16 %v400
      %v932 = vunpack.c.l.b16 %v414
      %v933 = vunpack.c.l.b16 %v424
      %v934 = vunpack.c.l.b16 %v438
      %v935 = vunpack.c.l.b16 %v448
      %v936 = vunpack.c.l.b16 %v462
      %v937 = vunpack.c.l.b16 %v472
      %v938 = vunpack.c.l.b16 %v486
      %v939 = vunpack.c.l.b16 %v496
      %v940 = vunpack.c.l.b16 %v510
      %v941 = vunpack.c.l.b16 %v520
      %v942 = vunpack.c.l.b16 %v534
      %v943 = vunpack.c.l.b16 %v544
      %v944 = vunpack.c.l.b16 %v558
      %v945 = vunpack.c.l.b16 %v568
      %v946 = vunpack.c.l.b16 %v582
      %v947 = vunpack.c.l.b16 %v592
      %v948 = vunpack.c.l.b16 %v606
      %v949 = vunpack.c.l.b16 %v616
      %v950 = vunpack.c.l.b16 %v630
      %v951 = vunpack.c.l.b16 %v640
      %v952 = vpack.c.b16 %v921, %v920
      %v953 = vpack.c.b16 %v923, %v922
      %v954 = vpack.c.b16 %v925, %v924
      %v955 = vpack.c.b16 %v927, %v926
      %v956 = vpack.c.b16 %v929, %v928
      %v957 = vpack.c.b16 %v931, %v930
      %v958 = vpack.c.b16 %v933, %v932
      %v959 = vpack.c.b16 %v935, %v934
      %v960 = vpack.c.b16 %v937, %v936
      %v961 = vpack.c.b16 %v939, %v938
      %v962 = vpack.c.b16 %v941, %v940
      %v963 = vpack.c.b16 %v943, %v942
      %v964 = vpack.c.b16 %v945, %v944
      %v965 = vpack.c.b16 %v947, %v946
      %v966 = vpack.c.b16 %v949, %v948
      %v967 = vpack.c.b16 %v951, %v950
      %968 = vrot.lane.b32.xlu0 %v952, 4
      %v969 = vpop.permute.xlu0 %968
      %970 = vrot.lane.b32.xlu0 %v953, 4
      %v971 = vpop.permute.xlu0 %970
      %972 = vrot.lane.b32.xlu0 %v954, 4
      %v973 = vpop.permute.xlu0 %972
      %974 = vrot.lane.b32.xlu0 %v955, 4
      %v975 = vpop.permute.xlu0 %974
      %976 = vrot.lane.b32.xlu0 %v956, 4
      %v977 = vpop.permute.xlu0 %976
      %978 = vrot.lane.b32.xlu0 %v957, 4
      %v979 = vpop.permute.xlu0 %978
      %980 = vrot.lane.b32.xlu0 %v958, 4
      %v981 = vpop.permute.xlu0 %980
      %982 = vrot.lane.b32.xlu0 %v959, 4
      %v983 = vpop.permute.xlu0 %982
      %984 = vrot.lane.b32.xlu0 %v960, 4
      %v985 = vpop.permute.xlu0 %984
      %986 = vrot.lane.b32.xlu0 %v961, 4
      %v987 = vpop.permute.xlu0 %986
      %988 = vrot.lane.b32.xlu0 %v962, 4
      %v989 = vpop.permute.xlu0 %988
      %990 = vrot.lane.b32.xlu0 %v963, 4
      %v991 = vpop.permute.xlu0 %990
      %992 = vrot.lane.b32.xlu0 %v964, 4
      %v993 = vpop.permute.xlu0 %992
      %994 = vrot.lane.b32.xlu0 %v965, 4
      %v995 = vpop.permute.xlu0 %994
      %996 = vrot.lane.b32.xlu0 %v966, 4
      %v997 = vpop.permute.xlu0 %996
      %998 = vrot.lane.b32.xlu0 %v967, 4
      %v999 = vpop.permute.xlu0 %998
      %v1000 = vunpack.c.l.b16 %v695
      %v1001 = vunpack.c.l.b16 %v698
      %v1002 = vunpack.c.l.b16 %v702
      %v1003 = vunpack.c.l.b16 %v705
      %v1004 = vunpack.c.l.b16 %v709
      %v1005 = vunpack.c.l.b16 %v712
      %v1006 = vunpack.c.l.b16 %v716
      %v1007 = vunpack.c.l.b16 %v719
      %v1008 = vunpack.c.l.b16 %v723
      %v1009 = vunpack.c.l.b16 %v726
      %v1010 = vunpack.c.l.b16 %v730
      %v1011 = vunpack.c.l.b16 %v733
      %v1012 = vunpack.c.l.b16 %v737
      %v1013 = vunpack.c.l.b16 %v740
      %v1014 = vunpack.c.l.b16 %v744
      %v1015 = vunpack.c.l.b16 %v747
      %v1016 = vunpack.c.l.b16 %v751
      %v1017 = vunpack.c.l.b16 %v754
      %v1018 = vunpack.c.l.b16 %v758
      %v1019 = vunpack.c.l.b16 %v761
      %v1020 = vunpack.c.l.b16 %v765
      %v1021 = vunpack.c.l.b16 %v768
      %v1022 = vunpack.c.l.b16 %v772
      %v1023 = vunpack.c.l.b16 %v775
      %v1024 = vunpack.c.l.b16 %v779
      %v1025 = vunpack.c.l.b16 %v782
      %v1026 = vunpack.c.l.b16 %v786
      %v1027 = vunpack.c.l.b16 %v789
      %v1028 = vunpack.c.l.b16 %v793
      %v1029 = vunpack.c.l.b16 %v796
      %v1030 = vunpack.c.l.b16 %v800
      %v1031 = vunpack.c.l.b16 %v803
      %v1032 = vpack.c.b16 %v1001, %v1000
      %v1033 = vpack.c.b16 %v1003, %v1002
      %v1034 = vpack.c.b16 %v1005, %v1004
      %v1035 = vpack.c.b16 %v1007, %v1006
      %v1036 = vpack.c.b16 %v1009, %v1008
      %v1037 = vpack.c.b16 %v1011, %v1010
      %v1038 = vpack.c.b16 %v1013, %v1012
      %v1039 = vpack.c.b16 %v1015, %v1014
      %v1040 = vpack.c.b16 %v1017, %v1016
      %v1041 = vpack.c.b16 %v1019, %v1018
      %v1042 = vpack.c.b16 %v1021, %v1020
      %v1043 = vpack.c.b16 %v1023, %v1022
      %v1044 = vpack.c.b16 %v1025, %v1024
      %v1045 = vpack.c.b16 %v1027, %v1026
      %v1046 = vpack.c.b16 %v1029, %v1028
      %v1047 = vpack.c.b16 %v1031, %v1030
      %1048 = vrot.lane.b32.xlu0 %v1032, 8
      %v1049 = vpop.permute.xlu0 %1048
      %1050 = vrot.lane.b32.xlu0 %v1033, 8
      %v1051 = vpop.permute.xlu0 %1050
      %1052 = vrot.lane.b32.xlu0 %v1034, 8
      %v1053 = vpop.permute.xlu0 %1052
      %1054 = vrot.lane.b32.xlu0 %v1035, 8
      %v1055 = vpop.permute.xlu0 %1054
      %1056 = vrot.lane.b32.xlu0 %v1036, 8
      %v1057 = vpop.permute.xlu0 %1056
      %1058 = vrot.lane.b32.xlu0 %v1037, 8
      %v1059 = vpop.permute.xlu0 %1058
      %1060 = vrot.lane.b32.xlu0 %v1038, 8
      %v1061 = vpop.permute.xlu0 %1060
      %1062 = vrot.lane.b32.xlu0 %v1039, 8
      %v1063 = vpop.permute.xlu0 %1062
      %1064 = vrot.lane.b32.xlu0 %v1040, 8
      %v1065 = vpop.permute.xlu0 %1064
      %1066 = vrot.lane.b32.xlu0 %v1041, 8
      %v1067 = vpop.permute.xlu0 %1066
      %1068 = vrot.lane.b32.xlu0 %v1042, 8
      %v1069 = vpop.permute.xlu0 %1068
      %1070 = vrot.lane.b32.xlu0 %v1043, 8
      %v1071 = vpop.permute.xlu0 %1070
      %1072 = vrot.lane.b32.xlu0 %v1044, 8
      %v1073 = vpop.permute.xlu0 %1072
      %1074 = vrot.lane.b32.xlu0 %v1045, 8
      %v1075 = vpop.permute.xlu0 %1074
      %1076 = vrot.lane.b32.xlu0 %v1046, 8
      %v1077 = vpop.permute.xlu0 %1076
      %1078 = vrot.lane.b32.xlu0 %v1047, 8
      %v1079 = vpop.permute.xlu0 %1078
      %v1080 = vunpack.c.l.b16 %v248
      %v1081 = vunpack.c.l.b16 %v249
      %v1082 = vpack.c.b16 %v1081, %v1080
      %1083 = vrot.lane.b32.xlu0 %v905, 12
      %v1084 = vpop.permute.xlu0 %1083
      %1085 = vrot.lane.b32.xlu0 %v906, 12
      %v1086 = vpop.permute.xlu0 %1085
      %1087 = vrot.lane.b32.xlu0 %v907, 12
      %v1088 = vpop.permute.xlu0 %1087
      %1089 = vrot.lane.b32.xlu0 %v908, 12
      %v1090 = vpop.permute.xlu0 %1089
      %1091 = vrot.lane.b32.xlu0 %v909, 12
      %v1092 = vpop.permute.xlu0 %1091
      %1093 = vrot.lane.b32.xlu0 %v910, 12
      %v1094 = vpop.permute.xlu0 %1093
      %1095 = vrot.lane.b32.xlu0 %v911, 12
      %v1096 = vpop.permute.xlu0 %1095
      %1097 = vrot.lane.b32.xlu0 %v912, 12
      %v1098 = vpop.permute.xlu0 %1097
      %1099 = vrot.lane.b32.xlu0 %v913, 12
      %v1100 = vpop.permute.xlu0 %1099
      %1101 = vrot.lane.b32.xlu0 %v914, 12
      %v1102 = vpop.permute.xlu0 %1101
      %1103 = vrot.lane.b32.xlu0 %v915, 12
      %v1104 = vpop.permute.xlu0 %1103
      %1105 = vrot.lane.b32.xlu0 %v916, 12
      %v1106 = vpop.permute.xlu0 %1105
      %1107 = vrot.lane.b32.xlu0 %v917, 12
      %v1108 = vpop.permute.xlu0 %1107
      %1109 = vrot.lane.b32.xlu0 %v918, 12
      %v1110 = vpop.permute.xlu0 %1109
      %1111 = vrot.lane.b32.xlu0 %v919, 12
      %v1112 = vpop.permute.xlu0 %1111
      %1113 = vrot.lane.b32.xlu0 %v1082, 12
      %v1114 = vpop.permute.xlu0 %1113
      %v1115 = vunpack.c.l.b16 %v817
      %v1116 = vunpack.c.l.b16 %v827
      %v1117 = vpack.c.b16 %v1116, %v1115
      %1118 = vrot.lane.b32.xlu0 %v953, 16
      %v1119 = vpop.permute.xlu0 %1118
      %1120 = vrot.lane.b32.xlu0 %v954, 16
      %v1121 = vpop.permute.xlu0 %1120
      %1122 = vrot.lane.b32.xlu0 %v955, 16
      %v1123 = vpop.permute.xlu0 %1122
      %1124 = vrot.lane.b32.xlu0 %v956, 16
      %v1125 = vpop.permute.xlu0 %1124
      %1126 = vrot.lane.b32.xlu0 %v957, 16
      %v1127 = vpop.permute.xlu0 %1126
      %1128 = vrot.lane.b32.xlu0 %v958, 16
      %v1129 = vpop.permute.xlu0 %1128
      %1130 = vrot.lane.b32.xlu0 %v959, 16
      %v1131 = vpop.permute.xlu0 %1130
      %1132 = vrot.lane.b32.xlu0 %v960, 16
      %v1133 = vpop.permute.xlu0 %1132
      %1134 = vrot.lane.b32.xlu0 %v961, 16
      %v1135 = vpop.permute.xlu0 %1134
      %1136 = vrot.lane.b32.xlu0 %v962, 16
      %v1137 = vpop.permute.xlu0 %1136
      %1138 = vrot.lane.b32.xlu0 %v963, 16
      %v1139 = vpop.permute.xlu0 %1138
      %1140 = vrot.lane.b32.xlu0 %v964, 16
      %v1141 = vpop.permute.xlu0 %1140
      %1142 = vrot.lane.b32.xlu0 %v965, 16
      %v1143 = vpop.permute.xlu0 %1142
      %1144 = vrot.lane.b32.xlu0 %v966, 16
      %v1145 = vpop.permute.xlu0 %1144
      %1146 = vrot.lane.b32.xlu0 %v967, 16
      %v1147 = vpop.permute.xlu0 %1146
      %1148 = vrot.lane.b32.xlu0 %v1117, 16
      %v1149 = vpop.permute.xlu0 %1148
      %v1150 = vunpack.c.l.b16 %v834
      %v1151 = vunpack.c.l.b16 %v837
      %v1152 = vpack.c.b16 %v1151, %v1150
      %1153 = vrot.lane.b32.xlu0 %v1033, 20
      %v1154 = vpop.permute.xlu0 %1153
      %1155 = vrot.lane.b32.xlu0 %v1034, 20
      %v1156 = vpop.permute.xlu0 %1155
      %1157 = vrot.lane.b32.xlu0 %v1035, 20
      %v1158 = vpop.permute.xlu0 %1157
      %1159 = vrot.lane.b32.xlu0 %v1036, 20
      %v1160 = vpop.permute.xlu0 %1159
      %1161 = vrot.lane.b32.xlu0 %v1037, 20
      %v1162 = vpop.permute.xlu0 %1161
      %1163 = vrot.lane.b32.xlu0 %v1038, 20
      %v1164 = vpop.permute.xlu0 %1163
      %1165 = vrot.lane.b32.xlu0 %v1039, 20
      %v1166 = vpop.permute.xlu0 %1165
      %1167 = vrot.lane.b32.xlu0 %v1040, 20
      %v1168 = vpop.permute.xlu0 %1167
      %1169 = vrot.lane.b32.xlu0 %v1041, 20
      %v1170 = vpop.permute.xlu0 %1169
      %1171 = vrot.lane.b32.xlu0 %v1042, 20
      %v1172 = vpop.permute.xlu0 %1171
      %1173 = vrot.lane.b32.xlu0 %v1043, 20
      %v1174 = vpop.permute.xlu0 %1173
      %1175 = vrot.lane.b32.xlu0 %v1044, 20
      %v1176 = vpop.permute.xlu0 %1175
      %1177 = vrot.lane.b32.xlu0 %v1045, 20
      %v1178 = vpop.permute.xlu0 %1177
      %1179 = vrot.lane.b32.xlu0 %v1046, 20
      %v1180 = vpop.permute.xlu0 %1179
      %1181 = vrot.lane.b32.xlu0 %v1047, 20
      %v1182 = vpop.permute.xlu0 %1181
      %1183 = vrot.lane.b32.xlu0 %v1152, 20
      %v1184 = vpop.permute.xlu0 %1183
      %v1185 = vunpack.c.l.b16 %v251
      %v1186 = vunpack.c.l.b16 %v252
      %v1187 = vpack.c.b16 %v1186, %v1185
      %1188 = vrot.lane.b32.xlu0 %v906, 24
      %v1189 = vpop.permute.xlu0 %1188
      %1190 = vrot.lane.b32.xlu0 %v907, 24
      %v1191 = vpop.permute.xlu0 %1190
      %1192 = vrot.lane.b32.xlu0 %v908, 24
      %v1193 = vpop.permute.xlu0 %1192
      %1194 = vrot.lane.b32.xlu0 %v909, 24
      %v1195 = vpop.permute.xlu0 %1194
      %1196 = vrot.lane.b32.xlu0 %v910, 24
      %v1197 = vpop.permute.xlu0 %1196
      %1198 = vrot.lane.b32.xlu0 %v911, 24
      %v1199 = vpop.permute.xlu0 %1198
      %1200 = vrot.lane.b32.xlu0 %v912, 24
      %v1201 = vpop.permute.xlu0 %1200
      %1202 = vrot.lane.b32.xlu0 %v913, 24
      %v1203 = vpop.permute.xlu0 %1202
      %1204 = vrot.lane.b32.xlu0 %v914, 24
      %v1205 = vpop.permute.xlu0 %1204
      %1206 = vrot.lane.b32.xlu0 %v915, 24
      %v1207 = vpop.permute.xlu0 %1206
      %1208 = vrot.lane.b32.xlu0 %v916, 24
      %v1209 = vpop.permute.xlu0 %1208
      %1210 = vrot.lane.b32.xlu0 %v917, 24
      %v1211 = vpop.permute.xlu0 %1210
      %1212 = vrot.lane.b32.xlu0 %v918, 24
      %v1213 = vpop.permute.xlu0 %1212
      %1214 = vrot.lane.b32.xlu0 %v919, 24
      %v1215 = vpop.permute.xlu0 %1214
      %1216 = vrot.lane.b32.xlu0 %v1082, 24
      %v1217 = vpop.permute.xlu0 %1216
      %1218 = vrot.lane.b32.xlu0 %v1187, 24
      %v1219 = vpop.permute.xlu0 %1218
      %v1220 = vunpack.c.l.b16 %v851
      %v1221 = vunpack.c.l.b16 %v861
      %v1222 = vpack.c.b16 %v1221, %v1220
      %1223 = vrot.lane.b32.xlu0 %v954, 28
      %v1224 = vpop.permute.xlu0 %1223
      %1225 = vrot.lane.b32.xlu0 %v955, 28
      %v1226 = vpop.permute.xlu0 %1225
      %1227 = vrot.lane.b32.xlu0 %v956, 28
      %v1228 = vpop.permute.xlu0 %1227
      %1229 = vrot.lane.b32.xlu0 %v957, 28
      %v1230 = vpop.permute.xlu0 %1229
      %1231 = vrot.lane.b32.xlu0 %v958, 28
      %v1232 = vpop.permute.xlu0 %1231
      %1233 = vrot.lane.b32.xlu0 %v959, 28
      %v1234 = vpop.permute.xlu0 %1233
      %1235 = vrot.lane.b32.xlu0 %v960, 28
      %v1236 = vpop.permute.xlu0 %1235
      %1237 = vrot.lane.b32.xlu0 %v961, 28
      %v1238 = vpop.permute.xlu0 %1237
      %1239 = vrot.lane.b32.xlu0 %v962, 28
      %v1240 = vpop.permute.xlu0 %1239
      %1241 = vrot.lane.b32.xlu0 %v963, 28
      %v1242 = vpop.permute.xlu0 %1241
      %1243 = vrot.lane.b32.xlu0 %v964, 28
      %v1244 = vpop.permute.xlu0 %1243
      %1245 = vrot.lane.b32.xlu0 %v965, 28
      %v1246 = vpop.permute.xlu0 %1245
      %1247 = vrot.lane.b32.xlu0 %v966, 28
      %v1248 = vpop.permute.xlu0 %1247
      %1249 = vrot.lane.b32.xlu0 %v967, 28
      %v1250 = vpop.permute.xlu0 %1249
      %1251 = vrot.lane.b32.xlu0 %v1117, 28
      %v1252 = vpop.permute.xlu0 %1251
      %1253 = vrot.lane.b32.xlu0 %v1222, 28
      %v1254 = vpop.permute.xlu0 %1253
      %v1255 = vunpack.c.l.b16 %v868
      %v1256 = vunpack.c.l.b16 %v871
      %v1257 = vpack.c.b16 %v1256, %v1255
      %1258 = vrot.lane.b32.xlu0 %v1034, 32
      %v1259 = vpop.permute.xlu0 %1258
      %1260 = vrot.lane.b32.xlu0 %v1035, 32
      %v1261 = vpop.permute.xlu0 %1260
      %1262 = vrot.lane.b32.xlu0 %v1036, 32
      %v1263 = vpop.permute.xlu0 %1262
      %1264 = vrot.lane.b32.xlu0 %v1037, 32
      %v1265 = vpop.permute.xlu0 %1264
      %1266 = vrot.lane.b32.xlu0 %v1038, 32
      %v1267 = vpop.permute.xlu0 %1266
      %1268 = vrot.lane.b32.xlu0 %v1039, 32
      %v1269 = vpop.permute.xlu0 %1268
      %1270 = vrot.lane.b32.xlu0 %v1040, 32
      %v1271 = vpop.permute.xlu0 %1270
      %1272 = vrot.lane.b32.xlu0 %v1041, 32
      %v1273 = vpop.permute.xlu0 %1272
      %1274 = vrot.lane.b32.xlu0 %v1042, 32
      %v1275 = vpop.permute.xlu0 %1274
      %1276 = vrot.lane.b32.xlu0 %v1043, 32
      %v1277 = vpop.permute.xlu0 %1276
      %1278 = vrot.lane.b32.xlu0 %v1044, 32
      %v1279 = vpop.permute.xlu0 %1278
      %1280 = vrot.lane.b32.xlu0 %v1045, 32
      %v1281 = vpop.permute.xlu0 %1280
      %1282 = vrot.lane.b32.xlu0 %v1046, 32
      %v1283 = vpop.permute.xlu0 %1282
      %1284 = vrot.lane.b32.xlu0 %v1047, 32
      %v1285 = vpop.permute.xlu0 %1284
      %1286 = vrot.lane.b32.xlu0 %v1152, 32
      %v1287 = vpop.permute.xlu0 %1286
      %1288 = vrot.lane.b32.xlu0 %v1257, 32
      %v1289 = vpop.permute.xlu0 %1288
      %vm1290 = vcmask 31744
      %v1293 = vsel %vm1290, %v904, %v969
      %v1296 = vsel %vm1290, %v905, %v971
      %v1299 = vsel %vm1290, %v906, %v973
      %v1302 = vsel %vm1290, %v907, %v975
      %v1305 = vsel %vm1290, %v908, %v977
      %v1308 = vsel %vm1290, %v909, %v979
      %v1311 = vsel %vm1290, %v910, %v981
      %v1314 = vsel %vm1290, %v911, %v983
      %v1317 = vsel %vm1290, %v912, %v985
      %v1320 = vsel %vm1290, %v913, %v987
      %v1323 = vsel %vm1290, %v914, %v989
      %v1326 = vsel %vm1290, %v915, %v991
      %v1329 = vsel %vm1290, %v916, %v993
      %v1332 = vsel %vm1290, %v917, %v995
      %v1335 = vsel %vm1290, %v918, %v997
      %v1338 = vsel %vm1290, %v919, %v999
      %vm1339 = vcmask 64512
      %v1341 = vsel %vm1339, %v1293, %v1049
      %v1343 = vsel %vm1339, %v1296, %v1051
      %v1345 = vsel %vm1339, %v1299, %v1053
      %v1347 = vsel %vm1339, %v1302, %v1055
      %v1349 = vsel %vm1339, %v1305, %v1057
      %v1351 = vsel %vm1339, %v1308, %v1059
      %v1353 = vsel %vm1339, %v1311, %v1061
      %v1355 = vsel %vm1339, %v1314, %v1063
      %v1357 = vsel %vm1339, %v1317, %v1065
      %v1359 = vsel %vm1339, %v1320, %v1067
      %v1361 = vsel %vm1339, %v1323, %v1069
      %v1363 = vsel %vm1339, %v1326, %v1071
      %v1365 = vsel %vm1339, %v1329, %v1073
      %v1367 = vsel %vm1339, %v1332, %v1075
      %v1369 = vsel %vm1339, %v1335, %v1077
      %v1371 = vsel %vm1339, %v1338, %v1079
      %vm1372 = vcmask 97280
      %v1374 = vsel %vm1372, %v1341, %v1084
      %v1376 = vsel %vm1372, %v1343, %v1086
      %v1378 = vsel %vm1372, %v1345, %v1088
      %v1380 = vsel %vm1372, %v1347, %v1090
      %v1382 = vsel %vm1372, %v1349, %v1092
      %v1384 = vsel %vm1372, %v1351, %v1094
      %v1386 = vsel %vm1372, %v1353, %v1096
      %v1388 = vsel %vm1372, %v1355, %v1098
      %v1390 = vsel %vm1372, %v1357, %v1100
      %v1392 = vsel %vm1372, %v1359, %v1102
      %v1394 = vsel %vm1372, %v1361, %v1104
      %v1396 = vsel %vm1372, %v1363, %v1106
      %v1398 = vsel %vm1372, %v1365, %v1108
      %v1400 = vsel %vm1372, %v1367, %v1110
      %v1402 = vsel %vm1372, %v1369, %v1112
      %v1404 = vsel %vm1372, %v1371, %v1114
      %vm1405 = vcmask 130048
      %v1407 = vsel %vm1405, %v1374, %v1119
      %v1409 = vsel %vm1405, %v1376, %v1121
      %v1411 = vsel %vm1405, %v1378, %v1123
      %v1413 = vsel %vm1405, %v1380, %v1125
      %v1415 = vsel %vm1405, %v1382, %v1127
      %v1417 = vsel %vm1405, %v1384, %v1129
      %v1419 = vsel %vm1405, %v1386, %v1131
      %v1421 = vsel %vm1405, %v1388, %v1133
      %v1423 = vsel %vm1405, %v1390, %v1135
      %v1425 = vsel %vm1405, %v1392, %v1137
      %v1427 = vsel %vm1405, %v1394, %v1139
      %v1429 = vsel %vm1405, %v1396, %v1141
      %v1431 = vsel %vm1405, %v1398, %v1143
      %v1433 = vsel %vm1405, %v1400, %v1145
      %v1435 = vsel %vm1405, %v1402, %v1147
      %v1437 = vsel %vm1405, %v1404, %v1149
      %vm1438 = vcmask 162816
      %v1440 = vsel %vm1438, %v1407, %v1154
      %v1442 = vsel %vm1438, %v1409, %v1156
      %v1444 = vsel %vm1438, %v1411, %v1158
      %v1446 = vsel %vm1438, %v1413, %v1160
      %v1448 = vsel %vm1438, %v1415, %v1162
      %v1450 = vsel %vm1438, %v1417, %v1164
      %v1452 = vsel %vm1438, %v1419, %v1166
      %v1454 = vsel %vm1438, %v1421, %v1168
      %v1456 = vsel %vm1438, %v1423, %v1170
      %v1458 = vsel %vm1438, %v1425, %v1172
      %v1460 = vsel %vm1438, %v1427, %v1174
      %v1462 = vsel %vm1438, %v1429, %v1176
      %v1464 = vsel %vm1438, %v1431, %v1178
      %v1466 = vsel %vm1438, %v1433, %v1180
      %v1468 = vsel %vm1438, %v1435, %v1182
      %v1470 = vsel %vm1438, %v1437, %v1184
      %vm1471 = vcmask 195584
      %v1473 = vsel %vm1471, %v1440, %v1189
      %v1475 = vsel %vm1471, %v1442, %v1191
      %v1477 = vsel %vm1471, %v1444, %v1193
      %v1479 = vsel %vm1471, %v1446, %v1195
      %v1481 = vsel %vm1471, %v1448, %v1197
      %v1483 = vsel %vm1471, %v1450, %v1199
      %v1485 = vsel %vm1471, %v1452, %v1201
      %v1487 = vsel %vm1471, %v1454, %v1203
      %v1489 = vsel %vm1471, %v1456, %v1205
      %v1491 = vsel %vm1471, %v1458, %v1207
      %v1493 = vsel %vm1471, %v1460, %v1209
      %v1495 = vsel %vm1471, %v1462, %v1211
      %v1497 = vsel %vm1471, %v1464, %v1213
      %v1499 = vsel %vm1471, %v1466, %v1215
      %v1501 = vsel %vm1471, %v1468, %v1217
      %v1503 = vsel %vm1471, %v1470, %v1219
      %vm1504 = vcmask 228352
      %v1506 = vsel %vm1504, %v1473, %v1224
      %v1508 = vsel %vm1504, %v1475, %v1226
      %v1510 = vsel %vm1504, %v1477, %v1228
      %v1512 = vsel %vm1504, %v1479, %v1230
      %v1514 = vsel %vm1504, %v1481, %v1232
      %v1516 = vsel %vm1504, %v1483, %v1234
      %v1518 = vsel %vm1504, %v1485, %v1236
      %v1520 = vsel %vm1504, %v1487, %v1238
      %v1522 = vsel %vm1504, %v1489, %v1240
      %v1524 = vsel %vm1504, %v1491, %v1242
      %v1526 = vsel %vm1504, %v1493, %v1244
      %v1528 = vsel %vm1504, %v1495, %v1246
      %v1530 = vsel %vm1504, %v1497, %v1248
      %v1532 = vsel %vm1504, %v1499, %v1250
      %v1534 = vsel %vm1504, %v1501, %v1252
      %v1536 = vsel %vm1504, %v1503, %v1254
      %vm1537 = vcmask 261120
      %v1539 = vsel %vm1537, %v1506, %v1259
      %v1541 = vsel %vm1537, %v1508, %v1261
      %v1543 = vsel %vm1537, %v1510, %v1263
      %v1545 = vsel %vm1537, %v1512, %v1265
      %v1547 = vsel %vm1537, %v1514, %v1267
      %v1549 = vsel %vm1537, %v1516, %v1269
      %v1551 = vsel %vm1537, %v1518, %v1271
      %v1553 = vsel %vm1537, %v1520, %v1273
      %v1555 = vsel %vm1537, %v1522, %v1275
      %v1557 = vsel %vm1537, %v1524, %v1277
      %v1559 = vsel %vm1537, %v1526, %v1279
      %v1561 = vsel %vm1537, %v1528, %v1281
      %v1563 = vsel %vm1537, %v1530, %v1283
      %v1565 = vsel %vm1537, %v1532, %v1285
      %v1567 = vsel %vm1537, %v1534, %v1287
      %v1569 = vsel %vm1537, %v1536, %v1289
      %v1570 = vld [vmem:[%s1] sm:$0xf]
      %v1571 = vld [vmem:[%s1 + $0x4] sm:$0xf]
      %v1572 = vld [vmem:[%s1 + $0x8] sm:$0xf]
      %v1573 = vld [vmem:[%s1 + $0xc] sm:$0xf]
      %v1574 = vld [vmem:[%s1 + $0x10] sm:$0x3]
      %v1580 = vunpack.c.l.b16 %v1570
      %v1581 = vunpack.c.l.b16 %v1571
      %v1582 = vunpack.c.l.b16 %v1572
      %v1583 = vunpack.c.l.b16 %v1573
      %v1584 = vunpack.c.l.b16 %v1574
      %v1585 = vpack.c.b16 %v1581, %v1580
      %v1586 = vpack.c.b16 %v1583, %v1582
      %v1587 = vpack.c.b16 %v1584, %v1584
      %vm1590 = vcmask 293888
      %v1591 = vsel %vm1590, %v1539, 0
      %v1593 = vsel %vm1590, %v1541, 0
      %v1595 = vsel %vm1590, %v1543, 0
      %v1597 = vsel %vm1590, %v1545, 0
      %v1599 = vsel %vm1590, %v1547, 0
      %v1601 = vsel %vm1590, %v1549, 0
      %v1603 = vsel %vm1590, %v1551, 0
      %v1605 = vsel %vm1590, %v1553, 0
      %v1607 = vsel %vm1590, %v1555, 0
      %v1609 = vsel %vm1590, %v1557, 0
      %v1611 = vsel %vm1590, %v1559, 0
      %v1613 = vsel %vm1590, %v1561, 0
      %v1615 = vsel %vm1590, %v1563, 0
      %v1617 = vsel %vm1590, %v1565, 0
      %v1619 = vsel %vm1590, %v1567, 0
      %v1621 = vsel %vm1590, %v1569, 0
      %vm1623 = vcmask 1041408
      %v1625 = vsel %vm1623, %v1587, 0
      %1627 = vmatprep.subr.bf16.mxu0 0
      %1628 = vmatpush1.bf16.msra.mxu0 %v1585
      %1629 = vmatprep.subr.bf16.mxu0 0
      %1630 = vmatpush1.bf16.msra.mxu0 %v1586
      %1631 = vmatprep.subr.bf16.mxu0 0
      %1632 = vmatpush1.bf16.msra.mxu0 %v1625
      %1633 = vmatprep.subr.bf16.mxu0 0
      %1634 = vmatpush1.bf16.msra.mxu0 0
      %1635 = vmatprep.subr.bf16.mxu0 0
      %1636 = vmatpush1.bf16.msra.mxu0 0
      %1637 = vmatprep.subr.bf16.mxu0 0
      %1638 = vmatpush1.bf16.msra.mxu0 0
      %1639 = vmatprep.subr.bf16.mxu0 0
      %1640 = vmatpush1.bf16.msra.mxu0 0
      %1641 = vmatprep.subr.bf16.mxu0 0
      %1642 = vmatpush1.bf16.msra.mxu0 0
      %1643 = vmatprep.subr.bf16.mxu0 0
      %1644 = vmatpush1.bf16.msra.mxu0 0
      %1645 = vmatprep.subr.bf16.mxu0 0
      %1646 = vmatpush1.bf16.msra.mxu0 0
      %1647 = vmatprep.subr.bf16.mxu0 0
      %1648 = vmatpush1.bf16.msra.mxu0 0
      %1649 = vmatprep.subr.bf16.mxu0 0
      %1650 = vmatpush1.bf16.msra.mxu0 0
      %1651 = vmatprep.subr.bf16.mxu0 0
      %1652 = vmatpush1.bf16.msra.mxu0 0
      %1653 = vmatprep.subr.bf16.mxu0 0
      %1654 = vmatpush1.bf16.msra.mxu0 0
      %1655 = vmatprep.subr.bf16.mxu0 0
      %1656 = vmatpush1.bf16.msra.mxu0 0
      %1657 = vmatprep.subr.bf16.mxu0 0
      %1658 = vmatpush1.bf16.msra.mxu0 0
      %1659 = vmatprep.mubr.bf16.mxu0 0
      %1660 = vmatmul.mubr.bf16.gmra.mrb[0].mxu0 %v1591
      %v1661 = vpop.f32.mrb[0].mxu0
      %v1662 = vadd.f32 0.0, %v1661
      %v1663 = vpop.f32.mrb[0].mxu0
      %v1664 = vpop.f32.mrb[0].mxu0
      %v1665 = vadd.f32 0.0, %v1664
      %v1666 = vpop.f32.mrb[0].mxu0
      %1667 = vmatprep.mubr.bf16.mxu0 0
      %1668 = vmatmul.mubr.bf16.gmra.mrb[0].mxu0 %v1593
      %v1669 = vpop.f32.mrb[0].mxu0
      %v1670 = vadd.f32 0.0, %v1669
      %v1671 = vpop.f32.mrb[0].mxu0
      %v1672 = vpop.f32.mrb[0].mxu0
      %v1673 = vadd.f32 0.0, %v1672
      %v1674 = vpop.f32.mrb[0].mxu0
      %1675 = vmatprep.mubr.bf16.mxu0 0
      %1676 = vmatmul.mubr.bf16.gmra.mrb[0].mxu0 %v1595
      %v1677 = vpop.f32.mrb[0].mxu0
      %v1678 = vadd.f32 0.0, %v1677
      %v1679 = vpop.f32.mrb[0].mxu0
      %v1680 = vpop.f32.mrb[0].mxu0
      %v1681 = vadd.f32 0.0, %v1680
      %v1682 = vpop.f32.mrb[0].mxu0
      %1683 = vmatprep.mubr.bf16.mxu0 0
      %1684 = vmatmul.mubr.bf16.gmra.mrb[0].mxu0 %v1597
      %v1685 = vpop.f32.mrb[0].mxu0
      %v1686 = vadd.f32 0.0, %v1685
      %v1687 = vpop.f32.mrb[0].mxu0
      %v1688 = vpop.f32.mrb[0].mxu0
      %v1689 = vadd.f32 0.0, %v1688
      %v1690 = vpop.f32.mrb[0].mxu0
      %1691 = vmatprep.mubr.bf16.mxu0 0
      %1692 = vmatmul.mubr.bf16.gmra.mrb[0].mxu0 %v1599
      %v1693 = vpop.f32.mrb[0].mxu0
      %v1694 = vadd.f32 0.0, %v1693
      %v1695 = vpop.f32.mrb[0].mxu0
      %v1696 = vpop.f32.mrb[0].mxu0
      %v1697 = vadd.f32 0.0, %v1696
      %v1698 = vpop.f32.mrb[0].mxu0
      %1699 = vmatprep.mubr.bf16.mxu0 0
      %1700 = vmatmul.mubr.bf16.gmra.mrb[0].mxu0 %v1601
      %v1701 = vpop.f32.mrb[0].mxu0
      %v1702 = vadd.f32 0.0, %v1701
      %v1703 = vpop.f32.mrb[0].mxu0
      %v1704 = vpop.f32.mrb[0].mxu0
      %v1705 = vadd.f32 0.0, %v1704
      %v1706 = vpop.f32.mrb[0].mxu0
      %1707 = vmatprep.mubr.bf16.mxu0 0
      %1708 = vmatmul.mubr.bf16.gmra.mrb[0].mxu0 %v1603
      %v1709 = vpop.f32.mrb[0].mxu0
      %v1710 = vadd.f32 0.0, %v1709
      %v1711 = vpop.f32.mrb[0].mxu0
      %v1712 = vpop.f32.mrb[0].mxu0
      %v1713 = vadd.f32 0.0, %v1712
      %v1714 = vpop.f32.mrb[0].mxu0
      %1715 = vmatprep.mubr.bf16.mxu0 0
      %1716 = vmatmul.mubr.bf16.gmra.mrb[0].mxu0 %v1605
      %v1717 = vpop.f32.mrb[0].mxu0
      %v1718 = vadd.f32 0.0, %v1717
      %v1719 = vpop.f32.mrb[0].mxu0
      %v1720 = vpop.f32.mrb[0].mxu0
      %v1721 = vadd.f32 0.0, %v1720
      %v1722 = vpop.f32.mrb[0].mxu0
      %1723 = vmatprep.mubr.bf16.mxu0 0
      %1724 = vmatmul.mubr.bf16.gmra.mrb[0].mxu0 %v1607
      %v1725 = vpop.f32.mrb[0].mxu0
      %v1726 = vadd.f32 0.0, %v1725
      %v1727 = vpop.f32.mrb[0].mxu0
      %v1728 = vpop.f32.mrb[0].mxu0
      %v1729 = vadd.f32 0.0, %v1728
      %v1730 = vpop.f32.mrb[0].mxu0
      %1731 = vmatprep.mubr.bf16.mxu0 0
      %1732 = vmatmul.mubr.bf16.gmra.mrb[0].mxu0 %v1609
      %v1733 = vpop.f32.mrb[0].mxu0
      %v1734 = vadd.f32 0.0, %v1733
      %v1735 = vpop.f32.mrb[0].mxu0
      %v1736 = vpop.f32.mrb[0].mxu0
      %v1737 = vadd.f32 0.0, %v1736
      %v1738 = vpop.f32.mrb[0].mxu0
      %1739 = vmatprep.mubr.bf16.mxu0 0
      %1740 = vmatmul.mubr.bf16.gmra.mrb[0].mxu0 %v1611
      %v1741 = vpop.f32.mrb[0].mxu0
      %v1742 = vadd.f32 0.0, %v1741
      %v1743 = vpop.f32.mrb[0].mxu0
      %v1744 = vpop.f32.mrb[0].mxu0
      %v1745 = vadd.f32 0.0, %v1744
      %v1746 = vpop.f32.mrb[0].mxu0
      %1747 = vmatprep.mubr.bf16.mxu0 0
      %1748 = vmatmul.mubr.bf16.gmra.mrb[0].mxu0 %v1613
      %v1749 = vpop.f32.mrb[0].mxu0
      %v1750 = vadd.f32 0.0, %v1749
      %v1751 = vpop.f32.mrb[0].mxu0
      %v1752 = vpop.f32.mrb[0].mxu0
      %v1753 = vadd.f32 0.0, %v1752
      %v1754 = vpop.f32.mrb[0].mxu0
      %1755 = vmatprep.mubr.bf16.mxu0 0
      %1756 = vmatmul.mubr.bf16.gmra.mrb[0].mxu0 %v1615
      %v1757 = vpop.f32.mrb[0].mxu0
      %v1758 = vadd.f32 0.0, %v1757
      %v1759 = vpop.f32.mrb[0].mxu0
      %v1760 = vpop.f32.mrb[0].mxu0
      %v1761 = vadd.f32 0.0, %v1760
      %v1762 = vpop.f32.mrb[0].mxu0
      %1763 = vmatprep.mubr.bf16.mxu0 0
      %1764 = vmatmul.mubr.bf16.gmra.mrb[0].mxu0 %v1617
      %v1765 = vpop.f32.mrb[0].mxu0
      %v1766 = vadd.f32 0.0, %v1765
      %v1767 = vpop.f32.mrb[0].mxu0
      %v1768 = vpop.f32.mrb[0].mxu0
      %v1769 = vadd.f32 0.0, %v1768
      %v1770 = vpop.f32.mrb[0].mxu0
      %1771 = vmatprep.mubr.bf16.mxu0 0
      %1772 = vmatmul.mubr.bf16.gmra.mrb[0].mxu0 %v1619
      %v1773 = vpop.f32.mrb[0].mxu0
      %v1774 = vadd.f32 0.0, %v1773
      %v1775 = vpop.f32.mrb[0].mxu0
      %v1776 = vpop.f32.mrb[0].mxu0
      %v1777 = vadd.f32 0.0, %v1776
      %v1778 = vpop.f32.mrb[0].mxu0
      %1779 = vmatprep.mubr.bf16.mxu0 0
      %1780 = vmatmul.mubr.bf16.gmra.mrb[0].mxu0 %v1621
      %v1781 = vpop.f32.mrb[0].mxu0
      %v1782 = vadd.f32 0.0, %v1781
      %v1783 = vpop.f32.mrb[0].mxu0
      %v1784 = vpop.f32.mrb[0].mxu0
      %v1785 = vadd.f32 0.0, %v1784
      %v1786 = vpop.f32.mrb[0].mxu0
      %1787 = vdwg.mxu0
      %v1788 = vld [vmem:[%s2] sm:$0x1]
      %v1790 = vlaneseq
      %v1791 = vshrl.u32 %v1790, 7
      %v1792 = vsub.s32 0, %v1791
      %v1793 = vrot.slane %v1788, %v1792
      %v1795 = vmul.f32 %v1662, %v1793
      %v1796 = vmul.f32 %v1665, %v1793
      %v1797 = vmul.f32 %v1670, %v1793
      %v1798 = vmul.f32 %v1673, %v1793
      %v1799 = vmul.f32 %v1678, %v1793
      %v1800 = vmul.f32 %v1681, %v1793
      %v1801 = vmul.f32 %v1686, %v1793
      %v1802 = vmul.f32 %v1689, %v1793
      %v1803 = vmul.f32 %v1694, %v1793
      %v1804 = vmul.f32 %v1697, %v1793
      %v1805 = vmul.f32 %v1702, %v1793
      %v1806 = vmul.f32 %v1705, %v1793
      %v1807 = vmul.f32 %v1710, %v1793
      %v1808 = vmul.f32 %v1713, %v1793
      %v1809 = vmul.f32 %v1718, %v1793
      %v1810 = vmul.f32 %v1721, %v1793
      %v1811 = vmul.f32 %v1726, %v1793
      %v1812 = vmul.f32 %v1729, %v1793
      %v1813 = vmul.f32 %v1734, %v1793
      %v1814 = vmul.f32 %v1737, %v1793
      %v1815 = vmul.f32 %v1742, %v1793
      %v1816 = vmul.f32 %v1745, %v1793
      %v1817 = vmul.f32 %v1750, %v1793
      %v1818 = vmul.f32 %v1753, %v1793
      %v1819 = vmul.f32 %v1758, %v1793
      %v1820 = vmul.f32 %v1761, %v1793
      %v1821 = vmul.f32 %v1766, %v1793
      %v1822 = vmul.f32 %v1769, %v1793
      %v1823 = vmul.f32 %v1774, %v1793
      %v1824 = vmul.f32 %v1777, %v1793
      %v1825 = vmul.f32 %v1782, %v1793
      %v1826 = vmul.f32 %v1785, %v1793
      %v1827 = vld [vmem:[%s3] sm:$0x1]
      %v1829 = vlaneseq
      %v1830 = vshrl.u32 %v1829, 7
      %v1831 = vsub.s32 0, %v1830
      %v1832 = vrot.slane %v1827, %v1831
      %v1834 = vadd.f32 %v1795, %v1832
      %v1835 = vadd.f32 %v1796, %v1832
      %v1836 = vadd.f32 %v1797, %v1832
      %v1837 = vadd.f32 %v1798, %v1832
      %v1838 = vadd.f32 %v1799, %v1832
      %v1839 = vadd.f32 %v1800, %v1832
      %v1840 = vadd.f32 %v1801, %v1832
      %v1841 = vadd.f32 %v1802, %v1832
      %v1842 = vadd.f32 %v1803, %v1832
      %v1843 = vadd.f32 %v1804, %v1832
      %v1844 = vadd.f32 %v1805, %v1832
      %v1845 = vadd.f32 %v1806, %v1832
      %v1846 = vadd.f32 %v1807, %v1832
      %v1847 = vadd.f32 %v1808, %v1832
      %v1848 = vadd.f32 %v1809, %v1832
      %v1849 = vadd.f32 %v1810, %v1832
      %v1850 = vadd.f32 %v1811, %v1832
      %v1851 = vadd.f32 %v1812, %v1832
      %v1852 = vadd.f32 %v1813, %v1832
      %v1853 = vadd.f32 %v1814, %v1832
      %v1854 = vadd.f32 %v1815, %v1832
      %v1855 = vadd.f32 %v1816, %v1832
      %v1856 = vadd.f32 %v1817, %v1832
      %v1857 = vadd.f32 %v1818, %v1832
      %v1858 = vadd.f32 %v1819, %v1832
      %v1859 = vadd.f32 %v1820, %v1832
      %v1860 = vadd.f32 %v1821, %v1832
      %v1861 = vadd.f32 %v1822, %v1832
      %v1862 = vadd.f32 %v1823, %v1832
      %v1863 = vadd.f32 %v1824, %v1832
      %v1864 = vadd.f32 %v1825, %v1832
      %v1865 = vadd.f32 %v1826, %v1832
      %v1866 = vmax.f32 %v1834, 0.0
      %v1867 = vmax.f32 %v1835, 0.0
      %v1868 = vmax.f32 %v1836, 0.0
      %v1869 = vmax.f32 %v1837, 0.0
      %v1870 = vmax.f32 %v1838, 0.0
      %v1871 = vmax.f32 %v1839, 0.0
      %v1872 = vmax.f32 %v1840, 0.0
      %v1873 = vmax.f32 %v1841, 0.0
      %v1874 = vmax.f32 %v1842, 0.0
      %v1875 = vmax.f32 %v1843, 0.0
      %v1876 = vmax.f32 %v1844, 0.0
      %v1877 = vmax.f32 %v1845, 0.0
      %v1878 = vmax.f32 %v1846, 0.0
      %v1879 = vmax.f32 %v1847, 0.0
      %v1880 = vmax.f32 %v1848, 0.0
      %v1881 = vmax.f32 %v1849, 0.0
      %v1882 = vmax.f32 %v1850, 0.0
      %v1883 = vmax.f32 %v1851, 0.0
      %v1884 = vmax.f32 %v1852, 0.0
      %v1885 = vmax.f32 %v1853, 0.0
      %v1886 = vmax.f32 %v1854, 0.0
      %v1887 = vmax.f32 %v1855, 0.0
      %v1888 = vmax.f32 %v1856, 0.0
      %v1889 = vmax.f32 %v1857, 0.0
      %v1890 = vmax.f32 %v1858, 0.0
      %v1891 = vmax.f32 %v1859, 0.0
      %v1892 = vmax.f32 %v1860, 0.0
      %v1893 = vmax.f32 %v1861, 0.0
      %v1894 = vmax.f32 %v1862, 0.0
      %v1895 = vmax.f32 %v1863, 0.0
      %v1896 = vmax.f32 %v1864, 0.0
      %v1897 = vmax.f32 %v1865, 0.0
      %1898 = vst [vmem:[%s197] sm:$0xff] %v1866
      %1899 = vst [vmem:[%s197 + $0x8] sm:$0xff] %v1867
      %1900 = vst [vmem:[%s197 + $0x10] sm:$0xff] %v1868
      %1901 = vst [vmem:[%s197 + $0x18] sm:$0xff] %v1869
      %1902 = vst [vmem:[%s197 + $0x20] sm:$0xff] %v1870
      %1903 = vst [vmem:[%s197 + $0x28] sm:$0xff] %v1871
      %1904 = vst [vmem:[%s197 + $0x30] sm:$0xff] %v1872
      %1905 = vst [vmem:[%s197 + $0x38] sm:$0xff] %v1873
      %1906 = vst [vmem:[%s197 + $0x40] sm:$0xff] %v1874
      %1907 = vst [vmem:[%s197 + $0x48] sm:$0xff] %v1875
      %1908 = vst [vmem:[%s197 + $0x50] sm:$0xff] %v1876
      %1909 = vst [vmem:[%s197 + $0x58] sm:$0xff] %v1877
      %1910 = vst [vmem:[%s197 + $0x60] sm:$0xff] %v1878
      %1911 = vst [vmem:[%s197 + $0x68] sm:$0xff] %v1879
      %1912 = vst [vmem:[%s197 + $0x70] sm:$0xff] %v1880
      %1913 = vst [vmem:[%s197 + $0x78] sm:$0xff] %v1881
      %1914 = vst [vmem:[%s197 + $0x80] sm:$0xff] %v1882
      %1915 = vst [vmem:[%s197 + $0x88] sm:$0xff] %v1883
      %1916 = vst [vmem:[%s197 + $0x90] sm:$0xff] %v1884
      %1917 = vst [vmem:[%s197 + $0x98] sm:$0xff] %v1885
      %1918 = vst [vmem:[%s197 + $0xa0] sm:$0xff] %v1886
      %1919 = vst [vmem:[%s197 + $0xa8] sm:$0xff] %v1887
      %1920 = vst [vmem:[%s197 + $0xb0] sm:$0xff] %v1888
      %1921 = vst [vmem:[%s197 + $0xb8] sm:$0xff] %v1889
      %1922 = vst [vmem:[%s197 + $0xc0] sm:$0xff] %v1890
      %1923 = vst [vmem:[%s197 + $0xc8] sm:$0xff] %v1891
      %1924 = vst [vmem:[%s197 + $0xd0] sm:$0xff] %v1892
      %1925 = vst [vmem:[%s197 + $0xd8] sm:$0xff] %v1893
      %1926 = vst [vmem:[%s197 + $0xe0] sm:$0xff] %v1894
      %1927 = vst [vmem:[%s197 + $0xe8] sm:$0xff] %v1895
      %1928 = vst [vmem:[%s197 + $0xf0] sm:$0xff] %v1896
      %1929 = vst [vmem:[%s197 + $0xf8] sm:$0xff] %v1897
      %s1930 = smul.u32 32, %s15
      %p1931 = scmp.lt.s32.totalorder %s1930, 63
      %s1932 = scalar_select %p1931, %s1930, 63
      %s1933 = smul.addr %s1932, 8
      %s1934 = scalar_lea.vmem %s4, %s1933
      // Predicated region
      $region37: #{conv_block_forward.3} parent=35 // pred_check
        %p1935 = pneg %p122
      $region38: #{conv_block_forward.3} parent=35 // pred_check_branch
        %1937 = sbr.rel (%p1935) target = $region40
      $region39: #{conv_block_forward.3} parent=35 // pred_region
        %s1938 = smul.u32 32, %s15
      $region40: #{conv_block_forward.3} parent=35 // pred_fallthru
        _
    $region36: #{conv_block_forward.3} parent=5 // pred_fallthru
      _
    %p1939 = scmp.le.s32.totalorder 2, %s10
    // Predicated region
    $region41: #{conv_block_forward.3} parent=5 // pred_check
      %p1940 = pneg %p1939
    $region42: #{conv_block_forward.3} parent=5 // pred_check_branch
      %1942 = sbr.rel (%p1940) target = $region44
    $region43: #{conv_block_forward.3} parent=5 // pred_region
      %s1943 = ssub.s32 %s10, 2
      // Predicated region
      $region45: #{conv_block_forward.3} parent=43 // pred_check
        %p1944 = pneg %p128
      $region46: #{conv_block_forward.3} parent=43 // pred_check_branch
        %1946 = sbr.rel (%p1944) target = $region48
      $region47: #{conv_block_forward.3} parent=43 // pred_region
        %s1947 = smul.u32 32, %s16
        %p1948 = scmp.lt.s32.totalorder %s1947, 63
        %s1949 = scalar_select %p1948, %s1947, 63
        %s1950 = smul.addr %s1949, 8
        %s1951 = scalar_lea.vmem %s4, %s1950
      $region48: #{conv_block_forward.3} parent=43 // pred_fallthru
        _
    $region44: #{conv_block_forward.3} parent=5 // pred_fallthru
      _
  $region6: #{conv_block_forward.3} parent=0 // loop_footer
    %s14 = sadd.s32 1, %s10
  $region7: #{conv_block_forward.3} parent=0 // loop_footer_branch
    %9 = sbr.rel target = $region3
  $region8: #{conv_block_forward.3} parent=0 // loop_exit
    _

</llo_original>
